<compile_context>
chip_gen: v5e
topology: v5e:2x2
jax: 0.10.0
libtpu: 0.0.40
codegen_flags: <defaults>
</compile_context>

<pallas_src>
import functools

import jax
import jax.numpy as jnp
from jax import lax
from jax.experimental import pallas as pl
from jax.experimental.pallas import tpu as pltpu


# ---------------------------------------------------------------------------
# helpers
# ---------------------------------------------------------------------------
def _round_up(v, m):
    return (v + m - 1) // m * m


def _pad_to(a, shape):
    pads = [(0, s - d) for d, s in zip(a.shape, shape)]
    return jnp.pad(a, pads)


def _prep_gate_matrix(w, H, Hp, Kp):
    """torch-layout (4H, K) -> (Kp, 4*Hp) bf16, per-gate zero-padded columns."""
    w_t = jnp.asarray(w, jnp.float32).T            # (K, 4H), cols = [i|f|g|o]
    K = w_t.shape[0]
    blocks = []
    for g in range(4):
        blk = w_t[:, g * H:(g + 1) * H]            # (K, H)
        blk = jnp.pad(blk, ((0, Kp - K), (0, Hp - H)))
        blocks.append(blk)
    return jnp.concatenate(blocks, axis=1).astype(jnp.bfloat16)   # (Kp, 4*Hp)


def _prep_gate_bias(b_ih, b_hh, H, Hp):
    """Combined bias (4H,) -> (1, 4*Hp) f32, per-gate zero-padded."""
    b = (jnp.asarray(b_ih, jnp.float32) + jnp.asarray(b_hh, jnp.float32))
    blocks = [jnp.pad(b[g * H:(g + 1) * H], (0, Hp - H)) for g in range(4)]
    return jnp.concatenate(blocks).reshape(1, 4 * Hp)


# ---------------------------------------------------------------------------
# fused kernel: LSTM layers -> last step -> Linear -> L2 normalize
# ---------------------------------------------------------------------------
def _make_nnet_kernel(num_layers):
    def kernel(*refs):
        nl = num_layers
        x_ref = refs[0]                               # (T, Np, Fp)  f32
        w_refs = refs[1:1 + 3 * nl]                   # per layer: wih, whh, b
        wlin_ref = refs[1 + 3 * nl]                   # (Hp, Ep)     bf16
        blin_ref = refs[2 + 3 * nl]                   # (1, Ep)      f32
        out_ref = refs[3 + 3 * nl]                    # (Np, Ep)     f32
        xp_ref = refs[4 + 3 * nl]                     # (T, Np, 4Hp) f32 scratch
        hall_ref = refs[5 + 3 * nl]                   # (T, Np, Hp)  f32 scratch

        T, Np, Fp = x_ref.shape
        Hp = hall_ref.shape[-1]
        G = 4 * Hp
        zero = jnp.zeros((Np, Hp), jnp.float32)

        h_last = zero
        for l in range(nl):
            wih_ref, whh_ref, b_ref = w_refs[3 * l:3 * l + 3]

            # --- hoisted input projection for the whole sequence (one matmul)
            if l == 0:
                inp2d = x_ref[...].astype(jnp.bfloat16).reshape(T * Np, Fp)
            else:
                inp2d = hall_ref[...].reshape(T * Np, Hp).astype(jnp.bfloat16)
            proj = jnp.dot(inp2d, wih_ref[...],
                           preferred_element_type=jnp.float32)     # (T*Np, G)
            xp_ref[...] = proj.reshape(T, Np, G) + b_ref[...]

            whh = whh_ref[...]                                       # bf16
            is_top = (l == nl - 1)

            # --- serial recurrence: one small matmul + elementwise per step
            def step(t, carry, whh=whh, is_top=is_top):
                h, c = carry                                         # f32
                gates = xp_ref[t] + jnp.dot(
                    h.astype(jnp.bfloat16), whh,
                    preferred_element_type=jnp.float32)              # (Np, G)
                # full-vreg transcendentals, then lane-aligned gate slabs
                sig = jax.nn.sigmoid(gates)
                tah = jnp.tanh(gates)
                i_g = sig[:, 0 * Hp:1 * Hp]
                f_g = sig[:, 1 * Hp:2 * Hp]
                g_g = tah[:, 2 * Hp:3 * Hp]
                o_g = sig[:, 3 * Hp:4 * Hp]
                c = f_g * c + i_g * g_g
                h = o_g * jnp.tanh(c)
                if not is_top:
                    hall_ref[t] = h   # only non-top layers need the full seq
                return h, c

            h_last, _ = lax.fori_loop(0, T, step, (zero, zero), unroll=True)

        # --- head: Linear + L2 normalize on the last time step only
        y = jnp.dot(h_last.astype(jnp.bfloat16), wlin_ref[...],
                    preferred_element_type=jnp.float32) + blin_ref[...]
        inv = lax.rsqrt(jnp.sum(y * y, axis=-1, keepdims=True))
        out_ref[...] = (y * inv).astype(out_ref.dtype)

    return kernel


# ---------------------------------------------------------------------------
# wrapper: pad / transpose params and inputs, single pallas_call
# ---------------------------------------------------------------------------
def nnet_forward(x, params):
    # x: (N, T, F) batch-first; 2-D input gets a leading batch dim (like the
    # PyTorch module, whose output is then (1, E)).
    if x.ndim == 2:
        x = x[None]
    N, T, F = x.shape
    lstm = params["lstm"]
    nl = len(lstm)
    H = lstm[0][1].shape[1]            # w_hh: (4H, H)
    E = params["w_lin"].shape[0]

    Np = _round_up(N, 8)               # sublane-native batch
    Fp = _round_up(F, 128)             # lane-native feature dim
    Hp = _round_up(H, 128)             # lane-native hidden dim (per gate)
    Ep = _round_up(E, 128)             # lane-native embedding dim
    G = 4 * Hp

    # time-major, zero-padded input (kept f32; cast to bf16 inside the kernel)
    x_t = jnp.transpose(x, (1, 0, 2)).astype(jnp.float32)          # (T, N, F)
    x_p = _pad_to(x_t, (T, Np, Fp))                                 # (T, Np, Fp)

    flat_inputs = [x_p]
    in_specs = [pl.BlockSpec((T, Np, Fp), lambda: (0, 0, 0))]

    for li, (w_ih, w_hh, b_ih, b_hh) in enumerate(lstm):
        Kin = Fp if li == 0 else Hp
        wih_p = _prep_gate_matrix(w_ih, H, Hp, Kin)                 # (Kin, G) bf16
        whh_p = _prep_gate_matrix(w_hh, H, Hp, Hp)                  # (Hp, G)  bf16
        b_p = _prep_gate_bias(b_ih, b_hh, H, Hp)                    # (1, G)   f32
        flat_inputs += [wih_p, whh_p, b_p]
        in_specs += [
            pl.BlockSpec((Kin, G), lambda: (0, 0)),
            pl.BlockSpec((Hp, G), lambda: (0, 0)),
            pl.BlockSpec((1, G), lambda: (0, 0)),
        ]

    wlin_p = _pad_to(jnp.asarray(params["w_lin"], jnp.float32).T,
                     (Hp, Ep)).astype(jnp.bfloat16)                 # (Hp, Ep)
    blin_p = _pad_to(jnp.asarray(params["b_lin"], jnp.float32),
                     (Ep,)).reshape(1, Ep)                          # (1, Ep)
    flat_inputs += [wlin_p, blin_p]
    in_specs += [
        pl.BlockSpec((Hp, Ep), lambda: (0, 0)),
        pl.BlockSpec((1, Ep), lambda: (0, 0)),
    ]

    out = pl.pallas_call(
        _make_nnet_kernel(nl),
        out_shape=jax.ShapeDtypeStruct((Np, Ep), jnp.float32),
        in_specs=in_specs,
        out_specs=pl.BlockSpec((Np, Ep), lambda: (0, 0)),
        scratch_shapes=[
            pltpu.VMEM((T, Np, G), jnp.float32),    # hoisted input projections
            pltpu.VMEM((T, Np, Hp), jnp.float32),   # intermediate-layer h_t
        ],
    )(*flat_inputs)

    return out[:N, :E]


# ---------------------------------------------------------------------------
# parameter init (PyTorch-style uniform(-1/sqrt(H), 1/sqrt(H)), torch layouts)
# ---------------------------------------------------------------------------
def init_params(key, feature_dim, hidden_size, num_layers, embedding_dim):
    params = {"lstm": []}
    k = 1.0 / float(jnp.sqrt(jnp.float32(hidden_size)))
    in_dim = feature_dim
    for _ in range(num_layers):
        key, k1, k2, k3, k4 = jax.random.split(key, 5)
        w_ih = jax.random.uniform(k1, (4 * hidden_size, in_dim), jnp.float32, -k, k)
        w_hh = jax.random.uniform(k2, (4 * hidden_size, hidden_size), jnp.float32, -k, k)
        b_ih = jax.random.uniform(k3, (4 * hidden_size,), jnp.float32, -k, k)
        b_hh = jax.random.uniform(k4, (4 * hidden_size,), jnp.float32, -k, k)
        params["lstm"].append((w_ih, w_hh, b_ih, b_hh))
        in_dim = hidden_size
    key, k5, k6 = jax.random.split(key, 3)
    params["w_lin"] = jax.random.uniform(
        k5, (embedding_dim, hidden_size), jnp.float32, -k, k)
    params["b_lin"] = jax.random.uniform(
        k6, (embedding_dim,), jnp.float32, -k, k)
    return params


# ---------------------------------------------------------------------------
# pure-JAX f32 reference (matches the PyTorch module semantics)
# ---------------------------------------------------------------------------
def nnet_reference(x, params):
    if x.ndim == 2:
        x = x[None]
    h_seq = jnp.transpose(x, (1, 0, 2)).astype(jnp.float32)   # (T, N, F)
    for (w_ih, w_hh, b_ih, b_hh) in params["lstm"]:
        T, N, _ = h_seq.shape
        H = w_hh.shape[1]
        h = jnp.zeros((N, H), jnp.float32)
        c = jnp.zeros((N, H), jnp.float32)
        outs = []
        for t in range(T):
            gates = h_seq[t] @ w_ih.T + h @ w_hh.T + b_ih + b_hh
            i_g = jax.nn.sigmoid(gates[:, 0 * H:1 * H])
            f_g = jax.nn.sigmoid(gates[:, 1 * H:2 * H])
            g_g = jnp.tanh(gates[:, 2 * H:3 * H])
            o_g = jax.nn.sigmoid(gates[:, 3 * H:4 * H])
            c = f_g * c + i_g * g_g
            h = o_g * jnp.tanh(c)
            outs.append(h)
        h_seq = jnp.stack(outs, axis=0)
    y = h_seq[-1] @ params["w_lin"].T + params["b_lin"]
    return y / jnp.linalg.norm(y, axis=-1, keepdims=True)


if __name__ == "__main__":
    # Small shapes consistent with the module forward: batch N, time T, feat F
    N, T, F_DIM = 4, 8, 16
    HIDDEN, LAYERS, EMB = 32, 2, 32

    key = jax.random.PRNGKey(0)
    key, kx = jax.random.split(key)
    x = jax.random.normal(kx, (N, T, F_DIM), jnp.float32)

    params = init_params(key, F_DIM, HIDDEN, LAYERS, EMB)

    out = nnet_forward(x, params)
    out = jax.block_until_ready(out)

    assert out.shape == (N, EMB)
    assert bool(jnp.all(jnp.isfinite(out)))

    # unit-normalized embeddings
    norms = jnp.sqrt(jnp.sum(out * out, axis=-1))
    assert bool(jnp.all(jnp.abs(norms - 1.0) < 1e-3))

    # loose tolerance vs. the f32 reference (kernel matmuls run in bf16)
    ref = nnet_reference(x, params)
    assert bool(jnp.max(jnp.abs(out - ref)) < 5e-2)

    print("KERNEL_OK")
</pallas_src>

<mosaic_0001>
module attributes {stable_mosaic.version = 11 : i64} {
  func.func @kernel(%arg0: memref<8x8x128xf32, #tpu.memory_space<vmem>>, %arg1: memref<128x512xbf16, #tpu.memory_space<vmem>>, %arg2: memref<128x512xbf16, #tpu.memory_space<vmem>>, %arg3: memref<1x512xf32, #tpu.memory_space<vmem>>, %arg4: memref<128x512xbf16, #tpu.memory_space<vmem>>, %arg5: memref<128x512xbf16, #tpu.memory_space<vmem>>, %arg6: memref<1x512xf32, #tpu.memory_space<vmem>>, %arg7: memref<128x128xbf16, #tpu.memory_space<vmem>>, %arg8: memref<1x128xf32, #tpu.memory_space<vmem>>, %arg9: memref<8x128xf32, #tpu.memory_space<vmem>>, %arg10: memref<8x8x512xf32, #tpu.memory_space<vmem>>, %arg11: memref<8x8x128xf32, #tpu.memory_space<vmem>>) attributes {dimension_semantics = [], scalar_prefetch = 0 : i64, scratch_operands = 2 : i64, tpu.core_type = #tpu.core_type<tc>} {
    %cst = arith.constant 0.000000e+00 : f32
    %0 = vector.broadcast %cst : f32 to vector<8x128xf32>
    %c0 = arith.constant 0 : index
    %c0_0 = arith.constant 0 : index
    %c0_1 = arith.constant 0 : index
    %1 = vector.load %arg0[%c0, %c0_0, %c0_1] : memref<8x8x128xf32, #tpu.memory_space<vmem>>, vector<8x8x128xf32>
    %2 = arith.truncf %1 : vector<8x8x128xf32> to vector<8x8x128xbf16>
    %3 = vector.shape_cast %2 : vector<8x8x128xbf16> to vector<64x128xbf16>
    %c0_2 = arith.constant 0 : index
    %c0_3 = arith.constant 0 : index
    %4 = vector.load %arg1[%c0_2, %c0_3] : memref<128x512xbf16, #tpu.memory_space<vmem>>, vector<128x512xbf16>
    %cst_4 = arith.constant dense<0.000000e+00> : vector<64x512xf32>
    %5 = tpu.matmul %3, %4, %cst_4 {dimension_numbers = #tpu.dot_dimension_numbers<[1], [0], [0], [1], [0, 0, 1, 1], [], []>} : vector<64x128xbf16>, vector<128x512xbf16>, vector<64x512xf32> -> vector<64x512xf32>
    %6 = vector.shape_cast %5 : vector<64x512xf32> to vector<8x8x512xf32>
    %c0_5 = arith.constant 0 : index
    %c0_6 = arith.constant 0 : index
    %7 = vector.load %arg3[%c0_5, %c0_6] : memref<1x512xf32, #tpu.memory_space<vmem>>, vector<1x512xf32>
    %8 = vector.shape_cast %7 : vector<1x512xf32> to vector<1x1x512xf32>
    %9 = vector.broadcast %8 : vector<1x1x512xf32> to vector<8x8x512xf32>
    %10 = arith.addf %6, %9 : vector<8x8x512xf32>
    %c0_7 = arith.constant 0 : index
    %c0_8 = arith.constant 0 : index
    %c0_9 = arith.constant 0 : index
    %11 = vector.load %arg10[%c0_7, %c0_8, %c0_9] : memref<8x8x512xf32, #tpu.memory_space<vmem>>, vector<8x8x512xf32>
    tpu.vector_store %arg10[%c0_7, %c0_8, %c0_9], %10 {strides = array<i32>} : memref<8x8x512xf32, #tpu.memory_space<vmem>>, vector<8x8x512xf32>,
    %c0_10 = arith.constant 0 : index
    %c0_11 = arith.constant 0 : index
    %12 = vector.load %arg2[%c0_10, %c0_11] : memref<128x512xbf16, #tpu.memory_space<vmem>>, vector<128x512xbf16>
    %c0_i32 = arith.constant 0 : i32
    %13 = arith.index_cast %c0_i32 : i32 to index
    %c0_12 = arith.constant 0 : index
    %c0_13 = arith.constant 0 : index
    %14 = vector.load %arg10[%13, %c0_12, %c0_13] : memref<8x8x512xf32, #tpu.memory_space<vmem>>, vector<1x8x512xf32>
    %15 = vector.shape_cast %14 : vector<1x8x512xf32> to vector<8x512xf32>
    %16 = arith.truncf %0 : vector<8x128xf32> to vector<8x128xbf16>
    %cst_14 = arith.constant dense<0.000000e+00> : vector<8x512xf32>
    %17 = tpu.matmul %16, %12, %cst_14 {dimension_numbers = #tpu.dot_dimension_numbers<[1], [0], [0], [1], [0, 0, 1, 1], [], []>} : vector<8x128xbf16>, vector<128x512xbf16>, vector<8x512xf32> -> vector<8x512xf32>
    %18 = arith.addf %15, %17 : vector<8x512xf32>
    %19 = arith.negf %18 : vector<8x512xf32>
    %20 = math.exp %19 : vector<8x512xf32>
    %cst_15 = arith.constant 1.000000e+00 : f32
    %21 = vector.broadcast %cst_15 : f32 to vector<8x512xf32>
    %22 = arith.addf %21, %20 : vector<8x512xf32>
    %23 = arith.divf %21, %22 : vector<8x512xf32>
    %24 = math.tanh %18 : vector<8x512xf32>
    %25 = vector.extract_strided_slice %23 {offsets = [0, 0], sizes = [8, 128], strides = [1, 1]} : vector<8x512xf32> to vector<8x128xf32>
    %26 = vector.extract_strided_slice %23 {offsets = [0, 128], sizes = [8, 128], strides = [1, 1]} : vector<8x512xf32> to vector<8x128xf32>
    %27 = vector.extract_strided_slice %24 {offsets = [0, 256], sizes = [8, 128], strides = [1, 1]} : vector<8x512xf32> to vector<8x128xf32>
    %28 = vector.extract_strided_slice %23 {offsets = [0, 384], sizes = [8, 128], strides = [1, 1]} : vector<8x512xf32> to vector<8x128xf32>
    %29 = arith.mulf %26, %0 : vector<8x128xf32>
    %30 = arith.mulf %25, %27 : vector<8x128xf32>
    %31 = arith.addf %29, %30 : vector<8x128xf32>
    %32 = math.tanh %31 : vector<8x128xf32>
    %33 = arith.mulf %28, %32 : vector<8x128xf32>
    %34 = arith.index_cast %c0_i32 : i32 to index
    %c0_16 = arith.constant 0 : index
    %c0_17 = arith.constant 0 : index
    %35 = vector.load %arg11[%34, %c0_16, %c0_17] : memref<8x8x128xf32, #tpu.memory_space<vmem>>, vector<1x8x128xf32>
    %36 = vector.shape_cast %35 : vector<1x8x128xf32> to vector<8x128xf32>
    %37 = vector.shape_cast %33 : vector<8x128xf32> to vector<1x8x128xf32>
    tpu.vector_store %arg11[%34, %c0_16, %c0_17], %37 {strides = array<i32>} : memref<8x8x128xf32, #tpu.memory_space<vmem>>, vector<1x8x128xf32>,
    %c1_i32 = arith.constant 1 : i32
    %38 = arith.index_cast %c1_i32 : i32 to index
    %c0_18 = arith.constant 0 : index
    %c0_19 = arith.constant 0 : index
    %39 = vector.load %arg10[%38, %c0_18, %c0_19] : memref<8x8x512xf32, #tpu.memory_space<vmem>>, vector<1x8x512xf32>
    %40 = vector.shape_cast %39 : vector<1x8x512xf32> to vector<8x512xf32>
    %41 = arith.truncf %33 : vector<8x128xf32> to vector<8x128xbf16>
    %cst_20 = arith.constant dense<0.000000e+00> : vector<8x512xf32>
    %42 = tpu.matmul %41, %12, %cst_20 {dimension_numbers = #tpu.dot_dimension_numbers<[1], [0], [0], [1], [0, 0, 1, 1], [], []>} : vector<8x128xbf16>, vector<128x512xbf16>, vector<8x512xf32> -> vector<8x512xf32>
    %43 = arith.addf %40, %42 : vector<8x512xf32>
    %44 = arith.negf %43 : vector<8x512xf32>
    %45 = math.exp %44 : vector<8x512xf32>
    %cst_21 = arith.constant 1.000000e+00 : f32
    %46 = vector.broadcast %cst_21 : f32 to vector<8x512xf32>
    %47 = arith.addf %46, %45 : vector<8x512xf32>
    %48 = arith.divf %46, %47 : vector<8x512xf32>
    %49 = math.tanh %43 : vector<8x512xf32>
    %50 = vector.extract_strided_slice %48 {offsets = [0, 0], sizes = [8, 128], strides = [1, 1]} : vector<8x512xf32> to vector<8x128xf32>
    %51 = vector.extract_strided_slice %48 {offsets = [0, 128], sizes = [8, 128], strides = [1, 1]} : vector<8x512xf32> to vector<8x128xf32>
    %52 = vector.extract_strided_slice %49 {offsets = [0, 256], sizes = [8, 128], strides = [1, 1]} : vector<8x512xf32> to vector<8x128xf32>
    %53 = vector.extract_strided_slice %48 {offsets = [0, 384], sizes = [8, 128], strides = [1, 1]} : vector<8x512xf32> to vector<8x128xf32>
    %54 = arith.mulf %51, %31 : vector<8x128xf32>
    %55 = arith.mulf %50, %52 : vector<8x128xf32>
    %56 = arith.addf %54, %55 : vector<8x128xf32>
    %57 = math.tanh %56 : vector<8x128xf32>
    %58 = arith.mulf %53, %57 : vector<8x128xf32>
    %59 = arith.index_cast %c1_i32 : i32 to index
    %c0_22 = arith.constant 0 : index
    %c0_23 = arith.constant 0 : index
    %60 = vector.load %arg11[%59, %c0_22, %c0_23] : memref<8x8x128xf32, #tpu.memory_space<vmem>>, vector<1x8x128xf32>
    %61 = vector.shape_cast %60 : vector<1x8x128xf32> to vector<8x128xf32>
    %62 = vector.shape_cast %58 : vector<8x128xf32> to vector<1x8x128xf32>
    tpu.vector_store %arg11[%59, %c0_22, %c0_23], %62 {strides = array<i32>} : memref<8x8x128xf32, #tpu.memory_space<vmem>>, vector<1x8x128xf32>,
    %c2_i32 = arith.constant 2 : i32
    %63 = arith.index_cast %c2_i32 : i32 to index
    %c0_24 = arith.constant 0 : index
    %c0_25 = arith.constant 0 : index
    %64 = vector.load %arg10[%63, %c0_24, %c0_25] : memref<8x8x512xf32, #tpu.memory_space<vmem>>, vector<1x8x512xf32>
    %65 = vector.shape_cast %64 : vector<1x8x512xf32> to vector<8x512xf32>
    %66 = arith.truncf %58 : vector<8x128xf32> to vector<8x128xbf16>
    %cst_26 = arith.constant dense<0.000000e+00> : vector<8x512xf32>
    %67 = tpu.matmul %66, %12, %cst_26 {dimension_numbers = #tpu.dot_dimension_numbers<[1], [0], [0], [1], [0, 0, 1, 1], [], []>} : vector<8x128xbf16>, vector<128x512xbf16>, vector<8x512xf32> -> vector<8x512xf32>
    %68 = arith.addf %65, %67 : vector<8x512xf32>
    %69 = arith.negf %68 : vector<8x512xf32>
    %70 = math.exp %69 : vector<8x512xf32>
    %cst_27 = arith.constant 1.000000e+00 : f32
    %71 = vector.broadcast %cst_27 : f32 to vector<8x512xf32>
    %72 = arith.addf %71, %70 : vector<8x512xf32>
    %73 = arith.divf %71, %72 : vector<8x512xf32>
    %74 = math.tanh %68 : vector<8x512xf32>
    %75 = vector.extract_strided_slice %73 {offsets = [0, 0], sizes = [8, 128], strides = [1, 1]} : vector<8x512xf32> to vector<8x128xf32>
    %76 = vector.extract_strided_slice %73 {offsets = [0, 128], sizes = [8, 128], strides = [1, 1]} : vector<8x512xf32> to vector<8x128xf32>
    %77 = vector.extract_strided_slice %74 {offsets = [0, 256], sizes = [8, 128], strides = [1, 1]} : vector<8x512xf32> to vector<8x128xf32>
    %78 = vector.extract_strided_slice %73 {offsets = [0, 384], sizes = [8, 128], strides = [1, 1]} : vector<8x512xf32> to vector<8x128xf32>
    %79 = arith.mulf %76, %56 : vector<8x128xf32>
    %80 = arith.mulf %75, %77 : vector<8x128xf32>
    %81 = arith.addf %79, %80 : vector<8x128xf32>
    %82 = math.tanh %81 : vector<8x128xf32>
    %83 = arith.mulf %78, %82 : vector<8x128xf32>
    %84 = arith.index_cast %c2_i32 : i32 to index
    %c0_28 = arith.constant 0 : index
    %c0_29 = arith.constant 0 : index
    %85 = vector.load %arg11[%84, %c0_28, %c0_29] : memref<8x8x128xf32, #tpu.memory_space<vmem>>, vector<1x8x128xf32>
    %86 = vector.shape_cast %85 : vector<1x8x128xf32> to vector<8x128xf32>
    %87 = vector.shape_cast %83 : vector<8x128xf32> to vector<1x8x128xf32>
    tpu.vector_store %arg11[%84, %c0_28, %c0_29], %87 {strides = array<i32>} : memref<8x8x128xf32, #tpu.memory_space<vmem>>, vector<1x8x128xf32>,
    %c3_i32 = arith.constant 3 : i32
    %88 = arith.index_cast %c3_i32 : i32 to index
    %c0_30 = arith.constant 0 : index
    %c0_31 = arith.constant 0 : index
    %89 = vector.load %arg10[%88, %c0_30, %c0_31] : memref<8x8x512xf32, #tpu.memory_space<vmem>>, vector<1x8x512xf32>
    %90 = vector.shape_cast %89 : vector<1x8x512xf32> to vector<8x512xf32>
    %91 = arith.truncf %83 : vector<8x128xf32> to vector<8x128xbf16>
    %cst_32 = arith.constant dense<0.000000e+00> : vector<8x512xf32>
    %92 = tpu.matmul %91, %12, %cst_32 {dimension_numbers = #tpu.dot_dimension_numbers<[1], [0], [0], [1], [0, 0, 1, 1], [], []>} : vector<8x128xbf16>, vector<128x512xbf16>, vector<8x512xf32> -> vector<8x512xf32>
    %93 = arith.addf %90, %92 : vector<8x512xf32>
    %94 = arith.negf %93 : vector<8x512xf32>
    %95 = math.exp %94 : vector<8x512xf32>
    %cst_33 = arith.constant 1.000000e+00 : f32
    %96 = vector.broadcast %cst_33 : f32 to vector<8x512xf32>
    %97 = arith.addf %96, %95 : vector<8x512xf32>
    %98 = arith.divf %96, %97 : vector<8x512xf32>
    %99 = math.tanh %93 : vector<8x512xf32>
    %100 = vector.extract_strided_slice %98 {offsets = [0, 0], sizes = [8, 128], strides = [1, 1]} : vector<8x512xf32> to vector<8x128xf32>
    %101 = vector.extract_strided_slice %98 {offsets = [0, 128], sizes = [8, 128], strides = [1, 1]} : vector<8x512xf32> to vector<8x128xf32>
    %102 = vector.extract_strided_slice %99 {offsets = [0, 256], sizes = [8, 128], strides = [1, 1]} : vector<8x512xf32> to vector<8x128xf32>
    %103 = vector.extract_strided_slice %98 {offsets = [0, 384], sizes = [8, 128], strides = [1, 1]} : vector<8x512xf32> to vector<8x128xf32>
    %104 = arith.mulf %101, %81 : vector<8x128xf32>
    %105 = arith.mulf %100, %102 : vector<8x128xf32>
    %106 = arith.addf %104, %105 : vector<8x128xf32>
    %107 = math.tanh %106 : vector<8x128xf32>
    %108 = arith.mulf %103, %107 : vector<8x128xf32>
    %109 = arith.index_cast %c3_i32 : i32 to index
    %c0_34 = arith.constant 0 : index
    %c0_35 = arith.constant 0 : index
    %110 = vector.load %arg11[%109, %c0_34, %c0_35] : memref<8x8x128xf32, #tpu.memory_space<vmem>>, vector<1x8x128xf32>
    %111 = vector.shape_cast %110 : vector<1x8x128xf32> to vector<8x128xf32>
    %112 = vector.shape_cast %108 : vector<8x128xf32> to vector<1x8x128xf32>
    tpu.vector_store %arg11[%109, %c0_34, %c0_35], %112 {strides = array<i32>} : memref<8x8x128xf32, #tpu.memory_space<vmem>>, vector<1x8x128xf32>,
    %c4_i32 = arith.constant 4 : i32
    %113 = arith.index_cast %c4_i32 : i32 to index
    %c0_36 = arith.constant 0 : index
    %c0_37 = arith.constant 0 : index
    %114 = vector.load %arg10[%113, %c0_36, %c0_37] : memref<8x8x512xf32, #tpu.memory_space<vmem>>, vector<1x8x512xf32>
    %115 = vector.shape_cast %114 : vector<1x8x512xf32> to vector<8x512xf32>
    %116 = arith.truncf %108 : vector<8x128xf32> to vector<8x128xbf16>
    %cst_38 = arith.constant dense<0.000000e+00> : vector<8x512xf32>
    %117 = tpu.matmul %116, %12, %cst_38 {dimension_numbers = #tpu.dot_dimension_numbers<[1], [0], [0], [1], [0, 0, 1, 1], [], []>} : vector<8x128xbf16>, vector<128x512xbf16>, vector<8x512xf32> -> vector<8x512xf32>
    %118 = arith.addf %115, %117 : vector<8x512xf32>
    %119 = arith.negf %118 : vector<8x512xf32>
    %120 = math.exp %119 : vector<8x512xf32>
    %cst_39 = arith.constant 1.000000e+00 : f32
    %121 = vector.broadcast %cst_39 : f32 to vector<8x512xf32>
    %122 = arith.addf %121, %120 : vector<8x512xf32>
    %123 = arith.divf %121, %122 : vector<8x512xf32>
    %124 = math.tanh %118 : vector<8x512xf32>
    %125 = vector.extract_strided_slice %123 {offsets = [0, 0], sizes = [8, 128], strides = [1, 1]} : vector<8x512xf32> to vector<8x128xf32>
    %126 = vector.extract_strided_slice %123 {offsets = [0, 128], sizes = [8, 128], strides = [1, 1]} : vector<8x512xf32> to vector<8x128xf32>
    %127 = vector.extract_strided_slice %124 {offsets = [0, 256], sizes = [8, 128], strides = [1, 1]} : vector<8x512xf32> to vector<8x128xf32>
    %128 = vector.extract_strided_slice %123 {offsets = [0, 384], sizes = [8, 128], strides = [1, 1]} : vector<8x512xf32> to vector<8x128xf32>
    %129 = arith.mulf %126, %106 : vector<8x128xf32>
    %130 = arith.mulf %125, %127 : vector<8x128xf32>
    %131 = arith.addf %129, %130 : vector<8x128xf32>
    %132 = math.tanh %131 : vector<8x128xf32>
    %133 = arith.mulf %128, %132 : vector<8x128xf32>
    %134 = arith.index_cast %c4_i32 : i32 to index
    %c0_40 = arith.constant 0 : index
    %c0_41 = arith.constant 0 : index
    %135 = vector.load %arg11[%134, %c0_40, %c0_41] : memref<8x8x128xf32, #tpu.memory_space<vmem>>, vector<1x8x128xf32>
    %136 = vector.shape_cast %135 : vector<1x8x128xf32> to vector<8x128xf32>
    %137 = vector.shape_cast %133 : vector<8x128xf32> to vector<1x8x128xf32>
    tpu.vector_store %arg11[%134, %c0_40, %c0_41], %137 {strides = array<i32>} : memref<8x8x128xf32, #tpu.memory_space<vmem>>, vector<1x8x128xf32>,
    %c5_i32 = arith.constant 5 : i32
    %138 = arith.index_cast %c5_i32 : i32 to index
    %c0_42 = arith.constant 0 : index
    %c0_43 = arith.constant 0 : index
    %139 = vector.load %arg10[%138, %c0_42, %c0_43] : memref<8x8x512xf32, #tpu.memory_space<vmem>>, vector<1x8x512xf32>
    %140 = vector.shape_cast %139 : vector<1x8x512xf32> to vector<8x512xf32>
    %141 = arith.truncf %133 : vector<8x128xf32> to vector<8x128xbf16>
    %cst_44 = arith.constant dense<0.000000e+00> : vector<8x512xf32>
    %142 = tpu.matmul %141, %12, %cst_44 {dimension_numbers = #tpu.dot_dimension_numbers<[1], [0], [0], [1], [0, 0, 1, 1], [], []>} : vector<8x128xbf16>, vector<128x512xbf16>, vector<8x512xf32> -> vector<8x512xf32>
    %143 = arith.addf %140, %142 : vector<8x512xf32>
    %144 = arith.negf %143 : vector<8x512xf32>
    %145 = math.exp %144 : vector<8x512xf32>
    %cst_45 = arith.constant 1.000000e+00 : f32
    %146 = vector.broadcast %cst_45 : f32 to vector<8x512xf32>
    %147 = arith.addf %146, %145 : vector<8x512xf32>
    %148 = arith.divf %146, %147 : vector<8x512xf32>
    %149 = math.tanh %143 : vector<8x512xf32>
    %150 = vector.extract_strided_slice %148 {offsets = [0, 0], sizes = [8, 128], strides = [1, 1]} : vector<8x512xf32> to vector<8x128xf32>
    %151 = vector.extract_strided_slice %148 {offsets = [0, 128], sizes = [8, 128], strides = [1, 1]} : vector<8x512xf32> to vector<8x128xf32>
    %152 = vector.extract_strided_slice %149 {offsets = [0, 256], sizes = [8, 128], strides = [1, 1]} : vector<8x512xf32> to vector<8x128xf32>
    %153 = vector.extract_strided_slice %148 {offsets = [0, 384], sizes = [8, 128], strides = [1, 1]} : vector<8x512xf32> to vector<8x128xf32>
    %154 = arith.mulf %151, %131 : vector<8x128xf32>
    %155 = arith.mulf %150, %152 : vector<8x128xf32>
    %156 = arith.addf %154, %155 : vector<8x128xf32>
    %157 = math.tanh %156 : vector<8x128xf32>
    %158 = arith.mulf %153, %157 : vector<8x128xf32>
    %159 = arith.index_cast %c5_i32 : i32 to index
    %c0_46 = arith.constant 0 : index
    %c0_47 = arith.constant 0 : index
    %160 = vector.load %arg11[%159, %c0_46, %c0_47] : memref<8x8x128xf32, #tpu.memory_space<vmem>>, vector<1x8x128xf32>
    %161 = vector.shape_cast %160 : vector<1x8x128xf32> to vector<8x128xf32>
    %162 = vector.shape_cast %158 : vector<8x128xf32> to vector<1x8x128xf32>
    tpu.vector_store %arg11[%159, %c0_46, %c0_47], %162 {strides = array<i32>} : memref<8x8x128xf32, #tpu.memory_space<vmem>>, vector<1x8x128xf32>,
    %c6_i32 = arith.constant 6 : i32
    %163 = arith.index_cast %c6_i32 : i32 to index
    %c0_48 = arith.constant 0 : index
    %c0_49 = arith.constant 0 : index
    %164 = vector.load %arg10[%163, %c0_48, %c0_49] : memref<8x8x512xf32, #tpu.memory_space<vmem>>, vector<1x8x512xf32>
    %165 = vector.shape_cast %164 : vector<1x8x512xf32> to vector<8x512xf32>
    %166 = arith.truncf %158 : vector<8x128xf32> to vector<8x128xbf16>
    %cst_50 = arith.constant dense<0.000000e+00> : vector<8x512xf32>
    %167 = tpu.matmul %166, %12, %cst_50 {dimension_numbers = #tpu.dot_dimension_numbers<[1], [0], [0], [1], [0, 0, 1, 1], [], []>} : vector<8x128xbf16>, vector<128x512xbf16>, vector<8x512xf32> -> vector<8x512xf32>
    %168 = arith.addf %165, %167 : vector<8x512xf32>
    %169 = arith.negf %168 : vector<8x512xf32>
    %170 = math.exp %169 : vector<8x512xf32>
    %cst_51 = arith.constant 1.000000e+00 : f32
    %171 = vector.broadcast %cst_51 : f32 to vector<8x512xf32>
    %172 = arith.addf %171, %170 : vector<8x512xf32>
    %173 = arith.divf %171, %172 : vector<8x512xf32>
    %174 = math.tanh %168 : vector<8x512xf32>
    %175 = vector.extract_strided_slice %173 {offsets = [0, 0], sizes = [8, 128], strides = [1, 1]} : vector<8x512xf32> to vector<8x128xf32>
    %176 = vector.extract_strided_slice %173 {offsets = [0, 128], sizes = [8, 128], strides = [1, 1]} : vector<8x512xf32> to vector<8x128xf32>
    %177 = vector.extract_strided_slice %174 {offsets = [0, 256], sizes = [8, 128], strides = [1, 1]} : vector<8x512xf32> to vector<8x128xf32>
    %178 = vector.extract_strided_slice %173 {offsets = [0, 384], sizes = [8, 128], strides = [1, 1]} : vector<8x512xf32> to vector<8x128xf32>
    %179 = arith.mulf %176, %156 : vector<8x128xf32>
    %180 = arith.mulf %175, %177 : vector<8x128xf32>
    %181 = arith.addf %179, %180 : vector<8x128xf32>
    %182 = math.tanh %181 : vector<8x128xf32>
    %183 = arith.mulf %178, %182 : vector<8x128xf32>
    %184 = arith.index_cast %c6_i32 : i32 to index
    %c0_52 = arith.constant 0 : index
    %c0_53 = arith.constant 0 : index
    %185 = vector.load %arg11[%184, %c0_52, %c0_53] : memref<8x8x128xf32, #tpu.memory_space<vmem>>, vector<1x8x128xf32>
    %186 = vector.shape_cast %185 : vector<1x8x128xf32> to vector<8x128xf32>
    %187 = vector.shape_cast %183 : vector<8x128xf32> to vector<1x8x128xf32>
    tpu.vector_store %arg11[%184, %c0_52, %c0_53], %187 {strides = array<i32>} : memref<8x8x128xf32, #tpu.memory_space<vmem>>, vector<1x8x128xf32>,
    %c7_i32 = arith.constant 7 : i32
    %188 = arith.index_cast %c7_i32 : i32 to index
    %c0_54 = arith.constant 0 : index
    %c0_55 = arith.constant 0 : index
    %189 = vector.load %arg10[%188, %c0_54, %c0_55] : memref<8x8x512xf32, #tpu.memory_space<vmem>>, vector<1x8x512xf32>
    %190 = vector.shape_cast %189 : vector<1x8x512xf32> to vector<8x512xf32>
    %191 = arith.truncf %183 : vector<8x128xf32> to vector<8x128xbf16>
    %cst_56 = arith.constant dense<0.000000e+00> : vector<8x512xf32>
    %192 = tpu.matmul %191, %12, %cst_56 {dimension_numbers = #tpu.dot_dimension_numbers<[1], [0], [0], [1], [0, 0, 1, 1], [], []>} : vector<8x128xbf16>, vector<128x512xbf16>, vector<8x512xf32> -> vector<8x512xf32>
    %193 = arith.addf %190, %192 : vector<8x512xf32>
    %194 = arith.negf %193 : vector<8x512xf32>
    %195 = math.exp %194 : vector<8x512xf32>
    %cst_57 = arith.constant 1.000000e+00 : f32
    %196 = vector.broadcast %cst_57 : f32 to vector<8x512xf32>
    %197 = arith.addf %196, %195 : vector<8x512xf32>
    %198 = arith.divf %196, %197 : vector<8x512xf32>
    %199 = math.tanh %193 : vector<8x512xf32>
    %200 = vector.extract_strided_slice %198 {offsets = [0, 0], sizes = [8, 128], strides = [1, 1]} : vector<8x512xf32> to vector<8x128xf32>
    %201 = vector.extract_strided_slice %198 {offsets = [0, 128], sizes = [8, 128], strides = [1, 1]} : vector<8x512xf32> to vector<8x128xf32>
    %202 = vector.extract_strided_slice %199 {offsets = [0, 256], sizes = [8, 128], strides = [1, 1]} : vector<8x512xf32> to vector<8x128xf32>
    %203 = vector.extract_strided_slice %198 {offsets = [0, 384], sizes = [8, 128], strides = [1, 1]} : vector<8x512xf32> to vector<8x128xf32>
    %204 = arith.mulf %201, %181 : vector<8x128xf32>
    %205 = arith.mulf %200, %202 : vector<8x128xf32>
    %206 = arith.addf %204, %205 : vector<8x128xf32>
    %207 = math.tanh %206 : vector<8x128xf32>
    %208 = arith.mulf %203, %207 : vector<8x128xf32>
    %209 = arith.index_cast %c7_i32 : i32 to index
    %c0_58 = arith.constant 0 : index
    %c0_59 = arith.constant 0 : index
    %210 = vector.load %arg11[%209, %c0_58, %c0_59] : memref<8x8x128xf32, #tpu.memory_space<vmem>>, vector<1x8x128xf32>
    %211 = vector.shape_cast %210 : vector<1x8x128xf32> to vector<8x128xf32>
    %212 = vector.shape_cast %208 : vector<8x128xf32> to vector<1x8x128xf32>
    tpu.vector_store %arg11[%209, %c0_58, %c0_59], %212 {strides = array<i32>} : memref<8x8x128xf32, #tpu.memory_space<vmem>>, vector<1x8x128xf32>,
    %c8_i32 = arith.constant 8 : i32
    %c0_60 = arith.constant 0 : index
    %c0_61 = arith.constant 0 : index
    %c0_62 = arith.constant 0 : index
    %213 = vector.load %arg11[%c0_60, %c0_61, %c0_62] : memref<8x8x128xf32, #tpu.memory_space<vmem>>, vector<8x8x128xf32>
    %214 = vector.shape_cast %213 : vector<8x8x128xf32> to vector<64x128xf32>
    %215 = arith.truncf %214 : vector<64x128xf32> to vector<64x128xbf16>
    %c0_63 = arith.constant 0 : index
    %c0_64 = arith.constant 0 : index
    %216 = vector.load %arg4[%c0_63, %c0_64] : memref<128x512xbf16, #tpu.memory_space<vmem>>, vector<128x512xbf16>
    %cst_65 = arith.constant dense<0.000000e+00> : vector<64x512xf32>
    %217 = tpu.matmul %215, %216, %cst_65 {dimension_numbers = #tpu.dot_dimension_numbers<[1], [0], [0], [1], [0, 0, 1, 1], [], []>} : vector<64x128xbf16>, vector<128x512xbf16>, vector<64x512xf32> -> vector<64x512xf32>
    %218 = vector.shape_cast %217 : vector<64x512xf32> to vector<8x8x512xf32>
    %c0_66 = arith.constant 0 : index
    %c0_67 = arith.constant 0 : index
    %219 = vector.load %arg6[%c0_66, %c0_67] : memref<1x512xf32, #tpu.memory_space<vmem>>, vector<1x512xf32>
    %220 = vector.shape_cast %219 : vector<1x512xf32> to vector<1x1x512xf32>
    %221 = vector.broadcast %220 : vector<1x1x512xf32> to vector<8x8x512xf32>
    %222 = arith.addf %218, %221 : vector<8x8x512xf32>
    %c0_68 = arith.constant 0 : index
    %c0_69 = arith.constant 0 : index
    %c0_70 = arith.constant 0 : index
    %223 = vector.load %arg10[%c0_68, %c0_69, %c0_70] : memref<8x8x512xf32, #tpu.memory_space<vmem>>, vector<8x8x512xf32>
    tpu.vector_store %arg10[%c0_68, %c0_69, %c0_70], %222 {strides = array<i32>} : memref<8x8x512xf32, #tpu.memory_space<vmem>>, vector<8x8x512xf32>,
    %c0_71 = arith.constant 0 : index
    %c0_72 = arith.constant 0 : index
    %224 = vector.load %arg5[%c0_71, %c0_72] : memref<128x512xbf16, #tpu.memory_space<vmem>>, vector<128x512xbf16>
    %c0_i32_73 = arith.constant 0 : i32
    %225 = arith.index_cast %c0_i32_73 : i32 to index
    %c0_74 = arith.constant 0 : index
    %c0_75 = arith.constant 0 : index
    %226 = vector.load %arg10[%225, %c0_74, %c0_75] : memref<8x8x512xf32, #tpu.memory_space<vmem>>, vector<1x8x512xf32>
    %227 = vector.shape_cast %226 : vector<1x8x512xf32> to vector<8x512xf32>
    %228 = arith.truncf %0 : vector<8x128xf32> to vector<8x128xbf16>
    %cst_76 = arith.constant dense<0.000000e+00> : vector<8x512xf32>
    %229 = tpu.matmul %228, %224, %cst_76 {dimension_numbers = #tpu.dot_dimension_numbers<[1], [0], [0], [1], [0, 0, 1, 1], [], []>} : vector<8x128xbf16>, vector<128x512xbf16>, vector<8x512xf32> -> vector<8x512xf32>
    %230 = arith.addf %227, %229 : vector<8x512xf32>
    %231 = arith.negf %230 : vector<8x512xf32>
    %232 = math.exp %231 : vector<8x512xf32>
    %cst_77 = arith.constant 1.000000e+00 : f32
    %233 = vector.broadcast %cst_77 : f32 to vector<8x512xf32>
    %234 = arith.addf %233, %232 : vector<8x512xf32>
    %235 = arith.divf %233, %234 : vector<8x512xf32>
    %236 = math.tanh %230 : vector<8x512xf32>
    %237 = vector.extract_strided_slice %235 {offsets = [0, 0], sizes = [8, 128], strides = [1, 1]} : vector<8x512xf32> to vector<8x128xf32>
    %238 = vector.extract_strided_slice %235 {offsets = [0, 128], sizes = [8, 128], strides = [1, 1]} : vector<8x512xf32> to vector<8x128xf32>
    %239 = vector.extract_strided_slice %236 {offsets = [0, 256], sizes = [8, 128], strides = [1, 1]} : vector<8x512xf32> to vector<8x128xf32>
    %240 = vector.extract_strided_slice %235 {offsets = [0, 384], sizes = [8, 128], strides = [1, 1]} : vector<8x512xf32> to vector<8x128xf32>
    %241 = arith.mulf %238, %0 : vector<8x128xf32>
    %242 = arith.mulf %237, %239 : vector<8x128xf32>
    %243 = arith.addf %241, %242 : vector<8x128xf32>
    %244 = math.tanh %243 : vector<8x128xf32>
    %245 = arith.mulf %240, %244 : vector<8x128xf32>
    %c1_i32_78 = arith.constant 1 : i32
    %246 = arith.index_cast %c1_i32_78 : i32 to index
    %c0_79 = arith.constant 0 : index
    %c0_80 = arith.constant 0 : index
    %247 = vector.load %arg10[%246, %c0_79, %c0_80] : memref<8x8x512xf32, #tpu.memory_space<vmem>>, vector<1x8x512xf32>
    %248 = vector.shape_cast %247 : vector<1x8x512xf32> to vector<8x512xf32>
    %249 = arith.truncf %245 : vector<8x128xf32> to vector<8x128xbf16>
    %cst_81 = arith.constant dense<0.000000e+00> : vector<8x512xf32>
    %250 = tpu.matmul %249, %224, %cst_81 {dimension_numbers = #tpu.dot_dimension_numbers<[1], [0], [0], [1], [0, 0, 1, 1], [], []>} : vector<8x128xbf16>, vector<128x512xbf16>, vector<8x512xf32> -> vector<8x512xf32>
    %251 = arith.addf %248, %250 : vector<8x512xf32>
    %252 = arith.negf %251 : vector<8x512xf32>
    %253 = math.exp %252 : vector<8x512xf32>
    %cst_82 = arith.constant 1.000000e+00 : f32
    %254 = vector.broadcast %cst_82 : f32 to vector<8x512xf32>
    %255 = arith.addf %254, %253 : vector<8x512xf32>
    %256 = arith.divf %254, %255 : vector<8x512xf32>
    %257 = math.tanh %251 : vector<8x512xf32>
    %258 = vector.extract_strided_slice %256 {offsets = [0, 0], sizes = [8, 128], strides = [1, 1]} : vector<8x512xf32> to vector<8x128xf32>
    %259 = vector.extract_strided_slice %256 {offsets = [0, 128], sizes = [8, 128], strides = [1, 1]} : vector<8x512xf32> to vector<8x128xf32>
    %260 = vector.extract_strided_slice %257 {offsets = [0, 256], sizes = [8, 128], strides = [1, 1]} : vector<8x512xf32> to vector<8x128xf32>
    %261 = vector.extract_strided_slice %256 {offsets = [0, 384], sizes = [8, 128], strides = [1, 1]} : vector<8x512xf32> to vector<8x128xf32>
    %262 = arith.mulf %259, %243 : vector<8x128xf32>
    %263 = arith.mulf %258, %260 : vector<8x128xf32>
    %264 = arith.addf %262, %263 : vector<8x128xf32>
    %265 = math.tanh %264 : vector<8x128xf32>
    %266 = arith.mulf %261, %265 : vector<8x128xf32>
    %c2_i32_83 = arith.constant 2 : i32
    %267 = arith.index_cast %c2_i32_83 : i32 to index
    %c0_84 = arith.constant 0 : index
    %c0_85 = arith.constant 0 : index
    %268 = vector.load %arg10[%267, %c0_84, %c0_85] : memref<8x8x512xf32, #tpu.memory_space<vmem>>, vector<1x8x512xf32>
    %269 = vector.shape_cast %268 : vector<1x8x512xf32> to vector<8x512xf32>
    %270 = arith.truncf %266 : vector<8x128xf32> to vector<8x128xbf16>
    %cst_86 = arith.constant dense<0.000000e+00> : vector<8x512xf32>
    %271 = tpu.matmul %270, %224, %cst_86 {dimension_numbers = #tpu.dot_dimension_numbers<[1], [0], [0], [1], [0, 0, 1, 1], [], []>} : vector<8x128xbf16>, vector<128x512xbf16>, vector<8x512xf32> -> vector<8x512xf32>
    %272 = arith.addf %269, %271 : vector<8x512xf32>
    %273 = arith.negf %272 : vector<8x512xf32>
    %274 = math.exp %273 : vector<8x512xf32>
    %cst_87 = arith.constant 1.000000e+00 : f32
    %275 = vector.broadcast %cst_87 : f32 to vector<8x512xf32>
    %276 = arith.addf %275, %274 : vector<8x512xf32>
    %277 = arith.divf %275, %276 : vector<8x512xf32>
    %278 = math.tanh %272 : vector<8x512xf32>
    %279 = vector.extract_strided_slice %277 {offsets = [0, 0], sizes = [8, 128], strides = [1, 1]} : vector<8x512xf32> to vector<8x128xf32>
    %280 = vector.extract_strided_slice %277 {offsets = [0, 128], sizes = [8, 128], strides = [1, 1]} : vector<8x512xf32> to vector<8x128xf32>
    %281 = vector.extract_strided_slice %278 {offsets = [0, 256], sizes = [8, 128], strides = [1, 1]} : vector<8x512xf32> to vector<8x128xf32>
    %282 = vector.extract_strided_slice %277 {offsets = [0, 384], sizes = [8, 128], strides = [1, 1]} : vector<8x512xf32> to vector<8x128xf32>
    %283 = arith.mulf %280, %264 : vector<8x128xf32>
    %284 = arith.mulf %279, %281 : vector<8x128xf32>
    %285 = arith.addf %283, %284 : vector<8x128xf32>
    %286 = math.tanh %285 : vector<8x128xf32>
    %287 = arith.mulf %282, %286 : vector<8x128xf32>
    %c3_i32_88 = arith.constant 3 : i32
    %288 = arith.index_cast %c3_i32_88 : i32 to index
    %c0_89 = arith.constant 0 : index
    %c0_90 = arith.constant 0 : index
    %289 = vector.load %arg10[%288, %c0_89, %c0_90] : memref<8x8x512xf32, #tpu.memory_space<vmem>>, vector<1x8x512xf32>
    %290 = vector.shape_cast %289 : vector<1x8x512xf32> to vector<8x512xf32>
    %291 = arith.truncf %287 : vector<8x128xf32> to vector<8x128xbf16>
    %cst_91 = arith.constant dense<0.000000e+00> : vector<8x512xf32>
    %292 = tpu.matmul %291, %224, %cst_91 {dimension_numbers = #tpu.dot_dimension_numbers<[1], [0], [0], [1], [0, 0, 1, 1], [], []>} : vector<8x128xbf16>, vector<128x512xbf16>, vector<8x512xf32> -> vector<8x512xf32>
    %293 = arith.addf %290, %292 : vector<8x512xf32>
    %294 = arith.negf %293 : vector<8x512xf32>
    %295 = math.exp %294 : vector<8x512xf32>
    %cst_92 = arith.constant 1.000000e+00 : f32
    %296 = vector.broadcast %cst_92 : f32 to vector<8x512xf32>
    %297 = arith.addf %296, %295 : vector<8x512xf32>
    %298 = arith.divf %296, %297 : vector<8x512xf32>
    %299 = math.tanh %293 : vector<8x512xf32>
    %300 = vector.extract_strided_slice %298 {offsets = [0, 0], sizes = [8, 128], strides = [1, 1]} : vector<8x512xf32> to vector<8x128xf32>
    %301 = vector.extract_strided_slice %298 {offsets = [0, 128], sizes = [8, 128], strides = [1, 1]} : vector<8x512xf32> to vector<8x128xf32>
    %302 = vector.extract_strided_slice %299 {offsets = [0, 256], sizes = [8, 128], strides = [1, 1]} : vector<8x512xf32> to vector<8x128xf32>
    %303 = vector.extract_strided_slice %298 {offsets = [0, 384], sizes = [8, 128], strides = [1, 1]} : vector<8x512xf32> to vector<8x128xf32>
    %304 = arith.mulf %301, %285 : vector<8x128xf32>
    %305 = arith.mulf %300, %302 : vector<8x128xf32>
    %306 = arith.addf %304, %305 : vector<8x128xf32>
    %307 = math.tanh %306 : vector<8x128xf32>
    %308 = arith.mulf %303, %307 : vector<8x128xf32>
    %c4_i32_93 = arith.constant 4 : i32
    %309 = arith.index_cast %c4_i32_93 : i32 to index
    %c0_94 = arith.constant 0 : index
    %c0_95 = arith.constant 0 : index
    %310 = vector.load %arg10[%309, %c0_94, %c0_95] : memref<8x8x512xf32, #tpu.memory_space<vmem>>, vector<1x8x512xf32>
    %311 = vector.shape_cast %310 : vector<1x8x512xf32> to vector<8x512xf32>
    %312 = arith.truncf %308 : vector<8x128xf32> to vector<8x128xbf16>
    %cst_96 = arith.constant dense<0.000000e+00> : vector<8x512xf32>
    %313 = tpu.matmul %312, %224, %cst_96 {dimension_numbers = #tpu.dot_dimension_numbers<[1], [0], [0], [1], [0, 0, 1, 1], [], []>} : vector<8x128xbf16>, vector<128x512xbf16>, vector<8x512xf32> -> vector<8x512xf32>
    %314 = arith.addf %311, %313 : vector<8x512xf32>
    %315 = arith.negf %314 : vector<8x512xf32>
    %316 = math.exp %315 : vector<8x512xf32>
    %cst_97 = arith.constant 1.000000e+00 : f32
    %317 = vector.broadcast %cst_97 : f32 to vector<8x512xf32>
    %318 = arith.addf %317, %316 : vector<8x512xf32>
    %319 = arith.divf %317, %318 : vector<8x512xf32>
    %320 = math.tanh %314 : vector<8x512xf32>
    %321 = vector.extract_strided_slice %319 {offsets = [0, 0], sizes = [8, 128], strides = [1, 1]} : vector<8x512xf32> to vector<8x128xf32>
    %322 = vector.extract_strided_slice %319 {offsets = [0, 128], sizes = [8, 128], strides = [1, 1]} : vector<8x512xf32> to vector<8x128xf32>
    %323 = vector.extract_strided_slice %320 {offsets = [0, 256], sizes = [8, 128], strides = [1, 1]} : vector<8x512xf32> to vector<8x128xf32>
    %324 = vector.extract_strided_slice %319 {offsets = [0, 384], sizes = [8, 128], strides = [1, 1]} : vector<8x512xf32> to vector<8x128xf32>
    %325 = arith.mulf %322, %306 : vector<8x128xf32>
    %326 = arith.mulf %321, %323 : vector<8x128xf32>
    %327 = arith.addf %325, %326 : vector<8x128xf32>
    %328 = math.tanh %327 : vector<8x128xf32>
    %329 = arith.mulf %324, %328 : vector<8x128xf32>
    %c5_i32_98 = arith.constant 5 : i32
    %330 = arith.index_cast %c5_i32_98 : i32 to index
    %c0_99 = arith.constant 0 : index
    %c0_100 = arith.constant 0 : index
    %331 = vector.load %arg10[%330, %c0_99, %c0_100] : memref<8x8x512xf32, #tpu.memory_space<vmem>>, vector<1x8x512xf32>
    %332 = vector.shape_cast %331 : vector<1x8x512xf32> to vector<8x512xf32>
    %333 = arith.truncf %329 : vector<8x128xf32> to vector<8x128xbf16>
    %cst_101 = arith.constant dense<0.000000e+00> : vector<8x512xf32>
    %334 = tpu.matmul %333, %224, %cst_101 {dimension_numbers = #tpu.dot_dimension_numbers<[1], [0], [0], [1], [0, 0, 1, 1], [], []>} : vector<8x128xbf16>, vector<128x512xbf16>, vector<8x512xf32> -> vector<8x512xf32>
    %335 = arith.addf %332, %334 : vector<8x512xf32>
    %336 = arith.negf %335 : vector<8x512xf32>
    %337 = math.exp %336 : vector<8x512xf32>
    %cst_102 = arith.constant 1.000000e+00 : f32
    %338 = vector.broadcast %cst_102 : f32 to vector<8x512xf32>
    %339 = arith.addf %338, %337 : vector<8x512xf32>
    %340 = arith.divf %338, %339 : vector<8x512xf32>
    %341 = math.tanh %335 : vector<8x512xf32>
    %342 = vector.extract_strided_slice %340 {offsets = [0, 0], sizes = [8, 128], strides = [1, 1]} : vector<8x512xf32> to vector<8x128xf32>
    %343 = vector.extract_strided_slice %340 {offsets = [0, 128], sizes = [8, 128], strides = [1, 1]} : vector<8x512xf32> to vector<8x128xf32>
    %344 = vector.extract_strided_slice %341 {offsets = [0, 256], sizes = [8, 128], strides = [1, 1]} : vector<8x512xf32> to vector<8x128xf32>
    %345 = vector.extract_strided_slice %340 {offsets = [0, 384], sizes = [8, 128], strides = [1, 1]} : vector<8x512xf32> to vector<8x128xf32>
    %346 = arith.mulf %343, %327 : vector<8x128xf32>
    %347 = arith.mulf %342, %344 : vector<8x128xf32>
    %348 = arith.addf %346, %347 : vector<8x128xf32>
    %349 = math.tanh %348 : vector<8x128xf32>
    %350 = arith.mulf %345, %349 : vector<8x128xf32>
    %c6_i32_103 = arith.constant 6 : i32
    %351 = arith.index_cast %c6_i32_103 : i32 to index
    %c0_104 = arith.constant 0 : index
    %c0_105 = arith.constant 0 : index
    %352 = vector.load %arg10[%351, %c0_104, %c0_105] : memref<8x8x512xf32, #tpu.memory_space<vmem>>, vector<1x8x512xf32>
    %353 = vector.shape_cast %352 : vector<1x8x512xf32> to vector<8x512xf32>
    %354 = arith.truncf %350 : vector<8x128xf32> to vector<8x128xbf16>
    %cst_106 = arith.constant dense<0.000000e+00> : vector<8x512xf32>
    %355 = tpu.matmul %354, %224, %cst_106 {dimension_numbers = #tpu.dot_dimension_numbers<[1], [0], [0], [1], [0, 0, 1, 1], [], []>} : vector<8x128xbf16>, vector<128x512xbf16>, vector<8x512xf32> -> vector<8x512xf32>
    %356 = arith.addf %353, %355 : vector<8x512xf32>
    %357 = arith.negf %356 : vector<8x512xf32>
    %358 = math.exp %357 : vector<8x512xf32>
    %cst_107 = arith.constant 1.000000e+00 : f32
    %359 = vector.broadcast %cst_107 : f32 to vector<8x512xf32>
    %360 = arith.addf %359, %358 : vector<8x512xf32>
    %361 = arith.divf %359, %360 : vector<8x512xf32>
    %362 = math.tanh %356 : vector<8x512xf32>
    %363 = vector.extract_strided_slice %361 {offsets = [0, 0], sizes = [8, 128], strides = [1, 1]} : vector<8x512xf32> to vector<8x128xf32>
    %364 = vector.extract_strided_slice %361 {offsets = [0, 128], sizes = [8, 128], strides = [1, 1]} : vector<8x512xf32> to vector<8x128xf32>
    %365 = vector.extract_strided_slice %362 {offsets = [0, 256], sizes = [8, 128], strides = [1, 1]} : vector<8x512xf32> to vector<8x128xf32>
    %366 = vector.extract_strided_slice %361 {offsets = [0, 384], sizes = [8, 128], strides = [1, 1]} : vector<8x512xf32> to vector<8x128xf32>
    %367 = arith.mulf %364, %348 : vector<8x128xf32>
    %368 = arith.mulf %363, %365 : vector<8x128xf32>
    %369 = arith.addf %367, %368 : vector<8x128xf32>
    %370 = math.tanh %369 : vector<8x128xf32>
    %371 = arith.mulf %366, %370 : vector<8x128xf32>
    %c7_i32_108 = arith.constant 7 : i32
    %372 = arith.index_cast %c7_i32_108 : i32 to index
    %c0_109 = arith.constant 0 : index
    %c0_110 = arith.constant 0 : index
    %373 = vector.load %arg10[%372, %c0_109, %c0_110] : memref<8x8x512xf32, #tpu.memory_space<vmem>>, vector<1x8x512xf32>
    %374 = vector.shape_cast %373 : vector<1x8x512xf32> to vector<8x512xf32>
    %375 = arith.truncf %371 : vector<8x128xf32> to vector<8x128xbf16>
    %cst_111 = arith.constant dense<0.000000e+00> : vector<8x512xf32>
    %376 = tpu.matmul %375, %224, %cst_111 {dimension_numbers = #tpu.dot_dimension_numbers<[1], [0], [0], [1], [0, 0, 1, 1], [], []>} : vector<8x128xbf16>, vector<128x512xbf16>, vector<8x512xf32> -> vector<8x512xf32>
    %377 = arith.addf %374, %376 : vector<8x512xf32>
    %378 = arith.negf %377 : vector<8x512xf32>
    %379 = math.exp %378 : vector<8x512xf32>
    %cst_112 = arith.constant 1.000000e+00 : f32
    %380 = vector.broadcast %cst_112 : f32 to vector<8x512xf32>
    %381 = arith.addf %380, %379 : vector<8x512xf32>
    %382 = arith.divf %380, %381 : vector<8x512xf32>
    %383 = math.tanh %377 : vector<8x512xf32>
    %384 = vector.extract_strided_slice %382 {offsets = [0, 0], sizes = [8, 128], strides = [1, 1]} : vector<8x512xf32> to vector<8x128xf32>
    %385 = vector.extract_strided_slice %382 {offsets = [0, 128], sizes = [8, 128], strides = [1, 1]} : vector<8x512xf32> to vector<8x128xf32>
    %386 = vector.extract_strided_slice %383 {offsets = [0, 256], sizes = [8, 128], strides = [1, 1]} : vector<8x512xf32> to vector<8x128xf32>
    %387 = vector.extract_strided_slice %382 {offsets = [0, 384], sizes = [8, 128], strides = [1, 1]} : vector<8x512xf32> to vector<8x128xf32>
    %388 = arith.mulf %385, %369 : vector<8x128xf32>
    %389 = arith.mulf %384, %386 : vector<8x128xf32>
    %390 = arith.addf %388, %389 : vector<8x128xf32>
    %391 = math.tanh %390 : vector<8x128xf32>
    %392 = arith.mulf %387, %391 : vector<8x128xf32>
    %c8_i32_113 = arith.constant 8 : i32
    %393 = arith.truncf %392 : vector<8x128xf32> to vector<8x128xbf16>
    %c0_114 = arith.constant 0 : index
    %c0_115 = arith.constant 0 : index
    %394 = vector.load %arg7[%c0_114, %c0_115] : memref<128x128xbf16, #tpu.memory_space<vmem>>, vector<128x128xbf16>
    %cst_116 = arith.constant dense<0.000000e+00> : vector<8x128xf32>
    %395 = tpu.matmul %393, %394, %cst_116 {dimension_numbers = #tpu.dot_dimension_numbers<[1], [0], [0], [1], [0, 0, 1, 1], [], []>} : vector<8x128xbf16>, vector<128x128xbf16>, vector<8x128xf32> -> vector<8x128xf32>
    %c0_117 = arith.constant 0 : index
    %c0_118 = arith.constant 0 : index
    %396 = vector.load %arg8[%c0_117, %c0_118] : memref<1x128xf32, #tpu.memory_space<vmem>>, vector<1x128xf32>
    %397 = vector.broadcast %396 : vector<1x128xf32> to vector<8x128xf32>
    %398 = arith.addf %395, %397 : vector<8x128xf32>
    %399 = arith.mulf %398, %398 : vector<8x128xf32>
    %cst_119 = arith.constant dense<0.000000e+00> : vector<8xf32>
    %400 = vector.multi_reduction <add>, %399, %cst_119 [1] : vector<8x128xf32> to vector<8xf32>
    %401 = vector.shape_cast %400 : vector<8xf32> to vector<8x1xf32>
    %402 = math.rsqrt %401 : vector<8x1xf32>
    %403 = vector.broadcast %402 : vector<8x1xf32> to vector<8x128xf32>
    %404 = arith.mulf %398, %403 : vector<8x128xf32>
    %c0_120 = arith.constant 0 : index
    %c0_121 = arith.constant 0 : index
    %405 = vector.load %arg9[%c0_120, %c0_121] : memref<8x128xf32, #tpu.memory_space<vmem>>, vector<8x128xf32>
    tpu.vector_store %arg9[%c0_120, %c0_121], %404 {strides = array<i32>} : memref<8x128xf32, #tpu.memory_space<vmem>>, vector<8x128xf32>,
    return
  }
}

</mosaic_0001>

<llo_original>
// kernel: tpu_custom_call.1
$region0: #{tpu_custom_call.1}
  #allocation0 [shape = 'u32[]', space=smem, size = 0x4, offset = 0x4, fixed_abs, tag = 'smem constant byte address 0x4 - core index']
  #allocation1 [shape = 'u32[72,128]{1,0:T(1,128)}', space=vmem, size = 0x9000, scoped, tag = 'internal scratch']
  #allocation2 [shape = 'f32[8,8,512]{2,1,0:T(8,128)}', space=vmem, size = 0x20000, scoped, tag = 'scratch operand']
  #allocation3 [shape = 'f32[8,8,128]{2,1,0:T(8,128)}', space=vmem, size = 0x8000, scoped, tag = 'scratch operand']
  %s0 = inlined_call_operand.hbm [shape: f32[8,8,128], index: 0, kind: input, shape index: {}]
  %s1 = inlined_call_operand.hbm [shape: bf16[128,512], index: 1, kind: input, shape index: {}]
  %s2 = inlined_call_operand.hbm [shape: bf16[128,512], index: 2, kind: input, shape index: {}]
  %s3 = inlined_call_operand.hbm [shape: f32[1,512], index: 3, kind: input, shape index: {}]
  %s4 = inlined_call_operand.hbm [shape: bf16[128,512], index: 4, kind: input, shape index: {}]
  %s5 = inlined_call_operand.hbm [shape: bf16[128,512], index: 5, kind: input, shape index: {}]
  %s6 = inlined_call_operand.vmem [shape: f32[1,512], index: 6, kind: input, shape index: {}]
  %s7 = inlined_call_operand.hbm [shape: bf16[128,128], index: 7, kind: input, shape index: {}]
  %s8 = inlined_call_operand.vmem [shape: f32[1,128], index: 8, kind: input, shape index: {}]
  %s9 = inlined_call_operand.hbm [shape: f32[8,128], index: 9, kind: output, shape index: {}]
  %s10 = sld [smem:[#allocation0]]
  $region74: #{tpu_custom_call.1} parent=0
    _
  %s12 = ssub.s32 1, %s10
  %s13 = scalar_select 0, %s12, %s10
  $region1: #{tpu_custom_call.1} parent=0
    #allocation4 [shape = 'u8[32768]{0}', space=vmem, size = 0x8000, scoped, tag = 'input window, operand 0, single buffered']
    #allocation5 [shape = 's32[1]{0}', space=sflag, size = 0x4, scoped, tag = 'scoped memory for tpu_custom_call.1']
    #allocation6 [shape = 's32[1]{0}', space=sflag, size = 0x4, scoped, tag = 'scoped memory for tpu_custom_call.1']
    #allocation7 [shape = 'u8[131072]{0}', space=vmem, size = 0x20000, scoped, tag = 'input window, operand 1, single buffered']
    #allocation8 [shape = 's32[1]{0}', space=sflag, size = 0x4, scoped, tag = 'scoped memory for tpu_custom_call.1']
    #allocation9 [shape = 'u8[131072]{0}', space=vmem, size = 0x20000, scoped, tag = 'input window, operand 2, single buffered']
    #allocation10 [shape = 'u8[2048]{0}', space=vmem, size = 0x800, scoped, tag = 'input window, operand 3, single buffered']
    #allocation11 [shape = 's32[1]{0}', space=sflag, size = 0x4, scoped, tag = 'scoped memory for tpu_custom_call.1']
    #allocation12 [shape = 'u8[131072]{0}', space=vmem, size = 0x20000, scoped, tag = 'input window, operand 4, single buffered']
    #allocation13 [shape = 'u8[131072]{0}', space=vmem, size = 0x20000, scoped, tag = 'input window, operand 5, single buffered']
    #allocation14 [shape = 's32[1]{0}', space=sflag, size = 0x4, scoped, tag = 'scoped memory for tpu_custom_call.1']
    #allocation15 [shape = 'u8[32768]{0}', space=vmem, size = 0x8000, scoped, tag = 'input window, operand 7, single buffered']
    #allocation16 [shape = 'u8[4096]{0}', space=vmem, size = 0x1000, scoped, tag = 'output window, operand 0, single buffered']
    %14 = vsyncpa [#allocation5], 0
    %15 = vsyncpa [#allocation8], 0
    %16 = vsyncpa [#allocation11], 0
    %17 = vsyncpa [#allocation14], 0
    %18 = vsyncpa [#allocation6], 0
    // Predicated region
    $region2: #{tpu_custom_call.1} parent=1 // pred_check
      _
    $region3: #{tpu_custom_call.1} parent=1 // pred_check_branch
      %20 = sbr.rel (0) target = $region5
    $region4: #{tpu_custom_call.1} parent=1 // pred_region
      %22 = vsyncadd [#allocation5], 0
      %s23 = sshll.u32 %s0, 4
      %s24 = int_to_ptr.hbm [resolvable:$true] %s23
      %s25 = sshll.u32 [#allocation4], 4
      %s26 = int_to_ptr.vmem [resolvable:$true] %s25
      %31 = dma.hbm_to_vmem [thread:$0]  %s24, 1024, %s26, [#allocation5], 128, 128, 8
    $region5: #{tpu_custom_call.1} parent=1 // pred_fallthru
      _
    // Predicated region
    $region6: #{tpu_custom_call.1} parent=1 // pred_check
      _
    $region7: #{tpu_custom_call.1} parent=1 // pred_check_branch
      %33 = sbr.rel (0) target = $region9
    $region8: #{tpu_custom_call.1} parent=1 // pred_region
      %35 = vsyncadd [#allocation8], 0
      %s36 = sshll.u32 %s1, 4
      %s37 = int_to_ptr.hbm [resolvable:$true] %s36
      %s38 = sshll.u32 [#allocation7], 4
      %s39 = int_to_ptr.vmem [resolvable:$true] %s38
      %44 = dma.hbm_to_vmem [thread:$0]  %s37, 4096, %s39, [#allocation8], 256, 256, 16
    $region9: #{tpu_custom_call.1} parent=1 // pred_fallthru
      _
    // Predicated region
    $region10: #{tpu_custom_call.1} parent=1 // pred_check
      _
    $region11: #{tpu_custom_call.1} parent=1 // pred_check_branch
      %46 = sbr.rel (0) target = $region13
    $region12: #{tpu_custom_call.1} parent=1 // pred_region
      %48 = vsyncadd [#allocation8], 0
      %s49 = sshll.u32 %s2, 4
      %s50 = int_to_ptr.hbm [resolvable:$true] %s49
      %s51 = sshll.u32 [#allocation9], 4
      %s52 = int_to_ptr.vmem [resolvable:$true] %s51
      %57 = dma.hbm_to_vmem [thread:$0]  %s50, 4096, %s52, [#allocation8], 256, 256, 16
    $region13: #{tpu_custom_call.1} parent=1 // pred_fallthru
      _
    // Predicated region
    $region14: #{tpu_custom_call.1} parent=1 // pred_check
      _
    $region15: #{tpu_custom_call.1} parent=1 // pred_check_branch
      %59 = sbr.rel (0) target = $region17
    $region16: #{tpu_custom_call.1} parent=1 // pred_region
      %61 = vsyncadd [#allocation11], 0
      %s63 = sshll.u32 %s3, 4
      %s64 = int_to_ptr.hbm [resolvable:$true] %s63
      %s65 = sshll.u32 [#allocation10], 4
      %s66 = int_to_ptr.vmem [resolvable:$true] %s65
      %68 = dma.hbm_to_vmem [thread:$0]  %s64, 64, %s66, [#allocation11]
    $region17: #{tpu_custom_call.1} parent=1 // pred_fallthru
      _
    // Predicated region
    $region18: #{tpu_custom_call.1} parent=1 // pred_check
      _
    $region19: #{tpu_custom_call.1} parent=1 // pred_check_branch
      %70 = sbr.rel (0) target = $region21
    $region20: #{tpu_custom_call.1} parent=1 // pred_region
      %72 = vsyncadd [#allocation11], 0
      %s73 = sshll.u32 %s4, 4
      %s74 = int_to_ptr.hbm [resolvable:$true] %s73
      %s75 = sshll.u32 [#allocation12], 4
      %s76 = int_to_ptr.vmem [resolvable:$true] %s75
      %81 = dma.hbm_to_vmem [thread:$0]  %s74, 4096, %s76, [#allocation11], 256, 256, 16
    $region21: #{tpu_custom_call.1} parent=1 // pred_fallthru
      _
    // Predicated region
    $region22: #{tpu_custom_call.1} parent=1 // pred_check
      _
    $region23: #{tpu_custom_call.1} parent=1 // pred_check_branch
      %83 = sbr.rel (0) target = $region25
    $region24: #{tpu_custom_call.1} parent=1 // pred_region
      %85 = vsyncadd [#allocation14], 0
      %s86 = sshll.u32 %s5, 4
      %s87 = int_to_ptr.hbm [resolvable:$true] %s86
      %s88 = sshll.u32 [#allocation13], 4
      %s89 = int_to_ptr.vmem [resolvable:$true] %s88
      %94 = dma.hbm_to_vmem [thread:$0]  %s87, 4096, %s89, [#allocation14], 256, 256, 16
    $region25: #{tpu_custom_call.1} parent=1 // pred_fallthru
      _
    // Predicated region
    $region26: #{tpu_custom_call.1} parent=1 // pred_check
      _
    $region27: #{tpu_custom_call.1} parent=1 // pred_check_branch
      %96 = sbr.rel (0) target = $region29
    $region28: #{tpu_custom_call.1} parent=1 // pred_region
      _
    $region29: #{tpu_custom_call.1} parent=1 // pred_fallthru
      _
    // Predicated region
    $region30: #{tpu_custom_call.1} parent=1 // pred_check
      _
    $region31: #{tpu_custom_call.1} parent=1 // pred_check_branch
      %98 = sbr.rel (0) target = $region33
    $region32: #{tpu_custom_call.1} parent=1 // pred_region
      %100 = vsyncadd [#allocation14], 0
      %s101 = sshll.u32 %s7, 4
      %s102 = int_to_ptr.hbm [resolvable:$true] %s101
      %s103 = sshll.u32 [#allocation15], 4
      %s104 = int_to_ptr.vmem [resolvable:$true] %s103
      %109 = dma.hbm_to_vmem [thread:$0]  %s102, 1024, %s104, [#allocation14], 64, 64, 4
    $region33: #{tpu_custom_call.1} parent=1 // pred_fallthru
      _
    // Predicated region
    $region34: #{tpu_custom_call.1} parent=1 // pred_check
      _
    $region35: #{tpu_custom_call.1} parent=1 // pred_check_branch
      %111 = sbr.rel (0) target = $region37
    $region36: #{tpu_custom_call.1} parent=1 // pred_region
      _
    $region37: #{tpu_custom_call.1} parent=1 // pred_fallthru
      _
    // Predicated region
    $region38: #{tpu_custom_call.1} parent=1 // pred_check
      _
    $region39: #{tpu_custom_call.1} parent=1 // pred_check_branch
      %113 = sbr.rel (0) target = $region41
    $region40: #{tpu_custom_call.1} parent=1 // pred_region
      %115 = dma.done [#allocation5], 1024
    $region41: #{tpu_custom_call.1} parent=1 // pred_fallthru
      _
    // Predicated region
    $region42: #{tpu_custom_call.1} parent=1 // pred_check
      _
    $region43: #{tpu_custom_call.1} parent=1 // pred_check_branch
      %117 = sbr.rel (0) target = $region45
    $region44: #{tpu_custom_call.1} parent=1 // pred_region
      %119 = dma.done [#allocation8], 4096
    $region45: #{tpu_custom_call.1} parent=1 // pred_fallthru
      _
    // Predicated region
    $region46: #{tpu_custom_call.1} parent=1 // pred_check
      _
    $region47: #{tpu_custom_call.1} parent=1 // pred_check_branch
      %121 = sbr.rel (0) target = $region49
    $region48: #{tpu_custom_call.1} parent=1 // pred_region
      %123 = dma.done [#allocation8], 4096
    $region49: #{tpu_custom_call.1} parent=1 // pred_fallthru
      _
    // Predicated region
    $region50: #{tpu_custom_call.1} parent=1 // pred_check
      _
    $region51: #{tpu_custom_call.1} parent=1 // pred_check_branch
      %125 = sbr.rel (0) target = $region53
    $region52: #{tpu_custom_call.1} parent=1 // pred_region
      %127 = dma.done [#allocation11], 64
    $region53: #{tpu_custom_call.1} parent=1 // pred_fallthru
      _
    // Predicated region
    $region54: #{tpu_custom_call.1} parent=1 // pred_check
      _
    $region55: #{tpu_custom_call.1} parent=1 // pred_check_branch
      %129 = sbr.rel (0) target = $region57
    $region56: #{tpu_custom_call.1} parent=1 // pred_region
      %131 = dma.done [#allocation11], 4096
    $region57: #{tpu_custom_call.1} parent=1 // pred_fallthru
      _
    // Predicated region
    $region58: #{tpu_custom_call.1} parent=1 // pred_check
      _
    $region59: #{tpu_custom_call.1} parent=1 // pred_check_branch
      %133 = sbr.rel (0) target = $region61
    $region60: #{tpu_custom_call.1} parent=1 // pred_region
      %135 = dma.done [#allocation14], 4096
    $region61: #{tpu_custom_call.1} parent=1 // pred_fallthru
      _
    // Predicated region
    $region62: #{tpu_custom_call.1} parent=1 // pred_check
      _
    $region63: #{tpu_custom_call.1} parent=1 // pred_check_branch
      %137 = sbr.rel (0) target = $region65
    $region64: #{tpu_custom_call.1} parent=1 // pred_region
      %139 = dma.done [#allocation14], 1024
    $region65: #{tpu_custom_call.1} parent=1 // pred_fallthru
      _
    %v141 = vld [vmem:[#allocation4] sm:$0xff]
    %v142 = vld [vmem:[#allocation4 + $0x8] sm:$0xff]
    %v143 = vld [vmem:[#allocation4 + $0x10] sm:$0xff]
    %v144 = vld [vmem:[#allocation4 + $0x18] sm:$0xff]
    %v145 = vld [vmem:[#allocation4 + $0x20] sm:$0xff]
    %v146 = vld [vmem:[#allocation4 + $0x28] sm:$0xff]
    %v147 = vld [vmem:[#allocation4 + $0x30] sm:$0xff]
    %v148 = vld [vmem:[#allocation4 + $0x38] sm:$0xff]
    %v149 = vpack.c.bf16 %v141, %v141
    %v150 = vpack.c.bf16 %v142, %v142
    %v151 = vpack.c.bf16 %v143, %v143
    %v152 = vpack.c.bf16 %v144, %v144
    %v153 = vpack.c.bf16 %v145, %v145
    %v154 = vpack.c.bf16 %v146, %v146
    %v155 = vpack.c.bf16 %v147, %v147
    %v156 = vpack.c.bf16 %v148, %v148
    %v157 = vld [vmem:[#allocation7] sm:$0xff]
    %v158 = vld [vmem:[#allocation7 + $0x8] sm:$0xff]
    %v159 = vld [vmem:[#allocation7 + $0x10] sm:$0xff]
    %v160 = vld [vmem:[#allocation7 + $0x18] sm:$0xff]
    %v161 = vld [vmem:[#allocation7 + $0x20] sm:$0xff]
    %v162 = vld [vmem:[#allocation7 + $0x28] sm:$0xff]
    %v163 = vld [vmem:[#allocation7 + $0x30] sm:$0xff]
    %v164 = vld [vmem:[#allocation7 + $0x38] sm:$0xff]
    %v165 = vld [vmem:[#allocation7 + $0x40] sm:$0xff]
    %v166 = vld [vmem:[#allocation7 + $0x48] sm:$0xff]
    %v167 = vld [vmem:[#allocation7 + $0x50] sm:$0xff]
    %v168 = vld [vmem:[#allocation7 + $0x58] sm:$0xff]
    %v169 = vld [vmem:[#allocation7 + $0x60] sm:$0xff]
    %v170 = vld [vmem:[#allocation7 + $0x68] sm:$0xff]
    %v171 = vld [vmem:[#allocation7 + $0x70] sm:$0xff]
    %v172 = vld [vmem:[#allocation7 + $0x78] sm:$0xff]
    %v173 = vld [vmem:[#allocation7 + $0x80] sm:$0xff]
    %v174 = vld [vmem:[#allocation7 + $0x88] sm:$0xff]
    %v175 = vld [vmem:[#allocation7 + $0x90] sm:$0xff]
    %v176 = vld [vmem:[#allocation7 + $0x98] sm:$0xff]
    %v177 = vld [vmem:[#allocation7 + $0xa0] sm:$0xff]
    %v178 = vld [vmem:[#allocation7 + $0xa8] sm:$0xff]
    %v179 = vld [vmem:[#allocation7 + $0xb0] sm:$0xff]
    %v180 = vld [vmem:[#allocation7 + $0xb8] sm:$0xff]
    %v181 = vld [vmem:[#allocation7 + $0xc0] sm:$0xff]
    %v182 = vld [vmem:[#allocation7 + $0xc8] sm:$0xff]
    %v183 = vld [vmem:[#allocation7 + $0xd0] sm:$0xff]
    %v184 = vld [vmem:[#allocation7 + $0xd8] sm:$0xff]
    %v185 = vld [vmem:[#allocation7 + $0xe0] sm:$0xff]
    %v186 = vld [vmem:[#allocation7 + $0xe8] sm:$0xff]
    %v187 = vld [vmem:[#allocation7 + $0xf0] sm:$0xff]
    %v188 = vld [vmem:[#allocation7 + $0xf8] sm:$0xff]
    %v197 = vunpack.c.l.b16 %v149
    %v198 = vunpack.c.l.b16 %v150
    %v199 = vunpack.c.l.b16 %v151
    %v200 = vunpack.c.l.b16 %v152
    %v201 = vunpack.c.l.b16 %v153
    %v202 = vunpack.c.l.b16 %v154
    %v203 = vunpack.c.l.b16 %v155
    %v204 = vunpack.c.l.b16 %v156
    %v205 = vpack.c.b16 %v198, %v197
    %v206 = vpack.c.b16 %v200, %v199
    %v207 = vpack.c.b16 %v202, %v201
    %v208 = vpack.c.b16 %v204, %v203
    %v245 = vunpack.c.l.b16 %v157
    %v246 = vunpack.c.h.b16 %v157
    %v247 = vunpack.c.l.b16 %v158
    %v248 = vunpack.c.h.b16 %v158
    %v249 = vunpack.c.l.b16 %v159
    %v250 = vunpack.c.h.b16 %v159
    %v251 = vunpack.c.l.b16 %v160
    %v252 = vunpack.c.h.b16 %v160
    %v253 = vunpack.c.l.b16 %v161
    %v254 = vunpack.c.h.b16 %v161
    %v255 = vunpack.c.l.b16 %v162
    %v256 = vunpack.c.h.b16 %v162
    %v257 = vunpack.c.l.b16 %v163
    %v258 = vunpack.c.h.b16 %v163
    %v259 = vunpack.c.l.b16 %v164
    %v260 = vunpack.c.h.b16 %v164
    %v261 = vunpack.c.l.b16 %v165
    %v262 = vunpack.c.h.b16 %v165
    %v263 = vunpack.c.l.b16 %v166
    %v264 = vunpack.c.h.b16 %v166
    %v265 = vunpack.c.l.b16 %v167
    %v266 = vunpack.c.h.b16 %v167
    %v267 = vunpack.c.l.b16 %v168
    %v268 = vunpack.c.h.b16 %v168
    %v269 = vunpack.c.l.b16 %v169
    %v270 = vunpack.c.h.b16 %v169
    %v271 = vunpack.c.l.b16 %v170
    %v272 = vunpack.c.h.b16 %v170
    %v273 = vunpack.c.l.b16 %v171
    %v274 = vunpack.c.h.b16 %v171
    %v275 = vunpack.c.l.b16 %v172
    %v276 = vunpack.c.h.b16 %v172
    %v277 = vunpack.c.l.b16 %v173
    %v278 = vunpack.c.h.b16 %v173
    %v279 = vunpack.c.l.b16 %v174
    %v280 = vunpack.c.h.b16 %v174
    %v281 = vunpack.c.l.b16 %v175
    %v282 = vunpack.c.h.b16 %v175
    %v283 = vunpack.c.l.b16 %v176
    %v284 = vunpack.c.h.b16 %v176
    %v285 = vunpack.c.l.b16 %v177
    %v286 = vunpack.c.h.b16 %v177
    %v287 = vunpack.c.l.b16 %v178
    %v288 = vunpack.c.h.b16 %v178
    %v289 = vunpack.c.l.b16 %v179
    %v290 = vunpack.c.h.b16 %v179
    %v291 = vunpack.c.l.b16 %v180
    %v292 = vunpack.c.h.b16 %v180
    %v293 = vunpack.c.l.b16 %v181
    %v294 = vunpack.c.h.b16 %v181
    %v295 = vunpack.c.l.b16 %v182
    %v296 = vunpack.c.h.b16 %v182
    %v297 = vunpack.c.l.b16 %v183
    %v298 = vunpack.c.h.b16 %v183
    %v299 = vunpack.c.l.b16 %v184
    %v300 = vunpack.c.h.b16 %v184
    %v301 = vunpack.c.l.b16 %v185
    %v302 = vunpack.c.h.b16 %v185
    %v303 = vunpack.c.l.b16 %v186
    %v304 = vunpack.c.h.b16 %v186
    %v305 = vunpack.c.l.b16 %v187
    %v306 = vunpack.c.h.b16 %v187
    %v307 = vunpack.c.l.b16 %v188
    %v308 = vunpack.c.h.b16 %v188
    %v309 = vpack.c.b16 %v249, %v245
    %v310 = vpack.c.b16 %v250, %v246
    %v311 = vpack.c.b16 %v251, %v247
    %v312 = vpack.c.b16 %v252, %v248
    %v313 = vpack.c.b16 %v257, %v253
    %v314 = vpack.c.b16 %v258, %v254
    %v315 = vpack.c.b16 %v259, %v255
    %v316 = vpack.c.b16 %v260, %v256
    %v317 = vpack.c.b16 %v265, %v261
    %v318 = vpack.c.b16 %v266, %v262
    %v319 = vpack.c.b16 %v267, %v263
    %v320 = vpack.c.b16 %v268, %v264
    %v321 = vpack.c.b16 %v273, %v269
    %v322 = vpack.c.b16 %v274, %v270
    %v323 = vpack.c.b16 %v275, %v271
    %v324 = vpack.c.b16 %v276, %v272
    %v325 = vpack.c.b16 %v281, %v277
    %v326 = vpack.c.b16 %v282, %v278
    %v327 = vpack.c.b16 %v283, %v279
    %v328 = vpack.c.b16 %v284, %v280
    %v329 = vpack.c.b16 %v289, %v285
    %v330 = vpack.c.b16 %v290, %v286
    %v331 = vpack.c.b16 %v291, %v287
    %v332 = vpack.c.b16 %v292, %v288
    %v333 = vpack.c.b16 %v297, %v293
    %v334 = vpack.c.b16 %v298, %v294
    %v335 = vpack.c.b16 %v299, %v295
    %v336 = vpack.c.b16 %v300, %v296
    %v337 = vpack.c.b16 %v305, %v301
    %v338 = vpack.c.b16 %v306, %v302
    %v339 = vpack.c.b16 %v307, %v303
    %v340 = vpack.c.b16 %v308, %v304
    %373 = vmatpush.bf16.msra.mxu0 %v337
    %374 = vmatpush.bf16.msra.mxu0 %v333
    %375 = vmatpush.bf16.msra.mxu0 %v329
    %376 = vmatpush.bf16.msra.mxu0 %v325
    %377 = vmatpush.bf16.msra.mxu0 %v321
    %378 = vmatpush.bf16.msra.mxu0 %v317
    %379 = vmatpush.bf16.msra.mxu0 %v313
    %380 = vmatpush.bf16.msra.mxu0 %v309
    %381 = vmatmul.bf16.gmra.mxu0 %v205
    %v382 = vpop.f32.mrf.mxu0
    %v383 = vadd.f32 0.0, %v382
    %v384 = vpop.f32.mrf.mxu0
    %v385 = vadd.f32 0.0, %v384
    %386 = vmatmul.bf16.gmra.mxu0 %v206
    %v387 = vpop.f32.mrf.mxu0
    %v388 = vadd.f32 0.0, %v387
    %v389 = vpop.f32.mrf.mxu0
    %v390 = vadd.f32 0.0, %v389
    %391 = vmatmul.bf16.gmra.mxu0 %v207
    %v392 = vpop.f32.mrf.mxu0
    %v393 = vadd.f32 0.0, %v392
    %v394 = vpop.f32.mrf.mxu0
    %v395 = vadd.f32 0.0, %v394
    %396 = vmatmul.bf16.gmra.mxu0 %v208
    %v397 = vpop.f32.mrf.mxu0
    %v398 = vadd.f32 0.0, %v397
    %v399 = vpop.f32.mrf.mxu0
    %v400 = vadd.f32 0.0, %v399
    %401 = vdwg.mxu0
    %402 = vmatpush.bf16.msra.mxu0 %v338
    %403 = vmatpush.bf16.msra.mxu0 %v334
    %404 = vmatpush.bf16.msra.mxu0 %v330
    %405 = vmatpush.bf16.msra.mxu0 %v326
    %406 = vmatpush.bf16.msra.mxu0 %v322
    %407 = vmatpush.bf16.msra.mxu0 %v318
    %408 = vmatpush.bf16.msra.mxu0 %v314
    %409 = vmatpush.bf16.msra.mxu0 %v310
    %410 = vmatmul.bf16.gmra.mxu0 %v205
    %v411 = vpop.f32.mrf.mxu0
    %v412 = vadd.f32 0.0, %v411
    %v413 = vpop.f32.mrf.mxu0
    %v414 = vadd.f32 0.0, %v413
    %415 = vmatmul.bf16.gmra.mxu0 %v206
    %v416 = vpop.f32.mrf.mxu0
    %v417 = vadd.f32 0.0, %v416
    %v418 = vpop.f32.mrf.mxu0
    %v419 = vadd.f32 0.0, %v418
    %420 = vmatmul.bf16.gmra.mxu0 %v207
    %v421 = vpop.f32.mrf.mxu0
    %v422 = vadd.f32 0.0, %v421
    %v423 = vpop.f32.mrf.mxu0
    %v424 = vadd.f32 0.0, %v423
    %425 = vmatmul.bf16.gmra.mxu0 %v208
    %v426 = vpop.f32.mrf.mxu0
    %v427 = vadd.f32 0.0, %v426
    %v428 = vpop.f32.mrf.mxu0
    %v429 = vadd.f32 0.0, %v428
    %430 = vdwg.mxu0
    %431 = vmatpush.bf16.msra.mxu0 %v339
    %432 = vmatpush.bf16.msra.mxu0 %v335
    %433 = vmatpush.bf16.msra.mxu0 %v331
    %434 = vmatpush.bf16.msra.mxu0 %v327
    %435 = vmatpush.bf16.msra.mxu0 %v323
    %436 = vmatpush.bf16.msra.mxu0 %v319
    %437 = vmatpush.bf16.msra.mxu0 %v315
    %438 = vmatpush.bf16.msra.mxu0 %v311
    %439 = vmatmul.bf16.gmra.mxu0 %v205
    %v440 = vpop.f32.mrf.mxu0
    %v441 = vadd.f32 0.0, %v440
    %v442 = vpop.f32.mrf.mxu0
    %v443 = vadd.f32 0.0, %v442
    %444 = vmatmul.bf16.gmra.mxu0 %v206
    %v445 = vpop.f32.mrf.mxu0
    %v446 = vadd.f32 0.0, %v445
    %v447 = vpop.f32.mrf.mxu0
    %v448 = vadd.f32 0.0, %v447
    %449 = vmatmul.bf16.gmra.mxu0 %v207
    %v450 = vpop.f32.mrf.mxu0
    %v451 = vadd.f32 0.0, %v450
    %v452 = vpop.f32.mrf.mxu0
    %v453 = vadd.f32 0.0, %v452
    %454 = vmatmul.bf16.gmra.mxu0 %v208
    %v455 = vpop.f32.mrf.mxu0
    %v456 = vadd.f32 0.0, %v455
    %v457 = vpop.f32.mrf.mxu0
    %v458 = vadd.f32 0.0, %v457
    %459 = vdwg.mxu0
    %460 = vmatpush.bf16.msra.mxu0 %v340
    %461 = vmatpush.bf16.msra.mxu0 %v336
    %462 = vmatpush.bf16.msra.mxu0 %v332
    %463 = vmatpush.bf16.msra.mxu0 %v328
    %464 = vmatpush.bf16.msra.mxu0 %v324
    %465 = vmatpush.bf16.msra.mxu0 %v320
    %466 = vmatpush.bf16.msra.mxu0 %v316
    %467 = vmatpush.bf16.msra.mxu0 %v312
    %468 = vmatmul.bf16.gmra.mxu0 %v205
    %v469 = vpop.f32.mrf.mxu0
    %v470 = vadd.f32 0.0, %v469
    %v471 = vpop.f32.mrf.mxu0
    %v472 = vadd.f32 0.0, %v471
    %473 = vmatmul.bf16.gmra.mxu0 %v206
    %v474 = vpop.f32.mrf.mxu0
    %v475 = vadd.f32 0.0, %v474
    %v476 = vpop.f32.mrf.mxu0
    %v477 = vadd.f32 0.0, %v476
    %478 = vmatmul.bf16.gmra.mxu0 %v207
    %v479 = vpop.f32.mrf.mxu0
    %v480 = vadd.f32 0.0, %v479
    %v481 = vpop.f32.mrf.mxu0
    %v482 = vadd.f32 0.0, %v481
    %483 = vmatmul.bf16.gmra.mxu0 %v208
    %v484 = vpop.f32.mrf.mxu0
    %v485 = vadd.f32 0.0, %v484
    %v486 = vpop.f32.mrf.mxu0
    %v487 = vadd.f32 0.0, %v486
    %488 = vdwg.mxu0
    %v489 = vld [vmem:[#allocation10] sm:$0xf]
    %v491 = vperm.slane %v489, 0
    %v492 = vperm.slane %v489, 1
    %v493 = vperm.slane %v489, 2
    %v494 = vperm.slane %v489, 3
    %v499 = vadd.f32 %v383, %v491
    %v500 = vadd.f32 %v412, %v492
    %v501 = vadd.f32 %v441, %v493
    %v502 = vadd.f32 %v470, %v494
    %v503 = vadd.f32 %v385, %v491
    %v504 = vadd.f32 %v414, %v492
    %v505 = vadd.f32 %v443, %v493
    %v506 = vadd.f32 %v472, %v494
    %v507 = vadd.f32 %v388, %v491
    %v508 = vadd.f32 %v417, %v492
    %v509 = vadd.f32 %v446, %v493
    %v510 = vadd.f32 %v475, %v494
    %v511 = vadd.f32 %v390, %v491
    %v512 = vadd.f32 %v419, %v492
    %v513 = vadd.f32 %v448, %v493
    %v514 = vadd.f32 %v477, %v494
    %v515 = vadd.f32 %v393, %v491
    %v516 = vadd.f32 %v422, %v492
    %v517 = vadd.f32 %v451, %v493
    %v518 = vadd.f32 %v480, %v494
    %v519 = vadd.f32 %v395, %v491
    %v520 = vadd.f32 %v424, %v492
    %v521 = vadd.f32 %v453, %v493
    %v522 = vadd.f32 %v482, %v494
    %v523 = vadd.f32 %v398, %v491
    %v524 = vadd.f32 %v427, %v492
    %v525 = vadd.f32 %v456, %v493
    %v526 = vadd.f32 %v485, %v494
    %v527 = vadd.f32 %v400, %v491
    %v528 = vadd.f32 %v429, %v492
    %v529 = vadd.f32 %v458, %v493
    %v530 = vadd.f32 %v487, %v494
    %531 = vst [vmem:[#allocation2] sm:$0xff] %v499
    %532 = vst [vmem:[#allocation2 + $0x8] sm:$0xff] %v500
    %533 = vst [vmem:[#allocation2 + $0x10] sm:$0xff] %v501
    %534 = vst [vmem:[#allocation2 + $0x18] sm:$0xff] %v502
    %535 = vst [vmem:[#allocation2 + $0x20] sm:$0xff] %v503
    %536 = vst [vmem:[#allocation2 + $0x28] sm:$0xff] %v504
    %537 = vst [vmem:[#allocation2 + $0x30] sm:$0xff] %v505
    %538 = vst [vmem:[#allocation2 + $0x38] sm:$0xff] %v506
    %539 = vst [vmem:[#allocation2 + $0x40] sm:$0xff] %v507
    %540 = vst [vmem:[#allocation2 + $0x48] sm:$0xff] %v508
    %541 = vst [vmem:[#allocation2 + $0x50] sm:$0xff] %v509
    %542 = vst [vmem:[#allocation2 + $0x58] sm:$0xff] %v510
    %543 = vst [vmem:[#allocation2 + $0x60] sm:$0xff] %v511
    %544 = vst [vmem:[#allocation2 + $0x68] sm:$0xff] %v512
    %545 = vst [vmem:[#allocation2 + $0x70] sm:$0xff] %v513
    %546 = vst [vmem:[#allocation2 + $0x78] sm:$0xff] %v514
    %547 = vst [vmem:[#allocation2 + $0x80] sm:$0xff] %v515
    %548 = vst [vmem:[#allocation2 + $0x88] sm:$0xff] %v516
    %549 = vst [vmem:[#allocation2 + $0x90] sm:$0xff] %v517
    %550 = vst [vmem:[#allocation2 + $0x98] sm:$0xff] %v518
    %551 = vst [vmem:[#allocation2 + $0xa0] sm:$0xff] %v519
    %552 = vst [vmem:[#allocation2 + $0xa8] sm:$0xff] %v520
    %553 = vst [vmem:[#allocation2 + $0xb0] sm:$0xff] %v521
    %554 = vst [vmem:[#allocation2 + $0xb8] sm:$0xff] %v522
    %555 = vst [vmem:[#allocation2 + $0xc0] sm:$0xff] %v523
    %556 = vst [vmem:[#allocation2 + $0xc8] sm:$0xff] %v524
    %557 = vst [vmem:[#allocation2 + $0xd0] sm:$0xff] %v525
    %558 = vst [vmem:[#allocation2 + $0xd8] sm:$0xff] %v526
    %559 = vst [vmem:[#allocation2 + $0xe0] sm:$0xff] %v527
    %560 = vst [vmem:[#allocation2 + $0xe8] sm:$0xff] %v528
    %561 = vst [vmem:[#allocation2 + $0xf0] sm:$0xff] %v529
    %562 = vst [vmem:[#allocation2 + $0xf8] sm:$0xff] %v530
    %v563 = vld [vmem:[#allocation9] sm:$0xff]
    %v564 = vld [vmem:[#allocation9 + $0x8] sm:$0xff]
    %v565 = vld [vmem:[#allocation9 + $0x10] sm:$0xff]
    %v566 = vld [vmem:[#allocation9 + $0x18] sm:$0xff]
    %v567 = vld [vmem:[#allocation9 + $0x20] sm:$0xff]
    %v568 = vld [vmem:[#allocation9 + $0x28] sm:$0xff]
    %v569 = vld [vmem:[#allocation9 + $0x30] sm:$0xff]
    %v570 = vld [vmem:[#allocation9 + $0x38] sm:$0xff]
    %v571 = vld [vmem:[#allocation9 + $0x40] sm:$0xff]
    %v572 = vld [vmem:[#allocation9 + $0x48] sm:$0xff]
    %v573 = vld [vmem:[#allocation9 + $0x50] sm:$0xff]
    %v574 = vld [vmem:[#allocation9 + $0x58] sm:$0xff]
    %v575 = vld [vmem:[#allocation9 + $0x60] sm:$0xff]
    %v576 = vld [vmem:[#allocation9 + $0x68] sm:$0xff]
    %v577 = vld [vmem:[#allocation9 + $0x70] sm:$0xff]
    %v578 = vld [vmem:[#allocation9 + $0x78] sm:$0xff]
    %v579 = vld [vmem:[#allocation9 + $0x80] sm:$0xff]
    %v580 = vld [vmem:[#allocation9 + $0x88] sm:$0xff]
    %v581 = vld [vmem:[#allocation9 + $0x90] sm:$0xff]
    %v582 = vld [vmem:[#allocation9 + $0x98] sm:$0xff]
    %v583 = vld [vmem:[#allocation9 + $0xa0] sm:$0xff]
    %v584 = vld [vmem:[#allocation9 + $0xa8] sm:$0xff]
    %v585 = vld [vmem:[#allocation9 + $0xb0] sm:$0xff]
    %v586 = vld [vmem:[#allocation9 + $0xb8] sm:$0xff]
    %v587 = vld [vmem:[#allocation9 + $0xc0] sm:$0xff]
    %v588 = vld [vmem:[#allocation9 + $0xc8] sm:$0xff]
    %v589 = vld [vmem:[#allocation9 + $0xd0] sm:$0xff]
    %v590 = vld [vmem:[#allocation9 + $0xd8] sm:$0xff]
    %v591 = vld [vmem:[#allocation9 + $0xe0] sm:$0xff]
    %v592 = vld [vmem:[#allocation9 + $0xe8] sm:$0xff]
    %v593 = vld [vmem:[#allocation9 + $0xf0] sm:$0xff]
    %v594 = vld [vmem:[#allocation9 + $0xf8] sm:$0xff]
    %v595 = vld [vmem:[#allocation2] sm:$0xff]
    %v596 = vld [vmem:[#allocation2 + $0x8] sm:$0xff]
    %v597 = vld [vmem:[#allocation2 + $0x10] sm:$0xff]
    %v598 = vld [vmem:[#allocation2 + $0x18] sm:$0xff]
    %v631 = vunpack.c.l.b16 %v563
    %v632 = vunpack.c.h.b16 %v563
    %v633 = vunpack.c.l.b16 %v564
    %v634 = vunpack.c.h.b16 %v564
    %v635 = vunpack.c.l.b16 %v565
    %v636 = vunpack.c.h.b16 %v565
    %v637 = vunpack.c.l.b16 %v566
    %v638 = vunpack.c.h.b16 %v566
    %v639 = vunpack.c.l.b16 %v567
    %v640 = vunpack.c.h.b16 %v567
    %v641 = vunpack.c.l.b16 %v568
    %v642 = vunpack.c.h.b16 %v568
    %v643 = vunpack.c.l.b16 %v569
    %v644 = vunpack.c.h.b16 %v569
    %v645 = vunpack.c.l.b16 %v570
    %v646 = vunpack.c.h.b16 %v570
    %v647 = vunpack.c.l.b16 %v571
    %v648 = vunpack.c.h.b16 %v571
    %v649 = vunpack.c.l.b16 %v572
    %v650 = vunpack.c.h.b16 %v572
    %v651 = vunpack.c.l.b16 %v573
    %v652 = vunpack.c.h.b16 %v573
    %v653 = vunpack.c.l.b16 %v574
    %v654 = vunpack.c.h.b16 %v574
    %v655 = vunpack.c.l.b16 %v575
    %v656 = vunpack.c.h.b16 %v575
    %v657 = vunpack.c.l.b16 %v576
    %v658 = vunpack.c.h.b16 %v576
    %v659 = vunpack.c.l.b16 %v577
    %v660 = vunpack.c.h.b16 %v577
    %v661 = vunpack.c.l.b16 %v578
    %v662 = vunpack.c.h.b16 %v578
    %v663 = vunpack.c.l.b16 %v579
    %v664 = vunpack.c.h.b16 %v579
    %v665 = vunpack.c.l.b16 %v580
    %v666 = vunpack.c.h.b16 %v580
    %v667 = vunpack.c.l.b16 %v581
    %v668 = vunpack.c.h.b16 %v581
    %v669 = vunpack.c.l.b16 %v582
    %v670 = vunpack.c.h.b16 %v582
    %v671 = vunpack.c.l.b16 %v583
    %v672 = vunpack.c.h.b16 %v583
    %v673 = vunpack.c.l.b16 %v584
    %v674 = vunpack.c.h.b16 %v584
    %v675 = vunpack.c.l.b16 %v585
    %v676 = vunpack.c.h.b16 %v585
    %v677 = vunpack.c.l.b16 %v586
    %v678 = vunpack.c.h.b16 %v586
    %v679 = vunpack.c.l.b16 %v587
    %v680 = vunpack.c.h.b16 %v587
    %v681 = vunpack.c.l.b16 %v588
    %v682 = vunpack.c.h.b16 %v588
    %v683 = vunpack.c.l.b16 %v589
    %v684 = vunpack.c.h.b16 %v589
    %v685 = vunpack.c.l.b16 %v590
    %v686 = vunpack.c.h.b16 %v590
    %v687 = vunpack.c.l.b16 %v591
    %v688 = vunpack.c.h.b16 %v591
    %v689 = vunpack.c.l.b16 %v592
    %v690 = vunpack.c.h.b16 %v592
    %v691 = vunpack.c.l.b16 %v593
    %v692 = vunpack.c.h.b16 %v593
    %v693 = vunpack.c.l.b16 %v594
    %v694 = vunpack.c.h.b16 %v594
    %v695 = vpack.c.b16 %v635, %v631
    %v696 = vpack.c.b16 %v636, %v632
    %v697 = vpack.c.b16 %v637, %v633
    %v698 = vpack.c.b16 %v638, %v634
    %v699 = vpack.c.b16 %v643, %v639
    %v700 = vpack.c.b16 %v644, %v640
    %v701 = vpack.c.b16 %v645, %v641
    %v702 = vpack.c.b16 %v646, %v642
    %v703 = vpack.c.b16 %v651, %v647
    %v704 = vpack.c.b16 %v652, %v648
    %v705 = vpack.c.b16 %v653, %v649
    %v706 = vpack.c.b16 %v654, %v650
    %v707 = vpack.c.b16 %v659, %v655
    %v708 = vpack.c.b16 %v660, %v656
    %v709 = vpack.c.b16 %v661, %v657
    %v710 = vpack.c.b16 %v662, %v658
    %v711 = vpack.c.b16 %v667, %v663
    %v712 = vpack.c.b16 %v668, %v664
    %v713 = vpack.c.b16 %v669, %v665
    %v714 = vpack.c.b16 %v670, %v666
    %v715 = vpack.c.b16 %v675, %v671
    %v716 = vpack.c.b16 %v676, %v672
    %v717 = vpack.c.b16 %v677, %v673
    %v718 = vpack.c.b16 %v678, %v674
    %v719 = vpack.c.b16 %v683, %v679
    %v720 = vpack.c.b16 %v684, %v680
    %v721 = vpack.c.b16 %v685, %v681
    %v722 = vpack.c.b16 %v686, %v682
    %v723 = vpack.c.b16 %v691, %v687
    %v724 = vpack.c.b16 %v692, %v688
    %v725 = vpack.c.b16 %v693, %v689
    %v726 = vpack.c.b16 %v694, %v690
    %759 = vmatpush.bf16.msra.mxu0 %v723
    %760 = vmatpush.bf16.msra.mxu0 %v719
    %761 = vmatpush.bf16.msra.mxu0 %v715
    %762 = vmatpush.bf16.msra.mxu0 %v711
    %763 = vmatpush.bf16.msra.mxu0 %v707
    %764 = vmatpush.bf16.msra.mxu0 %v703
    %765 = vmatpush.bf16.msra.mxu0 %v699
    %766 = vmatpush.bf16.msra.mxu0 %v695
    %767 = vmatmul.bf16.gmra.mxu0 0
    %v768 = vpop.f32.mrf.mxu0
    %v769 = vadd.f32 0.0, %v768
    %v770 = vpop.f32.mrf.mxu0
    %771 = vdwg.mxu0
    %772 = vmatpush.bf16.msra.mxu0 %v724
    %773 = vmatpush.bf16.msra.mxu0 %v720
    %774 = vmatpush.bf16.msra.mxu0 %v716
    %775 = vmatpush.bf16.msra.mxu0 %v712
    %776 = vmatpush.bf16.msra.mxu0 %v708
    %777 = vmatpush.bf16.msra.mxu0 %v704
    %778 = vmatpush.bf16.msra.mxu0 %v700
    %779 = vmatpush.bf16.msra.mxu0 %v696
    %780 = vmatmul.bf16.gmra.mxu0 0
    %v781 = vpop.f32.mrf.mxu0
    %v782 = vadd.f32 0.0, %v781
    %v783 = vpop.f32.mrf.mxu0
    %784 = vdwg.mxu0
    %785 = vmatpush.bf16.msra.mxu0 %v725
    %786 = vmatpush.bf16.msra.mxu0 %v721
    %787 = vmatpush.bf16.msra.mxu0 %v717
    %788 = vmatpush.bf16.msra.mxu0 %v713
    %789 = vmatpush.bf16.msra.mxu0 %v709
    %790 = vmatpush.bf16.msra.mxu0 %v705
    %791 = vmatpush.bf16.msra.mxu0 %v701
    %792 = vmatpush.bf16.msra.mxu0 %v697
    %793 = vmatmul.bf16.gmra.mxu0 0
    %v794 = vpop.f32.mrf.mxu0
    %v795 = vadd.f32 0.0, %v794
    %v796 = vpop.f32.mrf.mxu0
    %797 = vdwg.mxu0
    %798 = vmatpush.bf16.msra.mxu0 %v726
    %799 = vmatpush.bf16.msra.mxu0 %v722
    %800 = vmatpush.bf16.msra.mxu0 %v718
    %801 = vmatpush.bf16.msra.mxu0 %v714
    %802 = vmatpush.bf16.msra.mxu0 %v710
    %803 = vmatpush.bf16.msra.mxu0 %v706
    %804 = vmatpush.bf16.msra.mxu0 %v702
    %805 = vmatpush.bf16.msra.mxu0 %v698
    %806 = vmatmul.bf16.gmra.mxu0 0
    %v807 = vpop.f32.mrf.mxu0
    %v808 = vadd.f32 0.0, %v807
    %v809 = vpop.f32.mrf.mxu0
    %810 = vdwg.mxu0
    %v811 = vadd.f32 %v595, %v769
    %v812 = vadd.f32 %v596, %v782
    %v813 = vadd.f32 %v597, %v795
    %v814 = vadd.f32 %v598, %v808
    %v815 = vxor.u32 %v811, 2147483648
    %v816 = vxor.u32 %v812, 2147483648
    %v817 = vxor.u32 %v814, 2147483648
    %v818 = vmul.f32 %v815, 1.442695
    %v819 = vpow.pop %v818
    %v820 = vmul.f32 %v816, 1.442695
    %v821 = vpow.pop %v820
    %v822 = vmul.f32 %v817, 1.442695
    %v823 = vpow.pop %v822
    %v824 = vadd.f32 %v819, 1.0
    %v825 = vadd.f32 %v821, 1.0
    %v826 = vadd.f32 %v823, 1.0
    %v827 = vrcp.pop %v824
    %v828 = vmul.f32 %v824, %v827
    %v829 = vsub.f32 1.0, %v828
    %v830 = vmul.f32 %v827, %v829
    %v831 = vadd.f32 %v827, %v830
    %vm832 = vweird.f32 %v824
    %vm833 = vweird.f32 %v827
    %vm834 = vmor %vm832, %vm833
    %v835 = vsel %vm834, %v827, %v831
    %v836 = vand.u32 2147483647, %v824
    %vm837 = vcmp.eq.f32.partialorder %v836, 8.507059e+37
    %v838 = vand.u32 %v824, 2147483648
    %v839 = vor.u32 1.1754944e-38, %v838
    %v840 = vsel %vm837, %v839, %v835
    %v841 = vmul.f32 1.0, %v840
    %v842 = vrcp.pop %v825
    %v843 = vmul.f32 %v825, %v842
    %v844 = vsub.f32 1.0, %v843
    %v845 = vmul.f32 %v842, %v844
    %v846 = vadd.f32 %v842, %v845
    %vm847 = vweird.f32 %v825
    %vm848 = vweird.f32 %v842
    %vm849 = vmor %vm847, %vm848
    %v850 = vsel %vm849, %v842, %v846
    %v851 = vand.u32 2147483647, %v825
    %vm852 = vcmp.eq.f32.partialorder %v851, 8.507059e+37
    %v853 = vand.u32 %v825, 2147483648
    %v854 = vor.u32 1.1754944e-38, %v853
    %v855 = vsel %vm852, %v854, %v850
    %v856 = vmul.f32 1.0, %v855
    %v857 = vrcp.pop %v826
    %v858 = vmul.f32 %v826, %v857
    %v859 = vsub.f32 1.0, %v858
    %v860 = vmul.f32 %v857, %v859
    %v861 = vadd.f32 %v857, %v860
    %vm862 = vweird.f32 %v826
    %vm863 = vweird.f32 %v857
    %vm864 = vmor %vm862, %vm863
    %v865 = vsel %vm864, %v857, %v861
    %v866 = vand.u32 2147483647, %v826
    %vm867 = vcmp.eq.f32.partialorder %v866, 8.507059e+37
    %v868 = vand.u32 %v826, 2147483648
    %v869 = vor.u32 1.1754944e-38, %v868
    %v870 = vsel %vm867, %v869, %v865
    %v871 = vmul.f32 1.0, %v870
    %v872 = vtanh.pop %v813
    %v873 = vmul.f32 %v856, 0.0
    %v874 = vmul.f32 %v841, %v872
    %v875 = vadd.f32 %v873, %v874
    %v876 = vtanh.pop %v875
    %v877 = vmul.f32 %v871, %v876
    %878 = vst [vmem:[#allocation3] sm:$0xff] %v877
    %s879 = scalar_lea.vmem [#allocation2], 32
    %v880 = vld [vmem:[%s879] sm:$0xff]
    %v881 = vld [vmem:[%s879 + $0x8] sm:$0xff]
    %v882 = vld [vmem:[%s879 + $0x10] sm:$0xff]
    %v883 = vld [vmem:[%s879 + $0x18] sm:$0xff]
    %v884 = vpack.c.bf16 %v877, %v877
    %885 = vmatpush.bf16.msra.mxu0 %v723
    %886 = vmatpush.bf16.msra.mxu0 %v719
    %887 = vmatpush.bf16.msra.mxu0 %v715
    %888 = vmatpush.bf16.msra.mxu0 %v711
    %889 = vmatpush.bf16.msra.mxu0 %v707
    %890 = vmatpush.bf16.msra.mxu0 %v703
    %891 = vmatpush.bf16.msra.mxu0 %v699
    %892 = vmatpush.bf16.msra.mxu0 %v695
    %893 = vmatmul.bf16.gmra.mxu0 %v884
    %v894 = vpop.f32.mrf.mxu0
    %v895 = vadd.f32 0.0, %v894
    %v896 = vpop.f32.mrf.mxu0
    %897 = vdwg.mxu0
    %898 = vmatpush.bf16.msra.mxu0 %v724
    %899 = vmatpush.bf16.msra.mxu0 %v720
    %900 = vmatpush.bf16.msra.mxu0 %v716
    %901 = vmatpush.bf16.msra.mxu0 %v712
    %902 = vmatpush.bf16.msra.mxu0 %v708
    %903 = vmatpush.bf16.msra.mxu0 %v704
    %904 = vmatpush.bf16.msra.mxu0 %v700
    %905 = vmatpush.bf16.msra.mxu0 %v696
    %906 = vmatmul.bf16.gmra.mxu0 %v884
    %v907 = vpop.f32.mrf.mxu0
    %v908 = vadd.f32 0.0, %v907
    %v909 = vpop.f32.mrf.mxu0
    %910 = vdwg.mxu0
    %911 = vmatpush.bf16.msra.mxu0 %v725
    %912 = vmatpush.bf16.msra.mxu0 %v721
    %913 = vmatpush.bf16.msra.mxu0 %v717
    %914 = vmatpush.bf16.msra.mxu0 %v713
    %915 = vmatpush.bf16.msra.mxu0 %v709
    %916 = vmatpush.bf16.msra.mxu0 %v705
    %917 = vmatpush.bf16.msra.mxu0 %v701
    %918 = vmatpush.bf16.msra.mxu0 %v697
    %919 = vmatmul.bf16.gmra.mxu0 %v884
    %v920 = vpop.f32.mrf.mxu0
    %v921 = vadd.f32 0.0, %v920
    %v922 = vpop.f32.mrf.mxu0
    %923 = vdwg.mxu0
    %924 = vmatpush.bf16.msra.mxu0 %v726
    %925 = vmatpush.bf16.msra.mxu0 %v722
    %926 = vmatpush.bf16.msra.mxu0 %v718
    %927 = vmatpush.bf16.msra.mxu0 %v714
    %928 = vmatpush.bf16.msra.mxu0 %v710
    %929 = vmatpush.bf16.msra.mxu0 %v706
    %930 = vmatpush.bf16.msra.mxu0 %v702
    %931 = vmatpush.bf16.msra.mxu0 %v698
    %932 = vmatmul.bf16.gmra.mxu0 %v884
    %v933 = vpop.f32.mrf.mxu0
    %v934 = vadd.f32 0.0, %v933
    %v935 = vpop.f32.mrf.mxu0
    %936 = vdwg.mxu0
    %v937 = vadd.f32 %v880, %v895
    %v938 = vadd.f32 %v881, %v908
    %v939 = vadd.f32 %v882, %v921
    %v940 = vadd.f32 %v883, %v934
    %v941 = vxor.u32 %v937, 2147483648
    %v942 = vxor.u32 %v938, 2147483648
    %v943 = vxor.u32 %v940, 2147483648
    %v944 = vmul.f32 %v941, 1.442695
    %v945 = vpow.pop %v944
    %v946 = vmul.f32 %v942, 1.442695
    %v947 = vpow.pop %v946
    %v948 = vmul.f32 %v943, 1.442695
    %v949 = vpow.pop %v948
    %v950 = vadd.f32 %v945, 1.0
    %v951 = vadd.f32 %v947, 1.0
    %v952 = vadd.f32 %v949, 1.0
    %v953 = vrcp.pop %v950
    %v954 = vmul.f32 %v950, %v953
    %v955 = vsub.f32 1.0, %v954
    %v956 = vmul.f32 %v953, %v955
    %v957 = vadd.f32 %v953, %v956
    %vm958 = vweird.f32 %v950
    %vm959 = vweird.f32 %v953
    %vm960 = vmor %vm958, %vm959
    %v961 = vsel %vm960, %v953, %v957
    %v962 = vand.u32 2147483647, %v950
    %vm963 = vcmp.eq.f32.partialorder %v962, 8.507059e+37
    %v964 = vand.u32 %v950, 2147483648
    %v965 = vor.u32 1.1754944e-38, %v964
    %v966 = vsel %vm963, %v965, %v961
    %v967 = vmul.f32 1.0, %v966
    %v968 = vrcp.pop %v951
    %v969 = vmul.f32 %v951, %v968
    %v970 = vsub.f32 1.0, %v969
    %v971 = vmul.f32 %v968, %v970
    %v972 = vadd.f32 %v968, %v971
    %vm973 = vweird.f32 %v951
    %vm974 = vweird.f32 %v968
    %vm975 = vmor %vm973, %vm974
    %v976 = vsel %vm975, %v968, %v972
    %v977 = vand.u32 2147483647, %v951
    %vm978 = vcmp.eq.f32.partialorder %v977, 8.507059e+37
    %v979 = vand.u32 %v951, 2147483648
    %v980 = vor.u32 1.1754944e-38, %v979
    %v981 = vsel %vm978, %v980, %v976
    %v982 = vmul.f32 1.0, %v981
    %v983 = vrcp.pop %v952
    %v984 = vmul.f32 %v952, %v983
    %v985 = vsub.f32 1.0, %v984
    %v986 = vmul.f32 %v983, %v985
    %v987 = vadd.f32 %v983, %v986
    %vm988 = vweird.f32 %v952
    %vm989 = vweird.f32 %v983
    %vm990 = vmor %vm988, %vm989
    %v991 = vsel %vm990, %v983, %v987
    %v992 = vand.u32 2147483647, %v952
    %vm993 = vcmp.eq.f32.partialorder %v992, 8.507059e+37
    %v994 = vand.u32 %v952, 2147483648
    %v995 = vor.u32 1.1754944e-38, %v994
    %v996 = vsel %vm993, %v995, %v991
    %v997 = vmul.f32 1.0, %v996
    %v998 = vtanh.pop %v939
    %v999 = vmul.f32 %v982, %v875
    %v1000 = vmul.f32 %v967, %v998
    %v1001 = vadd.f32 %v999, %v1000
    %v1002 = vtanh.pop %v1001
    %v1003 = vmul.f32 %v997, %v1002
    %s1004 = scalar_lea.vmem [#allocation3], 8
    %1005 = vst [vmem:[%s1004] sm:$0xff] %v1003
    %s1006 = scalar_lea.vmem [#allocation2], 64
    %v1007 = vld [vmem:[%s1006] sm:$0xff]
    %v1008 = vld [vmem:[%s1006 + $0x8] sm:$0xff]
    %v1009 = vld [vmem:[%s1006 + $0x10] sm:$0xff]
    %v1010 = vld [vmem:[%s1006 + $0x18] sm:$0xff]
    %v1011 = vpack.c.bf16 %v1003, %v1003
    %1012 = vmatpush.bf16.msra.mxu0 %v723
    %1013 = vmatpush.bf16.msra.mxu0 %v719
    %1014 = vmatpush.bf16.msra.mxu0 %v715
    %1015 = vmatpush.bf16.msra.mxu0 %v711
    %1016 = vmatpush.bf16.msra.mxu0 %v707
    %1017 = vmatpush.bf16.msra.mxu0 %v703
    %1018 = vmatpush.bf16.msra.mxu0 %v699
    %1019 = vmatpush.bf16.msra.mxu0 %v695
    %1020 = vmatmul.bf16.gmra.mxu0 %v1011
    %v1021 = vpop.f32.mrf.mxu0
    %v1022 = vadd.f32 0.0, %v1021
    %v1023 = vpop.f32.mrf.mxu0
    %1024 = vdwg.mxu0
    %1025 = vmatpush.bf16.msra.mxu0 %v724
    %1026 = vmatpush.bf16.msra.mxu0 %v720
    %1027 = vmatpush.bf16.msra.mxu0 %v716
    %1028 = vmatpush.bf16.msra.mxu0 %v712
    %1029 = vmatpush.bf16.msra.mxu0 %v708
    %1030 = vmatpush.bf16.msra.mxu0 %v704
    %1031 = vmatpush.bf16.msra.mxu0 %v700
    %1032 = vmatpush.bf16.msra.mxu0 %v696
    %1033 = vmatmul.bf16.gmra.mxu0 %v1011
    %v1034 = vpop.f32.mrf.mxu0
    %v1035 = vadd.f32 0.0, %v1034
    %v1036 = vpop.f32.mrf.mxu0
    %1037 = vdwg.mxu0
    %1038 = vmatpush.bf16.msra.mxu0 %v725
    %1039 = vmatpush.bf16.msra.mxu0 %v721
    %1040 = vmatpush.bf16.msra.mxu0 %v717
    %1041 = vmatpush.bf16.msra.mxu0 %v713
    %1042 = vmatpush.bf16.msra.mxu0 %v709
    %1043 = vmatpush.bf16.msra.mxu0 %v705
    %1044 = vmatpush.bf16.msra.mxu0 %v701
    %1045 = vmatpush.bf16.msra.mxu0 %v697
    %1046 = vmatmul.bf16.gmra.mxu0 %v1011
    %v1047 = vpop.f32.mrf.mxu0
    %v1048 = vadd.f32 0.0, %v1047
    %v1049 = vpop.f32.mrf.mxu0
    %1050 = vdwg.mxu0
    %1051 = vmatpush.bf16.msra.mxu0 %v726
    %1052 = vmatpush.bf16.msra.mxu0 %v722
    %1053 = vmatpush.bf16.msra.mxu0 %v718
    %1054 = vmatpush.bf16.msra.mxu0 %v714
    %1055 = vmatpush.bf16.msra.mxu0 %v710
    %1056 = vmatpush.bf16.msra.mxu0 %v706
    %1057 = vmatpush.bf16.msra.mxu0 %v702
    %1058 = vmatpush.bf16.msra.mxu0 %v698
    %1059 = vmatmul.bf16.gmra.mxu0 %v1011
    %v1060 = vpop.f32.mrf.mxu0
    %v1061 = vadd.f32 0.0, %v1060
    %v1062 = vpop.f32.mrf.mxu0
    %1063 = vdwg.mxu0
    %v1064 = vadd.f32 %v1007, %v1022
    %v1065 = vadd.f32 %v1008, %v1035
    %v1066 = vadd.f32 %v1009, %v1048
    %v1067 = vadd.f32 %v1010, %v1061
    %v1068 = vxor.u32 %v1064, 2147483648
    %v1069 = vxor.u32 %v1065, 2147483648
    %v1070 = vxor.u32 %v1067, 2147483648
    %v1071 = vmul.f32 %v1068, 1.442695
    %v1072 = vpow.pop %v1071
    %v1073 = vmul.f32 %v1069, 1.442695
    %v1074 = vpow.pop %v1073
    %v1075 = vmul.f32 %v1070, 1.442695
    %v1076 = vpow.pop %v1075
    %v1077 = vadd.f32 %v1072, 1.0
    %v1078 = vadd.f32 %v1074, 1.0
    %v1079 = vadd.f32 %v1076, 1.0
    %v1080 = vrcp.pop %v1077
    %v1081 = vmul.f32 %v1077, %v1080
    %v1082 = vsub.f32 1.0, %v1081
    %v1083 = vmul.f32 %v1080, %v1082
    %v1084 = vadd.f32 %v1080, %v1083
    %vm1085 = vweird.f32 %v1077
    %vm1086 = vweird.f32 %v1080
    %vm1087 = vmor %vm1085, %vm1086
    %v1088 = vsel %vm1087, %v1080, %v1084
    %v1089 = vand.u32 2147483647, %v1077
    %vm1090 = vcmp.eq.f32.partialorder %v1089, 8.507059e+37
    %v1091 = vand.u32 %v1077, 2147483648
    %v1092 = vor.u32 1.1754944e-38, %v1091
    %v1093 = vsel %vm1090, %v1092, %v1088
    %v1094 = vmul.f32 1.0, %v1093
    %v1095 = vrcp.pop %v1078
    %v1096 = vmul.f32 %v1078, %v1095
    %v1097 = vsub.f32 1.0, %v1096
    %v1098 = vmul.f32 %v1095, %v1097
    %v1099 = vadd.f32 %v1095, %v1098
    %vm1100 = vweird.f32 %v1078
    %vm1101 = vweird.f32 %v1095
    %vm1102 = vmor %vm1100, %vm1101
    %v1103 = vsel %vm1102, %v1095, %v1099
    %v1104 = vand.u32 2147483647, %v1078
    %vm1105 = vcmp.eq.f32.partialorder %v1104, 8.507059e+37
    %v1106 = vand.u32 %v1078, 2147483648
    %v1107 = vor.u32 1.1754944e-38, %v1106
    %v1108 = vsel %vm1105, %v1107, %v1103
    %v1109 = vmul.f32 1.0, %v1108
    %v1110 = vrcp.pop %v1079
    %v1111 = vmul.f32 %v1079, %v1110
    %v1112 = vsub.f32 1.0, %v1111
    %v1113 = vmul.f32 %v1110, %v1112
    %v1114 = vadd.f32 %v1110, %v1113
    %vm1115 = vweird.f32 %v1079
    %vm1116 = vweird.f32 %v1110
    %vm1117 = vmor %vm1115, %vm1116
    %v1118 = vsel %vm1117, %v1110, %v1114
    %v1119 = vand.u32 2147483647, %v1079
    %vm1120 = vcmp.eq.f32.partialorder %v1119, 8.507059e+37
    %v1121 = vand.u32 %v1079, 2147483648
    %v1122 = vor.u32 1.1754944e-38, %v1121
    %v1123 = vsel %vm1120, %v1122, %v1118
    %v1124 = vmul.f32 1.0, %v1123
    %v1125 = vtanh.pop %v1066
    %v1126 = vmul.f32 %v1109, %v1001
    %v1127 = vmul.f32 %v1094, %v1125
    %v1128 = vadd.f32 %v1126, %v1127
    %v1129 = vtanh.pop %v1128
    %v1130 = vmul.f32 %v1124, %v1129
    %s1131 = scalar_lea.vmem [#allocation3], 16
    %1132 = vst [vmem:[%s1131] sm:$0xff] %v1130
    %s1133 = scalar_lea.vmem [#allocation2], 96
    %v1134 = vld [vmem:[%s1133] sm:$0xff]
    %v1135 = vld [vmem:[%s1133 + $0x8] sm:$0xff]
    %v1136 = vld [vmem:[%s1133 + $0x10] sm:$0xff]
    %v1137 = vld [vmem:[%s1133 + $0x18] sm:$0xff]
    %v1138 = vpack.c.bf16 %v1130, %v1130
    %1139 = vmatpush.bf16.msra.mxu0 %v723
    %1140 = vmatpush.bf16.msra.mxu0 %v719
    %1141 = vmatpush.bf16.msra.mxu0 %v715
    %1142 = vmatpush.bf16.msra.mxu0 %v711
    %1143 = vmatpush.bf16.msra.mxu0 %v707
    %1144 = vmatpush.bf16.msra.mxu0 %v703
    %1145 = vmatpush.bf16.msra.mxu0 %v699
    %1146 = vmatpush.bf16.msra.mxu0 %v695
    %1147 = vmatmul.bf16.gmra.mxu0 %v1138
    %v1148 = vpop.f32.mrf.mxu0
    %v1149 = vadd.f32 0.0, %v1148
    %v1150 = vpop.f32.mrf.mxu0
    %1151 = vdwg.mxu0
    %1152 = vmatpush.bf16.msra.mxu0 %v724
    %1153 = vmatpush.bf16.msra.mxu0 %v720
    %1154 = vmatpush.bf16.msra.mxu0 %v716
    %1155 = vmatpush.bf16.msra.mxu0 %v712
    %1156 = vmatpush.bf16.msra.mxu0 %v708
    %1157 = vmatpush.bf16.msra.mxu0 %v704
    %1158 = vmatpush.bf16.msra.mxu0 %v700
    %1159 = vmatpush.bf16.msra.mxu0 %v696
    %1160 = vmatmul.bf16.gmra.mxu0 %v1138
    %v1161 = vpop.f32.mrf.mxu0
    %v1162 = vadd.f32 0.0, %v1161
    %v1163 = vpop.f32.mrf.mxu0
    %1164 = vdwg.mxu0
    %1165 = vmatpush.bf16.msra.mxu0 %v725
    %1166 = vmatpush.bf16.msra.mxu0 %v721
    %1167 = vmatpush.bf16.msra.mxu0 %v717
    %1168 = vmatpush.bf16.msra.mxu0 %v713
    %1169 = vmatpush.bf16.msra.mxu0 %v709
    %1170 = vmatpush.bf16.msra.mxu0 %v705
    %1171 = vmatpush.bf16.msra.mxu0 %v701
    %1172 = vmatpush.bf16.msra.mxu0 %v697
    %1173 = vmatmul.bf16.gmra.mxu0 %v1138
    %v1174 = vpop.f32.mrf.mxu0
    %v1175 = vadd.f32 0.0, %v1174
    %v1176 = vpop.f32.mrf.mxu0
    %1177 = vdwg.mxu0
    %1178 = vmatpush.bf16.msra.mxu0 %v726
    %1179 = vmatpush.bf16.msra.mxu0 %v722
    %1180 = vmatpush.bf16.msra.mxu0 %v718
    %1181 = vmatpush.bf16.msra.mxu0 %v714
    %1182 = vmatpush.bf16.msra.mxu0 %v710
    %1183 = vmatpush.bf16.msra.mxu0 %v706
    %1184 = vmatpush.bf16.msra.mxu0 %v702
    %1185 = vmatpush.bf16.msra.mxu0 %v698
    %1186 = vmatmul.bf16.gmra.mxu0 %v1138
    %v1187 = vpop.f32.mrf.mxu0
    %v1188 = vadd.f32 0.0, %v1187
    %v1189 = vpop.f32.mrf.mxu0
    %1190 = vdwg.mxu0
    %v1191 = vadd.f32 %v1134, %v1149
    %v1192 = vadd.f32 %v1135, %v1162
    %v1193 = vadd.f32 %v1136, %v1175
    %v1194 = vadd.f32 %v1137, %v1188
    %v1195 = vxor.u32 %v1191, 2147483648
    %v1196 = vxor.u32 %v1192, 2147483648
    %v1197 = vxor.u32 %v1194, 2147483648
    %v1198 = vmul.f32 %v1195, 1.442695
    %v1199 = vpow.pop %v1198
    %v1200 = vmul.f32 %v1196, 1.442695
    %v1201 = vpow.pop %v1200
    %v1202 = vmul.f32 %v1197, 1.442695
    %v1203 = vpow.pop %v1202
    %v1204 = vadd.f32 %v1199, 1.0
    %v1205 = vadd.f32 %v1201, 1.0
    %v1206 = vadd.f32 %v1203, 1.0
    %v1207 = vrcp.pop %v1204
    %v1208 = vmul.f32 %v1204, %v1207
    %v1209 = vsub.f32 1.0, %v1208
    %v1210 = vmul.f32 %v1207, %v1209
    %v1211 = vadd.f32 %v1207, %v1210
    %vm1212 = vweird.f32 %v1204
    %vm1213 = vweird.f32 %v1207
    %vm1214 = vmor %vm1212, %vm1213
    %v1215 = vsel %vm1214, %v1207, %v1211
    %v1216 = vand.u32 2147483647, %v1204
    %vm1217 = vcmp.eq.f32.partialorder %v1216, 8.507059e+37
    %v1218 = vand.u32 %v1204, 2147483648
    %v1219 = vor.u32 1.1754944e-38, %v1218
    %v1220 = vsel %vm1217, %v1219, %v1215
    %v1221 = vmul.f32 1.0, %v1220
    %v1222 = vrcp.pop %v1205
    %v1223 = vmul.f32 %v1205, %v1222
    %v1224 = vsub.f32 1.0, %v1223
    %v1225 = vmul.f32 %v1222, %v1224
    %v1226 = vadd.f32 %v1222, %v1225
    %vm1227 = vweird.f32 %v1205
    %vm1228 = vweird.f32 %v1222
    %vm1229 = vmor %vm1227, %vm1228
    %v1230 = vsel %vm1229, %v1222, %v1226
    %v1231 = vand.u32 2147483647, %v1205
    %vm1232 = vcmp.eq.f32.partialorder %v1231, 8.507059e+37
    %v1233 = vand.u32 %v1205, 2147483648
    %v1234 = vor.u32 1.1754944e-38, %v1233
    %v1235 = vsel %vm1232, %v1234, %v1230
    %v1236 = vmul.f32 1.0, %v1235
    %v1237 = vrcp.pop %v1206
    %v1238 = vmul.f32 %v1206, %v1237
    %v1239 = vsub.f32 1.0, %v1238
    %v1240 = vmul.f32 %v1237, %v1239
    %v1241 = vadd.f32 %v1237, %v1240
    %vm1242 = vweird.f32 %v1206
    %vm1243 = vweird.f32 %v1237
    %vm1244 = vmor %vm1242, %vm1243
    %v1245 = vsel %vm1244, %v1237, %v1241
    %v1246 = vand.u32 2147483647, %v1206
    %vm1247 = vcmp.eq.f32.partialorder %v1246, 8.507059e+37
    %v1248 = vand.u32 %v1206, 2147483648
    %v1249 = vor.u32 1.1754944e-38, %v1248
    %v1250 = vsel %vm1247, %v1249, %v1245
    %v1251 = vmul.f32 1.0, %v1250
    %v1252 = vtanh.pop %v1193
    %v1253 = vmul.f32 %v1236, %v1128
    %v1254 = vmul.f32 %v1221, %v1252
    %v1255 = vadd.f32 %v1253, %v1254
    %v1256 = vtanh.pop %v1255
    %v1257 = vmul.f32 %v1251, %v1256
    %s1258 = scalar_lea.vmem [#allocation3], 24
    %1259 = vst [vmem:[%s1258] sm:$0xff] %v1257
    %s1260 = scalar_lea.vmem [#allocation2], 128
    %v1261 = vld [vmem:[%s1260] sm:$0xff]
    %v1262 = vld [vmem:[%s1260 + $0x8] sm:$0xff]
    %v1263 = vld [vmem:[%s1260 + $0x10] sm:$0xff]
    %v1264 = vld [vmem:[%s1260 + $0x18] sm:$0xff]
    %v1265 = vpack.c.bf16 %v1257, %v1257
    %1266 = vmatpush.bf16.msra.mxu0 %v723
    %1267 = vmatpush.bf16.msra.mxu0 %v719
    %1268 = vmatpush.bf16.msra.mxu0 %v715
    %1269 = vmatpush.bf16.msra.mxu0 %v711
    %1270 = vmatpush.bf16.msra.mxu0 %v707
    %1271 = vmatpush.bf16.msra.mxu0 %v703
    %1272 = vmatpush.bf16.msra.mxu0 %v699
    %1273 = vmatpush.bf16.msra.mxu0 %v695
    %1274 = vmatmul.bf16.gmra.mxu0 %v1265
    %v1275 = vpop.f32.mrf.mxu0
    %v1276 = vadd.f32 0.0, %v1275
    %v1277 = vpop.f32.mrf.mxu0
    %1278 = vdwg.mxu0
    %1279 = vmatpush.bf16.msra.mxu0 %v724
    %1280 = vmatpush.bf16.msra.mxu0 %v720
    %1281 = vmatpush.bf16.msra.mxu0 %v716
    %1282 = vmatpush.bf16.msra.mxu0 %v712
    %1283 = vmatpush.bf16.msra.mxu0 %v708
    %1284 = vmatpush.bf16.msra.mxu0 %v704
    %1285 = vmatpush.bf16.msra.mxu0 %v700
    %1286 = vmatpush.bf16.msra.mxu0 %v696
    %1287 = vmatmul.bf16.gmra.mxu0 %v1265
    %v1288 = vpop.f32.mrf.mxu0
    %v1289 = vadd.f32 0.0, %v1288
    %v1290 = vpop.f32.mrf.mxu0
    %1291 = vdwg.mxu0
    %1292 = vmatpush.bf16.msra.mxu0 %v725
    %1293 = vmatpush.bf16.msra.mxu0 %v721
    %1294 = vmatpush.bf16.msra.mxu0 %v717
    %1295 = vmatpush.bf16.msra.mxu0 %v713
    %1296 = vmatpush.bf16.msra.mxu0 %v709
    %1297 = vmatpush.bf16.msra.mxu0 %v705
    %1298 = vmatpush.bf16.msra.mxu0 %v701
    %1299 = vmatpush.bf16.msra.mxu0 %v697
    %1300 = vmatmul.bf16.gmra.mxu0 %v1265
    %v1301 = vpop.f32.mrf.mxu0
    %v1302 = vadd.f32 0.0, %v1301
    %v1303 = vpop.f32.mrf.mxu0
    %1304 = vdwg.mxu0
    %1305 = vmatpush.bf16.msra.mxu0 %v726
    %1306 = vmatpush.bf16.msra.mxu0 %v722
    %1307 = vmatpush.bf16.msra.mxu0 %v718
    %1308 = vmatpush.bf16.msra.mxu0 %v714
    %1309 = vmatpush.bf16.msra.mxu0 %v710
    %1310 = vmatpush.bf16.msra.mxu0 %v706
    %1311 = vmatpush.bf16.msra.mxu0 %v702
    %1312 = vmatpush.bf16.msra.mxu0 %v698
    %1313 = vmatmul.bf16.gmra.mxu0 %v1265
    %v1314 = vpop.f32.mrf.mxu0
    %v1315 = vadd.f32 0.0, %v1314
    %v1316 = vpop.f32.mrf.mxu0
    %1317 = vdwg.mxu0
    %v1318 = vadd.f32 %v1261, %v1276
    %v1319 = vadd.f32 %v1262, %v1289
    %v1320 = vadd.f32 %v1263, %v1302
    %v1321 = vadd.f32 %v1264, %v1315
    %v1322 = vxor.u32 %v1318, 2147483648
    %v1323 = vxor.u32 %v1319, 2147483648
    %v1324 = vxor.u32 %v1321, 2147483648
    %v1325 = vmul.f32 %v1322, 1.442695
    %v1326 = vpow.pop %v1325
    %v1327 = vmul.f32 %v1323, 1.442695
    %v1328 = vpow.pop %v1327
    %v1329 = vmul.f32 %v1324, 1.442695
    %v1330 = vpow.pop %v1329
    %v1331 = vadd.f32 %v1326, 1.0
    %v1332 = vadd.f32 %v1328, 1.0
    %v1333 = vadd.f32 %v1330, 1.0
    %v1334 = vrcp.pop %v1331
    %v1335 = vmul.f32 %v1331, %v1334
    %v1336 = vsub.f32 1.0, %v1335
    %v1337 = vmul.f32 %v1334, %v1336
    %v1338 = vadd.f32 %v1334, %v1337
    %vm1339 = vweird.f32 %v1331
    %vm1340 = vweird.f32 %v1334
    %vm1341 = vmor %vm1339, %vm1340
    %v1342 = vsel %vm1341, %v1334, %v1338
    %v1343 = vand.u32 2147483647, %v1331
    %vm1344 = vcmp.eq.f32.partialorder %v1343, 8.507059e+37
    %v1345 = vand.u32 %v1331, 2147483648
    %v1346 = vor.u32 1.1754944e-38, %v1345
    %v1347 = vsel %vm1344, %v1346, %v1342
    %v1348 = vmul.f32 1.0, %v1347
    %v1349 = vrcp.pop %v1332
    %v1350 = vmul.f32 %v1332, %v1349
    %v1351 = vsub.f32 1.0, %v1350
    %v1352 = vmul.f32 %v1349, %v1351
    %v1353 = vadd.f32 %v1349, %v1352
    %vm1354 = vweird.f32 %v1332
    %vm1355 = vweird.f32 %v1349
    %vm1356 = vmor %vm1354, %vm1355
    %v1357 = vsel %vm1356, %v1349, %v1353
    %v1358 = vand.u32 2147483647, %v1332
    %vm1359 = vcmp.eq.f32.partialorder %v1358, 8.507059e+37
    %v1360 = vand.u32 %v1332, 2147483648
    %v1361 = vor.u32 1.1754944e-38, %v1360
    %v1362 = vsel %vm1359, %v1361, %v1357
    %v1363 = vmul.f32 1.0, %v1362
    %v1364 = vrcp.pop %v1333
    %v1365 = vmul.f32 %v1333, %v1364
    %v1366 = vsub.f32 1.0, %v1365
    %v1367 = vmul.f32 %v1364, %v1366
    %v1368 = vadd.f32 %v1364, %v1367
    %vm1369 = vweird.f32 %v1333
    %vm1370 = vweird.f32 %v1364
    %vm1371 = vmor %vm1369, %vm1370
    %v1372 = vsel %vm1371, %v1364, %v1368
    %v1373 = vand.u32 2147483647, %v1333
    %vm1374 = vcmp.eq.f32.partialorder %v1373, 8.507059e+37
    %v1375 = vand.u32 %v1333, 2147483648
    %v1376 = vor.u32 1.1754944e-38, %v1375
    %v1377 = vsel %vm1374, %v1376, %v1372
    %v1378 = vmul.f32 1.0, %v1377
    %v1379 = vtanh.pop %v1320
    %v1380 = vmul.f32 %v1363, %v1255
    %v1381 = vmul.f32 %v1348, %v1379
    %v1382 = vadd.f32 %v1380, %v1381
    %v1383 = vtanh.pop %v1382
    %v1384 = vmul.f32 %v1378, %v1383
    %s1385 = scalar_lea.vmem [#allocation3], 32
    %1386 = vst [vmem:[%s1385] sm:$0xff] %v1384
    %s1387 = scalar_lea.vmem [#allocation2], 160
    %v1388 = vld [vmem:[%s1387] sm:$0xff]
    %v1389 = vld [vmem:[%s1387 + $0x8] sm:$0xff]
    %v1390 = vld [vmem:[%s1387 + $0x10] sm:$0xff]
    %v1391 = vld [vmem:[%s1387 + $0x18] sm:$0xff]
    %v1392 = vpack.c.bf16 %v1384, %v1384
    %1393 = vmatpush.bf16.msra.mxu0 %v723
    %1394 = vmatpush.bf16.msra.mxu0 %v719
    %1395 = vmatpush.bf16.msra.mxu0 %v715
    %1396 = vmatpush.bf16.msra.mxu0 %v711
    %1397 = vmatpush.bf16.msra.mxu0 %v707
    %1398 = vmatpush.bf16.msra.mxu0 %v703
    %1399 = vmatpush.bf16.msra.mxu0 %v699
    %1400 = vmatpush.bf16.msra.mxu0 %v695
    %1401 = vmatmul.bf16.gmra.mxu0 %v1392
    %v1402 = vpop.f32.mrf.mxu0
    %v1403 = vadd.f32 0.0, %v1402
    %v1404 = vpop.f32.mrf.mxu0
    %1405 = vdwg.mxu0
    %1406 = vmatpush.bf16.msra.mxu0 %v724
    %1407 = vmatpush.bf16.msra.mxu0 %v720
    %1408 = vmatpush.bf16.msra.mxu0 %v716
    %1409 = vmatpush.bf16.msra.mxu0 %v712
    %1410 = vmatpush.bf16.msra.mxu0 %v708
    %1411 = vmatpush.bf16.msra.mxu0 %v704
    %1412 = vmatpush.bf16.msra.mxu0 %v700
    %1413 = vmatpush.bf16.msra.mxu0 %v696
    %1414 = vmatmul.bf16.gmra.mxu0 %v1392
    %v1415 = vpop.f32.mrf.mxu0
    %v1416 = vadd.f32 0.0, %v1415
    %v1417 = vpop.f32.mrf.mxu0
    %1418 = vdwg.mxu0
    %1419 = vmatpush.bf16.msra.mxu0 %v725
    %1420 = vmatpush.bf16.msra.mxu0 %v721
    %1421 = vmatpush.bf16.msra.mxu0 %v717
    %1422 = vmatpush.bf16.msra.mxu0 %v713
    %1423 = vmatpush.bf16.msra.mxu0 %v709
    %1424 = vmatpush.bf16.msra.mxu0 %v705
    %1425 = vmatpush.bf16.msra.mxu0 %v701
    %1426 = vmatpush.bf16.msra.mxu0 %v697
    %1427 = vmatmul.bf16.gmra.mxu0 %v1392
    %v1428 = vpop.f32.mrf.mxu0
    %v1429 = vadd.f32 0.0, %v1428
    %v1430 = vpop.f32.mrf.mxu0
    %1431 = vdwg.mxu0
    %1432 = vmatpush.bf16.msra.mxu0 %v726
    %1433 = vmatpush.bf16.msra.mxu0 %v722
    %1434 = vmatpush.bf16.msra.mxu0 %v718
    %1435 = vmatpush.bf16.msra.mxu0 %v714
    %1436 = vmatpush.bf16.msra.mxu0 %v710
    %1437 = vmatpush.bf16.msra.mxu0 %v706
    %1438 = vmatpush.bf16.msra.mxu0 %v702
    %1439 = vmatpush.bf16.msra.mxu0 %v698
    %1440 = vmatmul.bf16.gmra.mxu0 %v1392
    %v1441 = vpop.f32.mrf.mxu0
    %v1442 = vadd.f32 0.0, %v1441
    %v1443 = vpop.f32.mrf.mxu0
    %1444 = vdwg.mxu0
    %v1445 = vadd.f32 %v1388, %v1403
    %v1446 = vadd.f32 %v1389, %v1416
    %v1447 = vadd.f32 %v1390, %v1429
    %v1448 = vadd.f32 %v1391, %v1442
    %v1449 = vxor.u32 %v1445, 2147483648
    %v1450 = vxor.u32 %v1446, 2147483648
    %v1451 = vxor.u32 %v1448, 2147483648
    %v1452 = vmul.f32 %v1449, 1.442695
    %v1453 = vpow.pop %v1452
    %v1454 = vmul.f32 %v1450, 1.442695
    %v1455 = vpow.pop %v1454
    %v1456 = vmul.f32 %v1451, 1.442695
    %v1457 = vpow.pop %v1456
    %v1458 = vadd.f32 %v1453, 1.0
    %v1459 = vadd.f32 %v1455, 1.0
    %v1460 = vadd.f32 %v1457, 1.0
    %v1461 = vrcp.pop %v1458
    %v1462 = vmul.f32 %v1458, %v1461
    %v1463 = vsub.f32 1.0, %v1462
    %v1464 = vmul.f32 %v1461, %v1463
    %v1465 = vadd.f32 %v1461, %v1464
    %vm1466 = vweird.f32 %v1458
    %vm1467 = vweird.f32 %v1461
    %vm1468 = vmor %vm1466, %vm1467
    %v1469 = vsel %vm1468, %v1461, %v1465
    %v1470 = vand.u32 2147483647, %v1458
    %vm1471 = vcmp.eq.f32.partialorder %v1470, 8.507059e+37
    %v1472 = vand.u32 %v1458, 2147483648
    %v1473 = vor.u32 1.1754944e-38, %v1472
    %v1474 = vsel %vm1471, %v1473, %v1469
    %v1475 = vmul.f32 1.0, %v1474
    %v1476 = vrcp.pop %v1459
    %v1477 = vmul.f32 %v1459, %v1476
    %v1478 = vsub.f32 1.0, %v1477
    %v1479 = vmul.f32 %v1476, %v1478
    %v1480 = vadd.f32 %v1476, %v1479
    %vm1481 = vweird.f32 %v1459
    %vm1482 = vweird.f32 %v1476
    %vm1483 = vmor %vm1481, %vm1482
    %v1484 = vsel %vm1483, %v1476, %v1480
    %v1485 = vand.u32 2147483647, %v1459
    %vm1486 = vcmp.eq.f32.partialorder %v1485, 8.507059e+37
    %v1487 = vand.u32 %v1459, 2147483648
    %v1488 = vor.u32 1.1754944e-38, %v1487
    %v1489 = vsel %vm1486, %v1488, %v1484
    %v1490 = vmul.f32 1.0, %v1489
    %v1491 = vrcp.pop %v1460
    %v1492 = vmul.f32 %v1460, %v1491
    %v1493 = vsub.f32 1.0, %v1492
    %v1494 = vmul.f32 %v1491, %v1493
    %v1495 = vadd.f32 %v1491, %v1494
    %vm1496 = vweird.f32 %v1460
    %vm1497 = vweird.f32 %v1491
    %vm1498 = vmor %vm1496, %vm1497
    %v1499 = vsel %vm1498, %v1491, %v1495
    %v1500 = vand.u32 2147483647, %v1460
    %vm1501 = vcmp.eq.f32.partialorder %v1500, 8.507059e+37
    %v1502 = vand.u32 %v1460, 2147483648
    %v1503 = vor.u32 1.1754944e-38, %v1502
    %v1504 = vsel %vm1501, %v1503, %v1499
    %v1505 = vmul.f32 1.0, %v1504
    %v1506 = vtanh.pop %v1447
    %v1507 = vmul.f32 %v1490, %v1382
    %v1508 = vmul.f32 %v1475, %v1506
    %v1509 = vadd.f32 %v1507, %v1508
    %v1510 = vtanh.pop %v1509
    %v1511 = vmul.f32 %v1505, %v1510
    %s1512 = scalar_lea.vmem [#allocation3], 40
    %1513 = vst [vmem:[%s1512] sm:$0xff] %v1511
    %s1514 = scalar_lea.vmem [#allocation2], 192
    %v1515 = vld [vmem:[%s1514] sm:$0xff]
    %v1516 = vld [vmem:[%s1514 + $0x8] sm:$0xff]
    %v1517 = vld [vmem:[%s1514 + $0x10] sm:$0xff]
    %v1518 = vld [vmem:[%s1514 + $0x18] sm:$0xff]
    %v1519 = vpack.c.bf16 %v1511, %v1511
    %1520 = vmatpush.bf16.msra.mxu0 %v723
    %1521 = vmatpush.bf16.msra.mxu0 %v719
    %1522 = vmatpush.bf16.msra.mxu0 %v715
    %1523 = vmatpush.bf16.msra.mxu0 %v711
    %1524 = vmatpush.bf16.msra.mxu0 %v707
    %1525 = vmatpush.bf16.msra.mxu0 %v703
    %1526 = vmatpush.bf16.msra.mxu0 %v699
    %1527 = vmatpush.bf16.msra.mxu0 %v695
    %1528 = vmatmul.bf16.gmra.mxu0 %v1519
    %v1529 = vpop.f32.mrf.mxu0
    %v1530 = vadd.f32 0.0, %v1529
    %v1531 = vpop.f32.mrf.mxu0
    %1532 = vdwg.mxu0
    %1533 = vmatpush.bf16.msra.mxu0 %v724
    %1534 = vmatpush.bf16.msra.mxu0 %v720
    %1535 = vmatpush.bf16.msra.mxu0 %v716
    %1536 = vmatpush.bf16.msra.mxu0 %v712
    %1537 = vmatpush.bf16.msra.mxu0 %v708
    %1538 = vmatpush.bf16.msra.mxu0 %v704
    %1539 = vmatpush.bf16.msra.mxu0 %v700
    %1540 = vmatpush.bf16.msra.mxu0 %v696
    %1541 = vmatmul.bf16.gmra.mxu0 %v1519
    %v1542 = vpop.f32.mrf.mxu0
    %v1543 = vadd.f32 0.0, %v1542
    %v1544 = vpop.f32.mrf.mxu0
    %1545 = vdwg.mxu0
    %1546 = vmatpush.bf16.msra.mxu0 %v725
    %1547 = vmatpush.bf16.msra.mxu0 %v721
    %1548 = vmatpush.bf16.msra.mxu0 %v717
    %1549 = vmatpush.bf16.msra.mxu0 %v713
    %1550 = vmatpush.bf16.msra.mxu0 %v709
    %1551 = vmatpush.bf16.msra.mxu0 %v705
    %1552 = vmatpush.bf16.msra.mxu0 %v701
    %1553 = vmatpush.bf16.msra.mxu0 %v697
    %1554 = vmatmul.bf16.gmra.mxu0 %v1519
    %v1555 = vpop.f32.mrf.mxu0
    %v1556 = vadd.f32 0.0, %v1555
    %v1557 = vpop.f32.mrf.mxu0
    %1558 = vdwg.mxu0
    %1559 = vmatpush.bf16.msra.mxu0 %v726
    %1560 = vmatpush.bf16.msra.mxu0 %v722
    %1561 = vmatpush.bf16.msra.mxu0 %v718
    %1562 = vmatpush.bf16.msra.mxu0 %v714
    %1563 = vmatpush.bf16.msra.mxu0 %v710
    %1564 = vmatpush.bf16.msra.mxu0 %v706
    %1565 = vmatpush.bf16.msra.mxu0 %v702
    %1566 = vmatpush.bf16.msra.mxu0 %v698
    %1567 = vmatmul.bf16.gmra.mxu0 %v1519
    %v1568 = vpop.f32.mrf.mxu0
    %v1569 = vadd.f32 0.0, %v1568
    %v1570 = vpop.f32.mrf.mxu0
    %1571 = vdwg.mxu0
    %v1572 = vadd.f32 %v1515, %v1530
    %v1573 = vadd.f32 %v1516, %v1543
    %v1574 = vadd.f32 %v1517, %v1556
    %v1575 = vadd.f32 %v1518, %v1569
    %v1576 = vxor.u32 %v1572, 2147483648
    %v1577 = vxor.u32 %v1573, 2147483648
    %v1578 = vxor.u32 %v1575, 2147483648
    %v1579 = vmul.f32 %v1576, 1.442695
    %v1580 = vpow.pop %v1579
    %v1581 = vmul.f32 %v1577, 1.442695
    %v1582 = vpow.pop %v1581
    %v1583 = vmul.f32 %v1578, 1.442695
    %v1584 = vpow.pop %v1583
    %v1585 = vadd.f32 %v1580, 1.0
    %v1586 = vadd.f32 %v1582, 1.0
    %v1587 = vadd.f32 %v1584, 1.0
    %v1588 = vrcp.pop %v1585
    %v1589 = vmul.f32 %v1585, %v1588
    %v1590 = vsub.f32 1.0, %v1589
    %v1591 = vmul.f32 %v1588, %v1590
    %v1592 = vadd.f32 %v1588, %v1591
    %vm1593 = vweird.f32 %v1585
    %vm1594 = vweird.f32 %v1588
    %vm1595 = vmor %vm1593, %vm1594
    %v1596 = vsel %vm1595, %v1588, %v1592
    %v1597 = vand.u32 2147483647, %v1585
    %vm1598 = vcmp.eq.f32.partialorder %v1597, 8.507059e+37
    %v1599 = vand.u32 %v1585, 2147483648
    %v1600 = vor.u32 1.1754944e-38, %v1599
    %v1601 = vsel %vm1598, %v1600, %v1596
    %v1602 = vmul.f32 1.0, %v1601
    %v1603 = vrcp.pop %v1586
    %v1604 = vmul.f32 %v1586, %v1603
    %v1605 = vsub.f32 1.0, %v1604
    %v1606 = vmul.f32 %v1603, %v1605
    %v1607 = vadd.f32 %v1603, %v1606
    %vm1608 = vweird.f32 %v1586
    %vm1609 = vweird.f32 %v1603
    %vm1610 = vmor %vm1608, %vm1609
    %v1611 = vsel %vm1610, %v1603, %v1607
    %v1612 = vand.u32 2147483647, %v1586
    %vm1613 = vcmp.eq.f32.partialorder %v1612, 8.507059e+37
    %v1614 = vand.u32 %v1586, 2147483648
    %v1615 = vor.u32 1.1754944e-38, %v1614
    %v1616 = vsel %vm1613, %v1615, %v1611
    %v1617 = vmul.f32 1.0, %v1616
    %v1618 = vrcp.pop %v1587
    %v1619 = vmul.f32 %v1587, %v1618
    %v1620 = vsub.f32 1.0, %v1619
    %v1621 = vmul.f32 %v1618, %v1620
    %v1622 = vadd.f32 %v1618, %v1621
    %vm1623 = vweird.f32 %v1587
    %vm1624 = vweird.f32 %v1618
    %vm1625 = vmor %vm1623, %vm1624
    %v1626 = vsel %vm1625, %v1618, %v1622
    %v1627 = vand.u32 2147483647, %v1587
    %vm1628 = vcmp.eq.f32.partialorder %v1627, 8.507059e+37
    %v1629 = vand.u32 %v1587, 2147483648
    %v1630 = vor.u32 1.1754944e-38, %v1629
    %v1631 = vsel %vm1628, %v1630, %v1626
    %v1632 = vmul.f32 1.0, %v1631
    %v1633 = vtanh.pop %v1574
    %v1634 = vmul.f32 %v1617, %v1509
    %v1635 = vmul.f32 %v1602, %v1633
    %v1636 = vadd.f32 %v1634, %v1635
    %v1637 = vtanh.pop %v1636
    %v1638 = vmul.f32 %v1632, %v1637
    %s1639 = scalar_lea.vmem [#allocation3], 48
    %1640 = vst [vmem:[%s1639] sm:$0xff] %v1638
    %s1641 = scalar_lea.vmem [#allocation2], 224
    %v1642 = vld [vmem:[%s1641] sm:$0xff]
    %v1643 = vld [vmem:[%s1641 + $0x8] sm:$0xff]
    %v1644 = vld [vmem:[%s1641 + $0x10] sm:$0xff]
    %v1645 = vld [vmem:[%s1641 + $0x18] sm:$0xff]
    %v1646 = vpack.c.bf16 %v1638, %v1638
    %1647 = vmatpush.bf16.msra.mxu0 %v723
    %1648 = vmatpush.bf16.msra.mxu0 %v719
    %1649 = vmatpush.bf16.msra.mxu0 %v715
    %1650 = vmatpush.bf16.msra.mxu0 %v711
    %1651 = vmatpush.bf16.msra.mxu0 %v707
    %1652 = vmatpush.bf16.msra.mxu0 %v703
    %1653 = vmatpush.bf16.msra.mxu0 %v699
    %1654 = vmatpush.bf16.msra.mxu0 %v695
    %1655 = vmatmul.bf16.gmra.mxu0 %v1646
    %v1656 = vpop.f32.mrf.mxu0
    %v1657 = vadd.f32 0.0, %v1656
    %v1658 = vpop.f32.mrf.mxu0
    %1659 = vdwg.mxu0
    %1660 = vmatpush.bf16.msra.mxu0 %v724
    %1661 = vmatpush.bf16.msra.mxu0 %v720
    %1662 = vmatpush.bf16.msra.mxu0 %v716
    %1663 = vmatpush.bf16.msra.mxu0 %v712
    %1664 = vmatpush.bf16.msra.mxu0 %v708
    %1665 = vmatpush.bf16.msra.mxu0 %v704
    %1666 = vmatpush.bf16.msra.mxu0 %v700
    %1667 = vmatpush.bf16.msra.mxu0 %v696
    %1668 = vmatmul.bf16.gmra.mxu0 %v1646
    %v1669 = vpop.f32.mrf.mxu0
    %v1670 = vadd.f32 0.0, %v1669
    %v1671 = vpop.f32.mrf.mxu0
    %1672 = vdwg.mxu0
    %1673 = vmatpush.bf16.msra.mxu0 %v725
    %1674 = vmatpush.bf16.msra.mxu0 %v721
    %1675 = vmatpush.bf16.msra.mxu0 %v717
    %1676 = vmatpush.bf16.msra.mxu0 %v713
    %1677 = vmatpush.bf16.msra.mxu0 %v709
    %1678 = vmatpush.bf16.msra.mxu0 %v705
    %1679 = vmatpush.bf16.msra.mxu0 %v701
    %1680 = vmatpush.bf16.msra.mxu0 %v697
    %1681 = vmatmul.bf16.gmra.mxu0 %v1646
    %v1682 = vpop.f32.mrf.mxu0
    %v1683 = vadd.f32 0.0, %v1682
    %v1684 = vpop.f32.mrf.mxu0
    %1685 = vdwg.mxu0
    %1686 = vmatpush.bf16.msra.mxu0 %v726
    %1687 = vmatpush.bf16.msra.mxu0 %v722
    %1688 = vmatpush.bf16.msra.mxu0 %v718
    %1689 = vmatpush.bf16.msra.mxu0 %v714
    %1690 = vmatpush.bf16.msra.mxu0 %v710
    %1691 = vmatpush.bf16.msra.mxu0 %v706
    %1692 = vmatpush.bf16.msra.mxu0 %v702
    %1693 = vmatpush.bf16.msra.mxu0 %v698
    %1694 = vmatmul.bf16.gmra.mxu0 %v1646
    %v1695 = vpop.f32.mrf.mxu0
    %v1696 = vadd.f32 0.0, %v1695
    %v1697 = vpop.f32.mrf.mxu0
    %1698 = vdwg.mxu0
    %v1699 = vadd.f32 %v1642, %v1657
    %v1700 = vadd.f32 %v1643, %v1670
    %v1701 = vadd.f32 %v1644, %v1683
    %v1702 = vadd.f32 %v1645, %v1696
    %v1703 = vxor.u32 %v1699, 2147483648
    %v1704 = vxor.u32 %v1700, 2147483648
    %v1705 = vxor.u32 %v1702, 2147483648
    %v1706 = vmul.f32 %v1703, 1.442695
    %v1707 = vpow.pop %v1706
    %v1708 = vmul.f32 %v1704, 1.442695
    %v1709 = vpow.pop %v1708
    %v1710 = vmul.f32 %v1705, 1.442695
    %v1711 = vpow.pop %v1710
    %v1712 = vadd.f32 %v1707, 1.0
    %v1713 = vadd.f32 %v1709, 1.0
    %v1714 = vadd.f32 %v1711, 1.0
    %v1715 = vrcp.pop %v1712
    %v1716 = vmul.f32 %v1712, %v1715
    %v1717 = vsub.f32 1.0, %v1716
    %v1718 = vmul.f32 %v1715, %v1717
    %v1719 = vadd.f32 %v1715, %v1718
    %vm1720 = vweird.f32 %v1712
    %vm1721 = vweird.f32 %v1715
    %vm1722 = vmor %vm1720, %vm1721
    %v1723 = vsel %vm1722, %v1715, %v1719
    %v1724 = vand.u32 2147483647, %v1712
    %vm1725 = vcmp.eq.f32.partialorder %v1724, 8.507059e+37
    %v1726 = vand.u32 %v1712, 2147483648
    %v1727 = vor.u32 1.1754944e-38, %v1726
    %v1728 = vsel %vm1725, %v1727, %v1723
    %v1729 = vmul.f32 1.0, %v1728
    %v1730 = vrcp.pop %v1713
    %v1731 = vmul.f32 %v1713, %v1730
    %v1732 = vsub.f32 1.0, %v1731
    %v1733 = vmul.f32 %v1730, %v1732
    %v1734 = vadd.f32 %v1730, %v1733
    %vm1735 = vweird.f32 %v1713
    %vm1736 = vweird.f32 %v1730
    %vm1737 = vmor %vm1735, %vm1736
    %v1738 = vsel %vm1737, %v1730, %v1734
    %v1739 = vand.u32 2147483647, %v1713
    %vm1740 = vcmp.eq.f32.partialorder %v1739, 8.507059e+37
    %v1741 = vand.u32 %v1713, 2147483648
    %v1742 = vor.u32 1.1754944e-38, %v1741
    %v1743 = vsel %vm1740, %v1742, %v1738
    %v1744 = vmul.f32 1.0, %v1743
    %v1745 = vrcp.pop %v1714
    %v1746 = vmul.f32 %v1714, %v1745
    %v1747 = vsub.f32 1.0, %v1746
    %v1748 = vmul.f32 %v1745, %v1747
    %v1749 = vadd.f32 %v1745, %v1748
    %vm1750 = vweird.f32 %v1714
    %vm1751 = vweird.f32 %v1745
    %vm1752 = vmor %vm1750, %vm1751
    %v1753 = vsel %vm1752, %v1745, %v1749
    %v1754 = vand.u32 2147483647, %v1714
    %vm1755 = vcmp.eq.f32.partialorder %v1754, 8.507059e+37
    %v1756 = vand.u32 %v1714, 2147483648
    %v1757 = vor.u32 1.1754944e-38, %v1756
    %v1758 = vsel %vm1755, %v1757, %v1753
    %v1759 = vmul.f32 1.0, %v1758
    %v1760 = vtanh.pop %v1701
    %v1761 = vmul.f32 %v1744, %v1636
    %v1762 = vmul.f32 %v1729, %v1760
    %v1763 = vadd.f32 %v1761, %v1762
    %v1764 = vtanh.pop %v1763
    %v1765 = vmul.f32 %v1759, %v1764
    %s1766 = scalar_lea.vmem [#allocation3], 56
    %1767 = vst [vmem:[%s1766] sm:$0xff] %v1765
    %v1768 = vld [vmem:[#allocation3] sm:$0xff]
    %v1769 = vld [vmem:[#allocation3 + $0x8] sm:$0xff]
    %v1770 = vld [vmem:[#allocation3 + $0x10] sm:$0xff]
    %v1771 = vld [vmem:[#allocation3 + $0x18] sm:$0xff]
    %v1772 = vld [vmem:[#allocation3 + $0x20] sm:$0xff]
    %v1773 = vld [vmem:[#allocation3 + $0x28] sm:$0xff]
    %v1774 = vld [vmem:[#allocation3 + $0x30] sm:$0xff]
    %v1775 = vld [vmem:[#allocation3 + $0x38] sm:$0xff]
    %v1776 = vpack.c.bf16 %v1769, %v1768
    %v1777 = vpack.c.bf16 %v1771, %v1770
    %v1778 = vpack.c.bf16 %v1773, %v1772
    %v1779 = vpack.c.bf16 %v1775, %v1774
    %v1780 = vld [vmem:[#allocation12] sm:$0xff]
    %v1781 = vld [vmem:[#allocation12 + $0x8] sm:$0xff]
    %v1782 = vld [vmem:[#allocation12 + $0x10] sm:$0xff]
    %v1783 = vld [vmem:[#allocation12 + $0x18] sm:$0xff]
    %v1784 = vld [vmem:[#allocation12 + $0x20] sm:$0xff]
    %v1785 = vld [vmem:[#allocation12 + $0x28] sm:$0xff]
    %v1786 = vld [vmem:[#allocation12 + $0x30] sm:$0xff]
    %v1787 = vld [vmem:[#allocation12 + $0x38] sm:$0xff]
    %v1788 = vld [vmem:[#allocation12 + $0x40] sm:$0xff]
    %v1789 = vld [vmem:[#allocation12 + $0x48] sm:$0xff]
    %v1790 = vld [vmem:[#allocation12 + $0x50] sm:$0xff]
    %v1791 = vld [vmem:[#allocation12 + $0x58] sm:$0xff]
    %v1792 = vld [vmem:[#allocation12 + $0x60] sm:$0xff]
    %v1793 = vld [vmem:[#allocation12 + $0x68] sm:$0xff]
    %v1794 = vld [vmem:[#allocation12 + $0x70] sm:$0xff]
    %v1795 = vld [vmem:[#allocation12 + $0x78] sm:$0xff]
    %v1796 = vld [vmem:[#allocation12 + $0x80] sm:$0xff]
    %v1797 = vld [vmem:[#allocation12 + $0x88] sm:$0xff]
    %v1798 = vld [vmem:[#allocation12 + $0x90] sm:$0xff]
    %v1799 = vld [vmem:[#allocation12 + $0x98] sm:$0xff]
    %v1800 = vld [vmem:[#allocation12 + $0xa0] sm:$0xff]
    %v1801 = vld [vmem:[#allocation12 + $0xa8] sm:$0xff]
    %v1802 = vld [vmem:[#allocation12 + $0xb0] sm:$0xff]
    %v1803 = vld [vmem:[#allocation12 + $0xb8] sm:$0xff]
    %v1804 = vld [vmem:[#allocation12 + $0xc0] sm:$0xff]
    %v1805 = vld [vmem:[#allocation12 + $0xc8] sm:$0xff]
    %v1806 = vld [vmem:[#allocation12 + $0xd0] sm:$0xff]
    %v1807 = vld [vmem:[#allocation12 + $0xd8] sm:$0xff]
    %v1808 = vld [vmem:[#allocation12 + $0xe0] sm:$0xff]
    %v1809 = vld [vmem:[#allocation12 + $0xe8] sm:$0xff]
    %v1810 = vld [vmem:[#allocation12 + $0xf0] sm:$0xff]
    %v1811 = vld [vmem:[#allocation12 + $0xf8] sm:$0xff]
    %v1844 = vunpack.c.l.b16 %v1780
    %v1845 = vunpack.c.h.b16 %v1780
    %v1846 = vunpack.c.l.b16 %v1781
    %v1847 = vunpack.c.h.b16 %v1781
    %v1848 = vunpack.c.l.b16 %v1782
    %v1849 = vunpack.c.h.b16 %v1782
    %v1850 = vunpack.c.l.b16 %v1783
    %v1851 = vunpack.c.h.b16 %v1783
    %v1852 = vunpack.c.l.b16 %v1784
    %v1853 = vunpack.c.h.b16 %v1784
    %v1854 = vunpack.c.l.b16 %v1785
    %v1855 = vunpack.c.h.b16 %v1785
    %v1856 = vunpack.c.l.b16 %v1786
    %v1857 = vunpack.c.h.b16 %v1786
    %v1858 = vunpack.c.l.b16 %v1787
    %v1859 = vunpack.c.h.b16 %v1787
    %v1860 = vunpack.c.l.b16 %v1788
    %v1861 = vunpack.c.h.b16 %v1788
    %v1862 = vunpack.c.l.b16 %v1789
    %v1863 = vunpack.c.h.b16 %v1789
    %v1864 = vunpack.c.l.b16 %v1790
    %v1865 = vunpack.c.h.b16 %v1790
    %v1866 = vunpack.c.l.b16 %v1791
    %v1867 = vunpack.c.h.b16 %v1791
    %v1868 = vunpack.c.l.b16 %v1792
    %v1869 = vunpack.c.h.b16 %v1792
    %v1870 = vunpack.c.l.b16 %v1793
    %v1871 = vunpack.c.h.b16 %v1793
    %v1872 = vunpack.c.l.b16 %v1794
    %v1873 = vunpack.c.h.b16 %v1794
    %v1874 = vunpack.c.l.b16 %v1795
    %v1875 = vunpack.c.h.b16 %v1795
    %v1876 = vunpack.c.l.b16 %v1796
    %v1877 = vunpack.c.h.b16 %v1796
    %v1878 = vunpack.c.l.b16 %v1797
    %v1879 = vunpack.c.h.b16 %v1797
    %v1880 = vunpack.c.l.b16 %v1798
    %v1881 = vunpack.c.h.b16 %v1798
    %v1882 = vunpack.c.l.b16 %v1799
    %v1883 = vunpack.c.h.b16 %v1799
    %v1884 = vunpack.c.l.b16 %v1800
    %v1885 = vunpack.c.h.b16 %v1800
    %v1886 = vunpack.c.l.b16 %v1801
    %v1887 = vunpack.c.h.b16 %v1801
    %v1888 = vunpack.c.l.b16 %v1802
    %v1889 = vunpack.c.h.b16 %v1802
    %v1890 = vunpack.c.l.b16 %v1803
    %v1891 = vunpack.c.h.b16 %v1803
    %v1892 = vunpack.c.l.b16 %v1804
    %v1893 = vunpack.c.h.b16 %v1804
    %v1894 = vunpack.c.l.b16 %v1805
    %v1895 = vunpack.c.h.b16 %v1805
    %v1896 = vunpack.c.l.b16 %v1806
    %v1897 = vunpack.c.h.b16 %v1806
    %v1898 = vunpack.c.l.b16 %v1807
    %v1899 = vunpack.c.h.b16 %v1807
    %v1900 = vunpack.c.l.b16 %v1808
    %v1901 = vunpack.c.h.b16 %v1808
    %v1902 = vunpack.c.l.b16 %v1809
    %v1903 = vunpack.c.h.b16 %v1809
    %v1904 = vunpack.c.l.b16 %v1810
    %v1905 = vunpack.c.h.b16 %v1810
    %v1906 = vunpack.c.l.b16 %v1811
    %v1907 = vunpack.c.h.b16 %v1811
    %v1908 = vpack.c.b16 %v1848, %v1844
    %v1909 = vpack.c.b16 %v1849, %v1845
    %v1910 = vpack.c.b16 %v1850, %v1846
    %v1911 = vpack.c.b16 %v1851, %v1847
    %v1912 = vpack.c.b16 %v1856, %v1852
    %v1913 = vpack.c.b16 %v1857, %v1853
    %v1914 = vpack.c.b16 %v1858, %v1854
    %v1915 = vpack.c.b16 %v1859, %v1855
    %v1916 = vpack.c.b16 %v1864, %v1860
    %v1917 = vpack.c.b16 %v1865, %v1861
    %v1918 = vpack.c.b16 %v1866, %v1862
    %v1919 = vpack.c.b16 %v1867, %v1863
    %v1920 = vpack.c.b16 %v1872, %v1868
    %v1921 = vpack.c.b16 %v1873, %v1869
    %v1922 = vpack.c.b16 %v1874, %v1870
    %v1923 = vpack.c.b16 %v1875, %v1871
    %v1924 = vpack.c.b16 %v1880, %v1876
    %v1925 = vpack.c.b16 %v1881, %v1877
    %v1926 = vpack.c.b16 %v1882, %v1878
    %v1927 = vpack.c.b16 %v1883, %v1879
    %v1928 = vpack.c.b16 %v1888, %v1884
    %v1929 = vpack.c.b16 %v1889, %v1885
    %v1930 = vpack.c.b16 %v1890, %v1886
    %v1931 = vpack.c.b16 %v1891, %v1887
    %v1932 = vpack.c.b16 %v1896, %v1892
    %v1933 = vpack.c.b16 %v1897, %v1893
    %v1934 = vpack.c.b16 %v1898, %v1894
    %v1935 = vpack.c.b16 %v1899, %v1895
    %v1936 = vpack.c.b16 %v1904, %v1900
    %v1937 = vpack.c.b16 %v1905, %v1901
    %v1938 = vpack.c.b16 %v1906, %v1902
    %v1939 = vpack.c.b16 %v1907, %v1903
    %1972 = vmatpush.bf16.msra.mxu0 %v1936
    %1973 = vmatpush.bf16.msra.mxu0 %v1932
    %1974 = vmatpush.bf16.msra.mxu0 %v1928
    %1975 = vmatpush.bf16.msra.mxu0 %v1924
    %1976 = vmatpush.bf16.msra.mxu0 %v1920
    %1977 = vmatpush.bf16.msra.mxu0 %v1916
    %1978 = vmatpush.bf16.msra.mxu0 %v1912
    %1979 = vmatpush.bf16.msra.mxu0 %v1908
    %1980 = vmatmul.bf16.gmra.mxu0 %v1776
    %v1981 = vpop.f32.mrf.mxu0
    %v1982 = vadd.f32 0.0, %v1981
    %v1983 = vpop.f32.mrf.mxu0
    %v1984 = vadd.f32 0.0, %v1983
    %1985 = vmatmul.bf16.gmra.mxu0 %v1777
    %v1986 = vpop.f32.mrf.mxu0
    %v1987 = vadd.f32 0.0, %v1986
    %v1988 = vpop.f32.mrf.mxu0
    %v1989 = vadd.f32 0.0, %v1988
    %1990 = vmatmul.bf16.gmra.mxu0 %v1778
    %v1991 = vpop.f32.mrf.mxu0
    %v1992 = vadd.f32 0.0, %v1991
    %v1993 = vpop.f32.mrf.mxu0
    %v1994 = vadd.f32 0.0, %v1993
    %1995 = vmatmul.bf16.gmra.mxu0 %v1779
    %v1996 = vpop.f32.mrf.mxu0
    %v1997 = vadd.f32 0.0, %v1996
    %v1998 = vpop.f32.mrf.mxu0
    %v1999 = vadd.f32 0.0, %v1998
    %2000 = vdwg.mxu0
    %2001 = vmatpush.bf16.msra.mxu0 %v1937
    %2002 = vmatpush.bf16.msra.mxu0 %v1933
    %2003 = vmatpush.bf16.msra.mxu0 %v1929
    %2004 = vmatpush.bf16.msra.mxu0 %v1925
    %2005 = vmatpush.bf16.msra.mxu0 %v1921
    %2006 = vmatpush.bf16.msra.mxu0 %v1917
    %2007 = vmatpush.bf16.msra.mxu0 %v1913
    %2008 = vmatpush.bf16.msra.mxu0 %v1909
    %2009 = vmatmul.bf16.gmra.mxu0 %v1776
    %v2010 = vpop.f32.mrf.mxu0
    %v2011 = vadd.f32 0.0, %v2010
    %v2012 = vpop.f32.mrf.mxu0
    %v2013 = vadd.f32 0.0, %v2012
    %2014 = vmatmul.bf16.gmra.mxu0 %v1777
    %v2015 = vpop.f32.mrf.mxu0
    %v2016 = vadd.f32 0.0, %v2015
    %v2017 = vpop.f32.mrf.mxu0
    %v2018 = vadd.f32 0.0, %v2017
    %2019 = vmatmul.bf16.gmra.mxu0 %v1778
    %v2020 = vpop.f32.mrf.mxu0
    %v2021 = vadd.f32 0.0, %v2020
    %v2022 = vpop.f32.mrf.mxu0
    %v2023 = vadd.f32 0.0, %v2022
    %2024 = vmatmul.bf16.gmra.mxu0 %v1779
    %v2025 = vpop.f32.mrf.mxu0
    %v2026 = vadd.f32 0.0, %v2025
    %v2027 = vpop.f32.mrf.mxu0
    %v2028 = vadd.f32 0.0, %v2027
    %2029 = vdwg.mxu0
    %2030 = vmatpush.bf16.msra.mxu0 %v1938
    %2031 = vmatpush.bf16.msra.mxu0 %v1934
    %2032 = vmatpush.bf16.msra.mxu0 %v1930
    %2033 = vmatpush.bf16.msra.mxu0 %v1926
    %2034 = vmatpush.bf16.msra.mxu0 %v1922
    %2035 = vmatpush.bf16.msra.mxu0 %v1918
    %2036 = vmatpush.bf16.msra.mxu0 %v1914
    %2037 = vmatpush.bf16.msra.mxu0 %v1910
    %2038 = vmatmul.bf16.gmra.mxu0 %v1776
    %v2039 = vpop.f32.mrf.mxu0
    %v2040 = vadd.f32 0.0, %v2039
    %v2041 = vpop.f32.mrf.mxu0
    %v2042 = vadd.f32 0.0, %v2041
    %2043 = vmatmul.bf16.gmra.mxu0 %v1777
    %v2044 = vpop.f32.mrf.mxu0
    %v2045 = vadd.f32 0.0, %v2044
    %v2046 = vpop.f32.mrf.mxu0
    %v2047 = vadd.f32 0.0, %v2046
    %2048 = vmatmul.bf16.gmra.mxu0 %v1778
    %v2049 = vpop.f32.mrf.mxu0
    %v2050 = vadd.f32 0.0, %v2049
    %v2051 = vpop.f32.mrf.mxu0
    %v2052 = vadd.f32 0.0, %v2051
    %2053 = vmatmul.bf16.gmra.mxu0 %v1779
    %v2054 = vpop.f32.mrf.mxu0
    %v2055 = vadd.f32 0.0, %v2054
    %v2056 = vpop.f32.mrf.mxu0
    %v2057 = vadd.f32 0.0, %v2056
    %2058 = vdwg.mxu0
    %2059 = vmatpush.bf16.msra.mxu0 %v1939
    %2060 = vmatpush.bf16.msra.mxu0 %v1935
    %2061 = vmatpush.bf16.msra.mxu0 %v1931
    %2062 = vmatpush.bf16.msra.mxu0 %v1927
    %2063 = vmatpush.bf16.msra.mxu0 %v1923
    %2064 = vmatpush.bf16.msra.mxu0 %v1919
    %2065 = vmatpush.bf16.msra.mxu0 %v1915
    %2066 = vmatpush.bf16.msra.mxu0 %v1911
    %2067 = vmatmul.bf16.gmra.mxu0 %v1776
    %v2068 = vpop.f32.mrf.mxu0
    %v2069 = vadd.f32 0.0, %v2068
    %v2070 = vpop.f32.mrf.mxu0
    %v2071 = vadd.f32 0.0, %v2070
    %2072 = vmatmul.bf16.gmra.mxu0 %v1777
    %v2073 = vpop.f32.mrf.mxu0
    %v2074 = vadd.f32 0.0, %v2073
    %v2075 = vpop.f32.mrf.mxu0
    %v2076 = vadd.f32 0.0, %v2075
    %2077 = vmatmul.bf16.gmra.mxu0 %v1778
    %v2078 = vpop.f32.mrf.mxu0
    %v2079 = vadd.f32 0.0, %v2078
    %v2080 = vpop.f32.mrf.mxu0
    %v2081 = vadd.f32 0.0, %v2080
    %2082 = vmatmul.bf16.gmra.mxu0 %v1779
    %v2083 = vpop.f32.mrf.mxu0
    %v2084 = vadd.f32 0.0, %v2083
    %v2085 = vpop.f32.mrf.mxu0
    %v2086 = vadd.f32 0.0, %v2085
    %2087 = vdwg.mxu0
    %v2088 = vld [vmem:[%s6] sm:$0xf]
    %v2090 = vperm.slane %v2088, 0
    %v2091 = vperm.slane %v2088, 1
    %v2092 = vperm.slane %v2088, 2
    %v2093 = vperm.slane %v2088, 3
    %v2098 = vadd.f32 %v1982, %v2090
    %v2099 = vadd.f32 %v2011, %v2091
    %v2100 = vadd.f32 %v2040, %v2092
    %v2101 = vadd.f32 %v2069, %v2093
    %v2102 = vadd.f32 %v1984, %v2090
    %v2103 = vadd.f32 %v2013, %v2091
    %v2104 = vadd.f32 %v2042, %v2092
    %v2105 = vadd.f32 %v2071, %v2093
    %v2106 = vadd.f32 %v1987, %v2090
    %v2107 = vadd.f32 %v2016, %v2091
    %v2108 = vadd.f32 %v2045, %v2092
    %v2109 = vadd.f32 %v2074, %v2093
    %v2110 = vadd.f32 %v1989, %v2090
    %v2111 = vadd.f32 %v2018, %v2091
    %v2112 = vadd.f32 %v2047, %v2092
    %v2113 = vadd.f32 %v2076, %v2093
    %v2114 = vadd.f32 %v1992, %v2090
    %v2115 = vadd.f32 %v2021, %v2091
    %v2116 = vadd.f32 %v2050, %v2092
    %v2117 = vadd.f32 %v2079, %v2093
    %v2118 = vadd.f32 %v1994, %v2090
    %v2119 = vadd.f32 %v2023, %v2091
    %v2120 = vadd.f32 %v2052, %v2092
    %v2121 = vadd.f32 %v2081, %v2093
    %v2122 = vadd.f32 %v1997, %v2090
    %v2123 = vadd.f32 %v2026, %v2091
    %v2124 = vadd.f32 %v2055, %v2092
    %v2125 = vadd.f32 %v2084, %v2093
    %v2126 = vadd.f32 %v1999, %v2090
    %v2127 = vadd.f32 %v2028, %v2091
    %v2128 = vadd.f32 %v2057, %v2092
    %v2129 = vadd.f32 %v2086, %v2093
    %2130 = vst [vmem:[#allocation2] sm:$0xff] %v2098
    %2131 = vst [vmem:[#allocation2 + $0x8] sm:$0xff] %v2099
    %2132 = vst [vmem:[#allocation2 + $0x10] sm:$0xff] %v2100
    %2133 = vst [vmem:[#allocation2 + $0x18] sm:$0xff] %v2101
    %2134 = vst [vmem:[#allocation2 + $0x20] sm:$0xff] %v2102
    %2135 = vst [vmem:[#allocation2 + $0x28] sm:$0xff] %v2103
    %2136 = vst [vmem:[#allocation2 + $0x30] sm:$0xff] %v2104
    %2137 = vst [vmem:[#allocation2 + $0x38] sm:$0xff] %v2105
    %2138 = vst [vmem:[#allocation2 + $0x40] sm:$0xff] %v2106
    %2139 = vst [vmem:[#allocation2 + $0x48] sm:$0xff] %v2107
    %2140 = vst [vmem:[#allocation2 + $0x50] sm:$0xff] %v2108
    %2141 = vst [vmem:[#allocation2 + $0x58] sm:$0xff] %v2109
    %2142 = vst [vmem:[#allocation2 + $0x60] sm:$0xff] %v2110
    %2143 = vst [vmem:[#allocation2 + $0x68] sm:$0xff] %v2111
    %2144 = vst [vmem:[#allocation2 + $0x70] sm:$0xff] %v2112
    %2145 = vst [vmem:[#allocation2 + $0x78] sm:$0xff] %v2113
    %2146 = vst [vmem:[#allocation2 + $0x80] sm:$0xff] %v2114
    %2147 = vst [vmem:[#allocation2 + $0x88] sm:$0xff] %v2115
    %2148 = vst [vmem:[#allocation2 + $0x90] sm:$0xff] %v2116
    %2149 = vst [vmem:[#allocation2 + $0x98] sm:$0xff] %v2117
    %2150 = vst [vmem:[#allocation2 + $0xa0] sm:$0xff] %v2118
    %2151 = vst [vmem:[#allocation2 + $0xa8] sm:$0xff] %v2119
    %2152 = vst [vmem:[#allocation2 + $0xb0] sm:$0xff] %v2120
    %2153 = vst [vmem:[#allocation2 + $0xb8] sm:$0xff] %v2121
    %2154 = vst [vmem:[#allocation2 + $0xc0] sm:$0xff] %v2122
    %2155 = vst [vmem:[#allocation2 + $0xc8] sm:$0xff] %v2123
    %2156 = vst [vmem:[#allocation2 + $0xd0] sm:$0xff] %v2124
    %2157 = vst [vmem:[#allocation2 + $0xd8] sm:$0xff] %v2125
    %2158 = vst [vmem:[#allocation2 + $0xe0] sm:$0xff] %v2126
    %2159 = vst [vmem:[#allocation2 + $0xe8] sm:$0xff] %v2127
    %2160 = vst [vmem:[#allocation2 + $0xf0] sm:$0xff] %v2128
    %2161 = vst [vmem:[#allocation2 + $0xf8] sm:$0xff] %v2129
    %v2162 = vld [vmem:[#allocation13] sm:$0xff]
    %v2163 = vld [vmem:[#allocation13 + $0x8] sm:$0xff]
    %v2164 = vld [vmem:[#allocation13 + $0x10] sm:$0xff]
    %v2165 = vld [vmem:[#allocation13 + $0x18] sm:$0xff]
    %v2166 = vld [vmem:[#allocation13 + $0x20] sm:$0xff]
    %v2167 = vld [vmem:[#allocation13 + $0x28] sm:$0xff]
    %v2168 = vld [vmem:[#allocation13 + $0x30] sm:$0xff]
    %v2169 = vld [vmem:[#allocation13 + $0x38] sm:$0xff]
    %v2170 = vld [vmem:[#allocation13 + $0x40] sm:$0xff]
    %v2171 = vld [vmem:[#allocation13 + $0x48] sm:$0xff]
    %v2172 = vld [vmem:[#allocation13 + $0x50] sm:$0xff]
    %v2173 = vld [vmem:[#allocation13 + $0x58] sm:$0xff]
    %v2174 = vld [vmem:[#allocation13 + $0x60] sm:$0xff]
    %v2175 = vld [vmem:[#allocation13 + $0x68] sm:$0xff]
    %v2176 = vld [vmem:[#allocation13 + $0x70] sm:$0xff]
    %v2177 = vld [vmem:[#allocation13 + $0x78] sm:$0xff]
    %v2178 = vld [vmem:[#allocation13 + $0x80] sm:$0xff]
    %v2179 = vld [vmem:[#allocation13 + $0x88] sm:$0xff]
    %v2180 = vld [vmem:[#allocation13 + $0x90] sm:$0xff]
    %v2181 = vld [vmem:[#allocation13 + $0x98] sm:$0xff]
    %v2182 = vld [vmem:[#allocation13 + $0xa0] sm:$0xff]
    %v2183 = vld [vmem:[#allocation13 + $0xa8] sm:$0xff]
    %v2184 = vld [vmem:[#allocation13 + $0xb0] sm:$0xff]
    %v2185 = vld [vmem:[#allocation13 + $0xb8] sm:$0xff]
    %v2186 = vld [vmem:[#allocation13 + $0xc0] sm:$0xff]
    %v2187 = vld [vmem:[#allocation13 + $0xc8] sm:$0xff]
    %v2188 = vld [vmem:[#allocation13 + $0xd0] sm:$0xff]
    %v2189 = vld [vmem:[#allocation13 + $0xd8] sm:$0xff]
    %v2190 = vld [vmem:[#allocation13 + $0xe0] sm:$0xff]
    %v2191 = vld [vmem:[#allocation13 + $0xe8] sm:$0xff]
    %v2192 = vld [vmem:[#allocation13 + $0xf0] sm:$0xff]
    %v2193 = vld [vmem:[#allocation13 + $0xf8] sm:$0xff]
    %v2194 = vld [vmem:[#allocation2] sm:$0xff]
    %v2195 = vld [vmem:[#allocation2 + $0x8] sm:$0xff]
    %v2196 = vld [vmem:[#allocation2 + $0x10] sm:$0xff]
    %v2197 = vld [vmem:[#allocation2 + $0x18] sm:$0xff]
    %v2230 = vunpack.c.l.b16 %v2162
    %v2231 = vunpack.c.h.b16 %v2162
    %v2232 = vunpack.c.l.b16 %v2163
    %v2233 = vunpack.c.h.b16 %v2163
    %v2234 = vunpack.c.l.b16 %v2164
    %v2235 = vunpack.c.h.b16 %v2164
    %v2236 = vunpack.c.l.b16 %v2165
    %v2237 = vunpack.c.h.b16 %v2165
    %v2238 = vunpack.c.l.b16 %v2166
    %v2239 = vunpack.c.h.b16 %v2166
    %v2240 = vunpack.c.l.b16 %v2167
    %v2241 = vunpack.c.h.b16 %v2167
    %v2242 = vunpack.c.l.b16 %v2168
    %v2243 = vunpack.c.h.b16 %v2168
    %v2244 = vunpack.c.l.b16 %v2169
    %v2245 = vunpack.c.h.b16 %v2169
    %v2246 = vunpack.c.l.b16 %v2170
    %v2247 = vunpack.c.h.b16 %v2170
    %v2248 = vunpack.c.l.b16 %v2171
    %v2249 = vunpack.c.h.b16 %v2171
    %v2250 = vunpack.c.l.b16 %v2172
    %v2251 = vunpack.c.h.b16 %v2172
    %v2252 = vunpack.c.l.b16 %v2173
    %v2253 = vunpack.c.h.b16 %v2173
    %v2254 = vunpack.c.l.b16 %v2174
    %v2255 = vunpack.c.h.b16 %v2174
    %v2256 = vunpack.c.l.b16 %v2175
    %v2257 = vunpack.c.h.b16 %v2175
    %v2258 = vunpack.c.l.b16 %v2176
    %v2259 = vunpack.c.h.b16 %v2176
    %v2260 = vunpack.c.l.b16 %v2177
    %v2261 = vunpack.c.h.b16 %v2177
    %v2262 = vunpack.c.l.b16 %v2178
    %v2263 = vunpack.c.h.b16 %v2178
    %v2264 = vunpack.c.l.b16 %v2179
    %v2265 = vunpack.c.h.b16 %v2179
    %v2266 = vunpack.c.l.b16 %v2180
    %v2267 = vunpack.c.h.b16 %v2180
    %v2268 = vunpack.c.l.b16 %v2181
    %v2269 = vunpack.c.h.b16 %v2181
    %v2270 = vunpack.c.l.b16 %v2182
    %v2271 = vunpack.c.h.b16 %v2182
    %v2272 = vunpack.c.l.b16 %v2183
    %v2273 = vunpack.c.h.b16 %v2183
    %v2274 = vunpack.c.l.b16 %v2184
    %v2275 = vunpack.c.h.b16 %v2184
    %v2276 = vunpack.c.l.b16 %v2185
    %v2277 = vunpack.c.h.b16 %v2185
    %v2278 = vunpack.c.l.b16 %v2186
    %v2279 = vunpack.c.h.b16 %v2186
    %v2280 = vunpack.c.l.b16 %v2187
    %v2281 = vunpack.c.h.b16 %v2187
    %v2282 = vunpack.c.l.b16 %v2188
    %v2283 = vunpack.c.h.b16 %v2188
    %v2284 = vunpack.c.l.b16 %v2189
    %v2285 = vunpack.c.h.b16 %v2189
    %v2286 = vunpack.c.l.b16 %v2190
    %v2287 = vunpack.c.h.b16 %v2190
    %v2288 = vunpack.c.l.b16 %v2191
    %v2289 = vunpack.c.h.b16 %v2191
    %v2290 = vunpack.c.l.b16 %v2192
    %v2291 = vunpack.c.h.b16 %v2192
    %v2292 = vunpack.c.l.b16 %v2193
    %v2293 = vunpack.c.h.b16 %v2193
    %v2294 = vpack.c.b16 %v2234, %v2230
    %v2295 = vpack.c.b16 %v2235, %v2231
    %v2296 = vpack.c.b16 %v2236, %v2232
    %v2297 = vpack.c.b16 %v2237, %v2233
    %v2298 = vpack.c.b16 %v2242, %v2238
    %v2299 = vpack.c.b16 %v2243, %v2239
    %v2300 = vpack.c.b16 %v2244, %v2240
    %v2301 = vpack.c.b16 %v2245, %v2241
    %v2302 = vpack.c.b16 %v2250, %v2246
    %v2303 = vpack.c.b16 %v2251, %v2247
    %v2304 = vpack.c.b16 %v2252, %v2248
    %v2305 = vpack.c.b16 %v2253, %v2249
    %v2306 = vpack.c.b16 %v2258, %v2254
    %v2307 = vpack.c.b16 %v2259, %v2255
    %v2308 = vpack.c.b16 %v2260, %v2256
    %v2309 = vpack.c.b16 %v2261, %v2257
    %v2310 = vpack.c.b16 %v2266, %v2262
    %v2311 = vpack.c.b16 %v2267, %v2263
    %v2312 = vpack.c.b16 %v2268, %v2264
    %v2313 = vpack.c.b16 %v2269, %v2265
    %v2314 = vpack.c.b16 %v2274, %v2270
    %v2315 = vpack.c.b16 %v2275, %v2271
    %v2316 = vpack.c.b16 %v2276, %v2272
    %v2317 = vpack.c.b16 %v2277, %v2273
    %v2318 = vpack.c.b16 %v2282, %v2278
    %v2319 = vpack.c.b16 %v2283, %v2279
    %v2320 = vpack.c.b16 %v2284, %v2280
    %v2321 = vpack.c.b16 %v2285, %v2281
    %v2322 = vpack.c.b16 %v2290, %v2286
    %v2323 = vpack.c.b16 %v2291, %v2287
    %v2324 = vpack.c.b16 %v2292, %v2288
    %v2325 = vpack.c.b16 %v2293, %v2289
    %2358 = vmatpush.bf16.msra.mxu0 %v2322
    %2359 = vmatpush.bf16.msra.mxu0 %v2318
    %2360 = vmatpush.bf16.msra.mxu0 %v2314
    %2361 = vmatpush.bf16.msra.mxu0 %v2310
    %2362 = vmatpush.bf16.msra.mxu0 %v2306
    %2363 = vmatpush.bf16.msra.mxu0 %v2302
    %2364 = vmatpush.bf16.msra.mxu0 %v2298
    %2365 = vmatpush.bf16.msra.mxu0 %v2294
    %2366 = vmatmul.bf16.gmra.mxu0 0
    %v2367 = vpop.f32.mrf.mxu0
    %v2368 = vadd.f32 0.0, %v2367
    %v2369 = vpop.f32.mrf.mxu0
    %2370 = vdwg.mxu0
    %2371 = vmatpush.bf16.msra.mxu0 %v2323
    %2372 = vmatpush.bf16.msra.mxu0 %v2319
    %2373 = vmatpush.bf16.msra.mxu0 %v2315
    %2374 = vmatpush.bf16.msra.mxu0 %v2311
    %2375 = vmatpush.bf16.msra.mxu0 %v2307
    %2376 = vmatpush.bf16.msra.mxu0 %v2303
    %2377 = vmatpush.bf16.msra.mxu0 %v2299
    %2378 = vmatpush.bf16.msra.mxu0 %v2295
    %2379 = vmatmul.bf16.gmra.mxu0 0
    %v2380 = vpop.f32.mrf.mxu0
    %v2381 = vadd.f32 0.0, %v2380
    %v2382 = vpop.f32.mrf.mxu0
    %2383 = vdwg.mxu0
    %2384 = vmatpush.bf16.msra.mxu0 %v2324
    %2385 = vmatpush.bf16.msra.mxu0 %v2320
    %2386 = vmatpush.bf16.msra.mxu0 %v2316
    %2387 = vmatpush.bf16.msra.mxu0 %v2312
    %2388 = vmatpush.bf16.msra.mxu0 %v2308
    %2389 = vmatpush.bf16.msra.mxu0 %v2304
    %2390 = vmatpush.bf16.msra.mxu0 %v2300
    %2391 = vmatpush.bf16.msra.mxu0 %v2296
    %2392 = vmatmul.bf16.gmra.mxu0 0
    %v2393 = vpop.f32.mrf.mxu0
    %v2394 = vadd.f32 0.0, %v2393
    %v2395 = vpop.f32.mrf.mxu0
    %2396 = vdwg.mxu0
    %2397 = vmatpush.bf16.msra.mxu0 %v2325
    %2398 = vmatpush.bf16.msra.mxu0 %v2321
    %2399 = vmatpush.bf16.msra.mxu0 %v2317
    %2400 = vmatpush.bf16.msra.mxu0 %v2313
    %2401 = vmatpush.bf16.msra.mxu0 %v2309
    %2402 = vmatpush.bf16.msra.mxu0 %v2305
    %2403 = vmatpush.bf16.msra.mxu0 %v2301
    %2404 = vmatpush.bf16.msra.mxu0 %v2297
    %2405 = vmatmul.bf16.gmra.mxu0 0
    %v2406 = vpop.f32.mrf.mxu0
    %v2407 = vadd.f32 0.0, %v2406
    %v2408 = vpop.f32.mrf.mxu0
    %2409 = vdwg.mxu0
    %v2410 = vadd.f32 %v2194, %v2368
    %v2411 = vadd.f32 %v2195, %v2381
    %v2412 = vadd.f32 %v2196, %v2394
    %v2413 = vadd.f32 %v2197, %v2407
    %v2414 = vxor.u32 %v2410, 2147483648
    %v2415 = vxor.u32 %v2411, 2147483648
    %v2416 = vxor.u32 %v2413, 2147483648
    %v2417 = vmul.f32 %v2414, 1.442695
    %v2418 = vpow.pop %v2417
    %v2419 = vmul.f32 %v2415, 1.442695
    %v2420 = vpow.pop %v2419
    %v2421 = vmul.f32 %v2416, 1.442695
    %v2422 = vpow.pop %v2421
    %v2423 = vadd.f32 %v2418, 1.0
    %v2424 = vadd.f32 %v2420, 1.0
    %v2425 = vadd.f32 %v2422, 1.0
    %v2426 = vrcp.pop %v2423
    %v2427 = vmul.f32 %v2423, %v2426
    %v2428 = vsub.f32 1.0, %v2427
    %v2429 = vmul.f32 %v2426, %v2428
    %v2430 = vadd.f32 %v2426, %v2429
    %vm2431 = vweird.f32 %v2423
    %vm2432 = vweird.f32 %v2426
    %vm2433 = vmor %vm2431, %vm2432
    %v2434 = vsel %vm2433, %v2426, %v2430
    %v2435 = vand.u32 2147483647, %v2423
    %vm2436 = vcmp.eq.f32.partialorder %v2435, 8.507059e+37
    %v2437 = vand.u32 %v2423, 2147483648
    %v2438 = vor.u32 1.1754944e-38, %v2437
    %v2439 = vsel %vm2436, %v2438, %v2434
    %v2440 = vmul.f32 1.0, %v2439
    %v2441 = vrcp.pop %v2424
    %v2442 = vmul.f32 %v2424, %v2441
    %v2443 = vsub.f32 1.0, %v2442
    %v2444 = vmul.f32 %v2441, %v2443
    %v2445 = vadd.f32 %v2441, %v2444
    %vm2446 = vweird.f32 %v2424
    %vm2447 = vweird.f32 %v2441
    %vm2448 = vmor %vm2446, %vm2447
    %v2449 = vsel %vm2448, %v2441, %v2445
    %v2450 = vand.u32 2147483647, %v2424
    %vm2451 = vcmp.eq.f32.partialorder %v2450, 8.507059e+37
    %v2452 = vand.u32 %v2424, 2147483648
    %v2453 = vor.u32 1.1754944e-38, %v2452
    %v2454 = vsel %vm2451, %v2453, %v2449
    %v2455 = vmul.f32 1.0, %v2454
    %v2456 = vrcp.pop %v2425
    %v2457 = vmul.f32 %v2425, %v2456
    %v2458 = vsub.f32 1.0, %v2457
    %v2459 = vmul.f32 %v2456, %v2458
    %v2460 = vadd.f32 %v2456, %v2459
    %vm2461 = vweird.f32 %v2425
    %vm2462 = vweird.f32 %v2456
    %vm2463 = vmor %vm2461, %vm2462
    %v2464 = vsel %vm2463, %v2456, %v2460
    %v2465 = vand.u32 2147483647, %v2425
    %vm2466 = vcmp.eq.f32.partialorder %v2465, 8.507059e+37
    %v2467 = vand.u32 %v2425, 2147483648
    %v2468 = vor.u32 1.1754944e-38, %v2467
    %v2469 = vsel %vm2466, %v2468, %v2464
    %v2470 = vmul.f32 1.0, %v2469
    %v2471 = vtanh.pop %v2412
    %v2472 = vmul.f32 %v2455, 0.0
    %v2473 = vmul.f32 %v2440, %v2471
    %v2474 = vadd.f32 %v2472, %v2473
    %v2475 = vtanh.pop %v2474
    %v2476 = vmul.f32 %v2470, %v2475
    %v2477 = vld [vmem:[%s879] sm:$0xff]
    %v2478 = vld [vmem:[%s879 + $0x8] sm:$0xff]
    %v2479 = vld [vmem:[%s879 + $0x10] sm:$0xff]
    %v2480 = vld [vmem:[%s879 + $0x18] sm:$0xff]
    %v2481 = vpack.c.bf16 %v2476, %v2476
    %2482 = vmatpush.bf16.msra.mxu0 %v2322
    %2483 = vmatpush.bf16.msra.mxu0 %v2318
    %2484 = vmatpush.bf16.msra.mxu0 %v2314
    %2485 = vmatpush.bf16.msra.mxu0 %v2310
    %2486 = vmatpush.bf16.msra.mxu0 %v2306
    %2487 = vmatpush.bf16.msra.mxu0 %v2302
    %2488 = vmatpush.bf16.msra.mxu0 %v2298
    %2489 = vmatpush.bf16.msra.mxu0 %v2294
    %2490 = vmatmul.bf16.gmra.mxu0 %v2481
    %v2491 = vpop.f32.mrf.mxu0
    %v2492 = vadd.f32 0.0, %v2491
    %v2493 = vpop.f32.mrf.mxu0
    %2494 = vdwg.mxu0
    %2495 = vmatpush.bf16.msra.mxu0 %v2323
    %2496 = vmatpush.bf16.msra.mxu0 %v2319
    %2497 = vmatpush.bf16.msra.mxu0 %v2315
    %2498 = vmatpush.bf16.msra.mxu0 %v2311
    %2499 = vmatpush.bf16.msra.mxu0 %v2307
    %2500 = vmatpush.bf16.msra.mxu0 %v2303
    %2501 = vmatpush.bf16.msra.mxu0 %v2299
    %2502 = vmatpush.bf16.msra.mxu0 %v2295
    %2503 = vmatmul.bf16.gmra.mxu0 %v2481
    %v2504 = vpop.f32.mrf.mxu0
    %v2505 = vadd.f32 0.0, %v2504
    %v2506 = vpop.f32.mrf.mxu0
    %2507 = vdwg.mxu0
    %2508 = vmatpush.bf16.msra.mxu0 %v2324
    %2509 = vmatpush.bf16.msra.mxu0 %v2320
    %2510 = vmatpush.bf16.msra.mxu0 %v2316
    %2511 = vmatpush.bf16.msra.mxu0 %v2312
    %2512 = vmatpush.bf16.msra.mxu0 %v2308
    %2513 = vmatpush.bf16.msra.mxu0 %v2304
    %2514 = vmatpush.bf16.msra.mxu0 %v2300
    %2515 = vmatpush.bf16.msra.mxu0 %v2296
    %2516 = vmatmul.bf16.gmra.mxu0 %v2481
    %v2517 = vpop.f32.mrf.mxu0
    %v2518 = vadd.f32 0.0, %v2517
    %v2519 = vpop.f32.mrf.mxu0
    %2520 = vdwg.mxu0
    %2521 = vmatpush.bf16.msra.mxu0 %v2325
    %2522 = vmatpush.bf16.msra.mxu0 %v2321
    %2523 = vmatpush.bf16.msra.mxu0 %v2317
    %2524 = vmatpush.bf16.msra.mxu0 %v2313
    %2525 = vmatpush.bf16.msra.mxu0 %v2309
    %2526 = vmatpush.bf16.msra.mxu0 %v2305
    %2527 = vmatpush.bf16.msra.mxu0 %v2301
    %2528 = vmatpush.bf16.msra.mxu0 %v2297
    %2529 = vmatmul.bf16.gmra.mxu0 %v2481
    %v2530 = vpop.f32.mrf.mxu0
    %v2531 = vadd.f32 0.0, %v2530
    %v2532 = vpop.f32.mrf.mxu0
    %2533 = vdwg.mxu0
    %v2534 = vadd.f32 %v2477, %v2492
    %v2535 = vadd.f32 %v2478, %v2505
    %v2536 = vadd.f32 %v2479, %v2518
    %v2537 = vadd.f32 %v2480, %v2531
    %v2538 = vxor.u32 %v2534, 2147483648
    %v2539 = vxor.u32 %v2535, 2147483648
    %v2540 = vxor.u32 %v2537, 2147483648
    %v2541 = vmul.f32 %v2538, 1.442695
    %v2542 = vpow.pop %v2541
    %v2543 = vmul.f32 %v2539, 1.442695
    %v2544 = vpow.pop %v2543
    %v2545 = vmul.f32 %v2540, 1.442695
    %v2546 = vpow.pop %v2545
    %v2547 = vadd.f32 %v2542, 1.0
    %v2548 = vadd.f32 %v2544, 1.0
    %v2549 = vadd.f32 %v2546, 1.0
    %v2550 = vrcp.pop %v2547
    %v2551 = vmul.f32 %v2547, %v2550
    %v2552 = vsub.f32 1.0, %v2551
    %v2553 = vmul.f32 %v2550, %v2552
    %v2554 = vadd.f32 %v2550, %v2553
    %vm2555 = vweird.f32 %v2547
    %vm2556 = vweird.f32 %v2550
    %vm2557 = vmor %vm2555, %vm2556
    %v2558 = vsel %vm2557, %v2550, %v2554
    %v2559 = vand.u32 2147483647, %v2547
    %vm2560 = vcmp.eq.f32.partialorder %v2559, 8.507059e+37
    %v2561 = vand.u32 %v2547, 2147483648
    %v2562 = vor.u32 1.1754944e-38, %v2561
    %v2563 = vsel %vm2560, %v2562, %v2558
    %v2564 = vmul.f32 1.0, %v2563
    %v2565 = vrcp.pop %v2548
    %v2566 = vmul.f32 %v2548, %v2565
    %v2567 = vsub.f32 1.0, %v2566
    %v2568 = vmul.f32 %v2565, %v2567
    %v2569 = vadd.f32 %v2565, %v2568
    %vm2570 = vweird.f32 %v2548
    %vm2571 = vweird.f32 %v2565
    %vm2572 = vmor %vm2570, %vm2571
    %v2573 = vsel %vm2572, %v2565, %v2569
    %v2574 = vand.u32 2147483647, %v2548
    %vm2575 = vcmp.eq.f32.partialorder %v2574, 8.507059e+37
    %v2576 = vand.u32 %v2548, 2147483648
    %v2577 = vor.u32 1.1754944e-38, %v2576
    %v2578 = vsel %vm2575, %v2577, %v2573
    %v2579 = vmul.f32 1.0, %v2578
    %v2580 = vrcp.pop %v2549
    %v2581 = vmul.f32 %v2549, %v2580
    %v2582 = vsub.f32 1.0, %v2581
    %v2583 = vmul.f32 %v2580, %v2582
    %v2584 = vadd.f32 %v2580, %v2583
    %vm2585 = vweird.f32 %v2549
    %vm2586 = vweird.f32 %v2580
    %vm2587 = vmor %vm2585, %vm2586
    %v2588 = vsel %vm2587, %v2580, %v2584
    %v2589 = vand.u32 2147483647, %v2549
    %vm2590 = vcmp.eq.f32.partialorder %v2589, 8.507059e+37
    %v2591 = vand.u32 %v2549, 2147483648
    %v2592 = vor.u32 1.1754944e-38, %v2591
    %v2593 = vsel %vm2590, %v2592, %v2588
    %v2594 = vmul.f32 1.0, %v2593
    %v2595 = vtanh.pop %v2536
    %v2596 = vmul.f32 %v2579, %v2474
    %v2597 = vmul.f32 %v2564, %v2595
    %v2598 = vadd.f32 %v2596, %v2597
    %v2599 = vtanh.pop %v2598
    %v2600 = vmul.f32 %v2594, %v2599
    %v2601 = vld [vmem:[%s1006] sm:$0xff]
    %v2602 = vld [vmem:[%s1006 + $0x8] sm:$0xff]
    %v2603 = vld [vmem:[%s1006 + $0x10] sm:$0xff]
    %v2604 = vld [vmem:[%s1006 + $0x18] sm:$0xff]
    %v2605 = vpack.c.bf16 %v2600, %v2600
    %2606 = vmatpush.bf16.msra.mxu0 %v2322
    %2607 = vmatpush.bf16.msra.mxu0 %v2318
    %2608 = vmatpush.bf16.msra.mxu0 %v2314
    %2609 = vmatpush.bf16.msra.mxu0 %v2310
    %2610 = vmatpush.bf16.msra.mxu0 %v2306
    %2611 = vmatpush.bf16.msra.mxu0 %v2302
    %2612 = vmatpush.bf16.msra.mxu0 %v2298
    %2613 = vmatpush.bf16.msra.mxu0 %v2294
    %2614 = vmatmul.bf16.gmra.mxu0 %v2605
    %v2615 = vpop.f32.mrf.mxu0
    %v2616 = vadd.f32 0.0, %v2615
    %v2617 = vpop.f32.mrf.mxu0
    %2618 = vdwg.mxu0
    %2619 = vmatpush.bf16.msra.mxu0 %v2323
    %2620 = vmatpush.bf16.msra.mxu0 %v2319
    %2621 = vmatpush.bf16.msra.mxu0 %v2315
    %2622 = vmatpush.bf16.msra.mxu0 %v2311
    %2623 = vmatpush.bf16.msra.mxu0 %v2307
    %2624 = vmatpush.bf16.msra.mxu0 %v2303
    %2625 = vmatpush.bf16.msra.mxu0 %v2299
    %2626 = vmatpush.bf16.msra.mxu0 %v2295
    %2627 = vmatmul.bf16.gmra.mxu0 %v2605
    %v2628 = vpop.f32.mrf.mxu0
    %v2629 = vadd.f32 0.0, %v2628
    %v2630 = vpop.f32.mrf.mxu0
    %2631 = vdwg.mxu0
    %2632 = vmatpush.bf16.msra.mxu0 %v2324
    %2633 = vmatpush.bf16.msra.mxu0 %v2320
    %2634 = vmatpush.bf16.msra.mxu0 %v2316
    %2635 = vmatpush.bf16.msra.mxu0 %v2312
    %2636 = vmatpush.bf16.msra.mxu0 %v2308
    %2637 = vmatpush.bf16.msra.mxu0 %v2304
    %2638 = vmatpush.bf16.msra.mxu0 %v2300
    %2639 = vmatpush.bf16.msra.mxu0 %v2296
    %2640 = vmatmul.bf16.gmra.mxu0 %v2605
    %v2641 = vpop.f32.mrf.mxu0
    %v2642 = vadd.f32 0.0, %v2641
    %v2643 = vpop.f32.mrf.mxu0
    %2644 = vdwg.mxu0
    %2645 = vmatpush.bf16.msra.mxu0 %v2325
    %2646 = vmatpush.bf16.msra.mxu0 %v2321
    %2647 = vmatpush.bf16.msra.mxu0 %v2317
    %2648 = vmatpush.bf16.msra.mxu0 %v2313
    %2649 = vmatpush.bf16.msra.mxu0 %v2309
    %2650 = vmatpush.bf16.msra.mxu0 %v2305
    %2651 = vmatpush.bf16.msra.mxu0 %v2301
    %2652 = vmatpush.bf16.msra.mxu0 %v2297
    %2653 = vmatmul.bf16.gmra.mxu0 %v2605
    %v2654 = vpop.f32.mrf.mxu0
    %v2655 = vadd.f32 0.0, %v2654
    %v2656 = vpop.f32.mrf.mxu0
    %2657 = vdwg.mxu0
    %v2658 = vadd.f32 %v2601, %v2616
    %v2659 = vadd.f32 %v2602, %v2629
    %v2660 = vadd.f32 %v2603, %v2642
    %v2661 = vadd.f32 %v2604, %v2655
    %v2662 = vxor.u32 %v2658, 2147483648
    %v2663 = vxor.u32 %v2659, 2147483648
    %v2664 = vxor.u32 %v2661, 2147483648
    %v2665 = vmul.f32 %v2662, 1.442695
    %v2666 = vpow.pop %v2665
    %v2667 = vmul.f32 %v2663, 1.442695
    %v2668 = vpow.pop %v2667
    %v2669 = vmul.f32 %v2664, 1.442695
    %v2670 = vpow.pop %v2669
    %v2671 = vadd.f32 %v2666, 1.0
    %v2672 = vadd.f32 %v2668, 1.0
    %v2673 = vadd.f32 %v2670, 1.0
    %v2674 = vrcp.pop %v2671
    %v2675 = vmul.f32 %v2671, %v2674
    %v2676 = vsub.f32 1.0, %v2675
    %v2677 = vmul.f32 %v2674, %v2676
    %v2678 = vadd.f32 %v2674, %v2677
    %vm2679 = vweird.f32 %v2671
    %vm2680 = vweird.f32 %v2674
    %vm2681 = vmor %vm2679, %vm2680
    %v2682 = vsel %vm2681, %v2674, %v2678
    %v2683 = vand.u32 2147483647, %v2671
    %vm2684 = vcmp.eq.f32.partialorder %v2683, 8.507059e+37
    %v2685 = vand.u32 %v2671, 2147483648
    %v2686 = vor.u32 1.1754944e-38, %v2685
    %v2687 = vsel %vm2684, %v2686, %v2682
    %v2688 = vmul.f32 1.0, %v2687
    %v2689 = vrcp.pop %v2672
    %v2690 = vmul.f32 %v2672, %v2689
    %v2691 = vsub.f32 1.0, %v2690
    %v2692 = vmul.f32 %v2689, %v2691
    %v2693 = vadd.f32 %v2689, %v2692
    %vm2694 = vweird.f32 %v2672
    %vm2695 = vweird.f32 %v2689
    %vm2696 = vmor %vm2694, %vm2695
    %v2697 = vsel %vm2696, %v2689, %v2693
    %v2698 = vand.u32 2147483647, %v2672
    %vm2699 = vcmp.eq.f32.partialorder %v2698, 8.507059e+37
    %v2700 = vand.u32 %v2672, 2147483648
    %v2701 = vor.u32 1.1754944e-38, %v2700
    %v2702 = vsel %vm2699, %v2701, %v2697
    %v2703 = vmul.f32 1.0, %v2702
    %v2704 = vrcp.pop %v2673
    %v2705 = vmul.f32 %v2673, %v2704
    %v2706 = vsub.f32 1.0, %v2705
    %v2707 = vmul.f32 %v2704, %v2706
    %v2708 = vadd.f32 %v2704, %v2707
    %vm2709 = vweird.f32 %v2673
    %vm2710 = vweird.f32 %v2704
    %vm2711 = vmor %vm2709, %vm2710
    %v2712 = vsel %vm2711, %v2704, %v2708
    %v2713 = vand.u32 2147483647, %v2673
    %vm2714 = vcmp.eq.f32.partialorder %v2713, 8.507059e+37
    %v2715 = vand.u32 %v2673, 2147483648
    %v2716 = vor.u32 1.1754944e-38, %v2715
    %v2717 = vsel %vm2714, %v2716, %v2712
    %v2718 = vmul.f32 1.0, %v2717
    %v2719 = vtanh.pop %v2660
    %v2720 = vmul.f32 %v2703, %v2598
    %v2721 = vmul.f32 %v2688, %v2719
    %v2722 = vadd.f32 %v2720, %v2721
    %v2723 = vtanh.pop %v2722
    %v2724 = vmul.f32 %v2718, %v2723
    %v2725 = vld [vmem:[%s1133] sm:$0xff]
    %v2726 = vld [vmem:[%s1133 + $0x8] sm:$0xff]
    %v2727 = vld [vmem:[%s1133 + $0x10] sm:$0xff]
    %v2728 = vld [vmem:[%s1133 + $0x18] sm:$0xff]
    %v2729 = vpack.c.bf16 %v2724, %v2724
    %2730 = vmatpush.bf16.msra.mxu0 %v2322
    %2731 = vmatpush.bf16.msra.mxu0 %v2318
    %2732 = vmatpush.bf16.msra.mxu0 %v2314
    %2733 = vmatpush.bf16.msra.mxu0 %v2310
    %2734 = vmatpush.bf16.msra.mxu0 %v2306
    %2735 = vmatpush.bf16.msra.mxu0 %v2302
    %2736 = vmatpush.bf16.msra.mxu0 %v2298
    %2737 = vmatpush.bf16.msra.mxu0 %v2294
    %2738 = vmatmul.bf16.gmra.mxu0 %v2729
    %v2739 = vpop.f32.mrf.mxu0
    %v2740 = vadd.f32 0.0, %v2739
    %v2741 = vpop.f32.mrf.mxu0
    %2742 = vdwg.mxu0
    %2743 = vmatpush.bf16.msra.mxu0 %v2323
    %2744 = vmatpush.bf16.msra.mxu0 %v2319
    %2745 = vmatpush.bf16.msra.mxu0 %v2315
    %2746 = vmatpush.bf16.msra.mxu0 %v2311
    %2747 = vmatpush.bf16.msra.mxu0 %v2307
    %2748 = vmatpush.bf16.msra.mxu0 %v2303
    %2749 = vmatpush.bf16.msra.mxu0 %v2299
    %2750 = vmatpush.bf16.msra.mxu0 %v2295
    %2751 = vmatmul.bf16.gmra.mxu0 %v2729
    %v2752 = vpop.f32.mrf.mxu0
    %v2753 = vadd.f32 0.0, %v2752
    %v2754 = vpop.f32.mrf.mxu0
    %2755 = vdwg.mxu0
    %2756 = vmatpush.bf16.msra.mxu0 %v2324
    %2757 = vmatpush.bf16.msra.mxu0 %v2320
    %2758 = vmatpush.bf16.msra.mxu0 %v2316
    %2759 = vmatpush.bf16.msra.mxu0 %v2312
    %2760 = vmatpush.bf16.msra.mxu0 %v2308
    %2761 = vmatpush.bf16.msra.mxu0 %v2304
    %2762 = vmatpush.bf16.msra.mxu0 %v2300
    %2763 = vmatpush.bf16.msra.mxu0 %v2296
    %2764 = vmatmul.bf16.gmra.mxu0 %v2729
    %v2765 = vpop.f32.mrf.mxu0
    %v2766 = vadd.f32 0.0, %v2765
    %v2767 = vpop.f32.mrf.mxu0
    %2768 = vdwg.mxu0
    %2769 = vmatpush.bf16.msra.mxu0 %v2325
    %2770 = vmatpush.bf16.msra.mxu0 %v2321
    %2771 = vmatpush.bf16.msra.mxu0 %v2317
    %2772 = vmatpush.bf16.msra.mxu0 %v2313
    %2773 = vmatpush.bf16.msra.mxu0 %v2309
    %2774 = vmatpush.bf16.msra.mxu0 %v2305
    %2775 = vmatpush.bf16.msra.mxu0 %v2301
    %2776 = vmatpush.bf16.msra.mxu0 %v2297
    %2777 = vmatmul.bf16.gmra.mxu0 %v2729
    %v2778 = vpop.f32.mrf.mxu0
    %v2779 = vadd.f32 0.0, %v2778
    %v2780 = vpop.f32.mrf.mxu0
    %2781 = vdwg.mxu0
    %v2782 = vadd.f32 %v2725, %v2740
    %v2783 = vadd.f32 %v2726, %v2753
    %v2784 = vadd.f32 %v2727, %v2766
    %v2785 = vadd.f32 %v2728, %v2779
    %v2786 = vxor.u32 %v2782, 2147483648
    %v2787 = vxor.u32 %v2783, 2147483648
    %v2788 = vxor.u32 %v2785, 2147483648
    %v2789 = vmul.f32 %v2786, 1.442695
    %v2790 = vpow.pop %v2789
    %v2791 = vmul.f32 %v2787, 1.442695
    %v2792 = vpow.pop %v2791
    %v2793 = vmul.f32 %v2788, 1.442695
    %v2794 = vpow.pop %v2793
    %v2795 = vadd.f32 %v2790, 1.0
    %v2796 = vadd.f32 %v2792, 1.0
    %v2797 = vadd.f32 %v2794, 1.0
    %v2798 = vrcp.pop %v2795
    %v2799 = vmul.f32 %v2795, %v2798
    %v2800 = vsub.f32 1.0, %v2799
    %v2801 = vmul.f32 %v2798, %v2800
    %v2802 = vadd.f32 %v2798, %v2801
    %vm2803 = vweird.f32 %v2795
    %vm2804 = vweird.f32 %v2798
    %vm2805 = vmor %vm2803, %vm2804
    %v2806 = vsel %vm2805, %v2798, %v2802
    %v2807 = vand.u32 2147483647, %v2795
    %vm2808 = vcmp.eq.f32.partialorder %v2807, 8.507059e+37
    %v2809 = vand.u32 %v2795, 2147483648
    %v2810 = vor.u32 1.1754944e-38, %v2809
    %v2811 = vsel %vm2808, %v2810, %v2806
    %v2812 = vmul.f32 1.0, %v2811
    %v2813 = vrcp.pop %v2796
    %v2814 = vmul.f32 %v2796, %v2813
    %v2815 = vsub.f32 1.0, %v2814
    %v2816 = vmul.f32 %v2813, %v2815
    %v2817 = vadd.f32 %v2813, %v2816
    %vm2818 = vweird.f32 %v2796
    %vm2819 = vweird.f32 %v2813
    %vm2820 = vmor %vm2818, %vm2819
    %v2821 = vsel %vm2820, %v2813, %v2817
    %v2822 = vand.u32 2147483647, %v2796
    %vm2823 = vcmp.eq.f32.partialorder %v2822, 8.507059e+37
    %v2824 = vand.u32 %v2796, 2147483648
    %v2825 = vor.u32 1.1754944e-38, %v2824
    %v2826 = vsel %vm2823, %v2825, %v2821
    %v2827 = vmul.f32 1.0, %v2826
    %v2828 = vrcp.pop %v2797
    %v2829 = vmul.f32 %v2797, %v2828
    %v2830 = vsub.f32 1.0, %v2829
    %v2831 = vmul.f32 %v2828, %v2830
    %v2832 = vadd.f32 %v2828, %v2831
    %vm2833 = vweird.f32 %v2797
    %vm2834 = vweird.f32 %v2828
    %vm2835 = vmor %vm2833, %vm2834
    %v2836 = vsel %vm2835, %v2828, %v2832
    %v2837 = vand.u32 2147483647, %v2797
    %vm2838 = vcmp.eq.f32.partialorder %v2837, 8.507059e+37
    %v2839 = vand.u32 %v2797, 2147483648
    %v2840 = vor.u32 1.1754944e-38, %v2839
    %v2841 = vsel %vm2838, %v2840, %v2836
    %v2842 = vmul.f32 1.0, %v2841
    %v2843 = vtanh.pop %v2784
    %v2844 = vmul.f32 %v2827, %v2722
    %v2845 = vmul.f32 %v2812, %v2843
    %v2846 = vadd.f32 %v2844, %v2845
    %v2847 = vtanh.pop %v2846
    %v2848 = vmul.f32 %v2842, %v2847
    %v2849 = vld [vmem:[%s1260] sm:$0xff]
    %v2850 = vld [vmem:[%s1260 + $0x8] sm:$0xff]
    %v2851 = vld [vmem:[%s1260 + $0x10] sm:$0xff]
    %v2852 = vld [vmem:[%s1260 + $0x18] sm:$0xff]
    %v2853 = vpack.c.bf16 %v2848, %v2848
    %2854 = vmatpush.bf16.msra.mxu0 %v2322
    %2855 = vmatpush.bf16.msra.mxu0 %v2318
    %2856 = vmatpush.bf16.msra.mxu0 %v2314
    %2857 = vmatpush.bf16.msra.mxu0 %v2310
    %2858 = vmatpush.bf16.msra.mxu0 %v2306
    %2859 = vmatpush.bf16.msra.mxu0 %v2302
    %2860 = vmatpush.bf16.msra.mxu0 %v2298
    %2861 = vmatpush.bf16.msra.mxu0 %v2294
    %2862 = vmatmul.bf16.gmra.mxu0 %v2853
    %v2863 = vpop.f32.mrf.mxu0
    %v2864 = vadd.f32 0.0, %v2863
    %v2865 = vpop.f32.mrf.mxu0
    %2866 = vdwg.mxu0
    %2867 = vmatpush.bf16.msra.mxu0 %v2323
    %2868 = vmatpush.bf16.msra.mxu0 %v2319
    %2869 = vmatpush.bf16.msra.mxu0 %v2315
    %2870 = vmatpush.bf16.msra.mxu0 %v2311
    %2871 = vmatpush.bf16.msra.mxu0 %v2307
    %2872 = vmatpush.bf16.msra.mxu0 %v2303
    %2873 = vmatpush.bf16.msra.mxu0 %v2299
    %2874 = vmatpush.bf16.msra.mxu0 %v2295
    %2875 = vmatmul.bf16.gmra.mxu0 %v2853
    %v2876 = vpop.f32.mrf.mxu0
    %v2877 = vadd.f32 0.0, %v2876
    %v2878 = vpop.f32.mrf.mxu0
    %2879 = vdwg.mxu0
    %2880 = vmatpush.bf16.msra.mxu0 %v2324
    %2881 = vmatpush.bf16.msra.mxu0 %v2320
    %2882 = vmatpush.bf16.msra.mxu0 %v2316
    %2883 = vmatpush.bf16.msra.mxu0 %v2312
    %2884 = vmatpush.bf16.msra.mxu0 %v2308
    %2885 = vmatpush.bf16.msra.mxu0 %v2304
    %2886 = vmatpush.bf16.msra.mxu0 %v2300
    %2887 = vmatpush.bf16.msra.mxu0 %v2296
    %2888 = vmatmul.bf16.gmra.mxu0 %v2853
    %v2889 = vpop.f32.mrf.mxu0
    %v2890 = vadd.f32 0.0, %v2889
    %v2891 = vpop.f32.mrf.mxu0
    %2892 = vdwg.mxu0
    %2893 = vmatpush.bf16.msra.mxu0 %v2325
    %2894 = vmatpush.bf16.msra.mxu0 %v2321
    %2895 = vmatpush.bf16.msra.mxu0 %v2317
    %2896 = vmatpush.bf16.msra.mxu0 %v2313
    %2897 = vmatpush.bf16.msra.mxu0 %v2309
    %2898 = vmatpush.bf16.msra.mxu0 %v2305
    %2899 = vmatpush.bf16.msra.mxu0 %v2301
    %2900 = vmatpush.bf16.msra.mxu0 %v2297
    %2901 = vmatmul.bf16.gmra.mxu0 %v2853
    %v2902 = vpop.f32.mrf.mxu0
    %v2903 = vadd.f32 0.0, %v2902
    %v2904 = vpop.f32.mrf.mxu0
    %2905 = vdwg.mxu0
    %v2906 = vadd.f32 %v2849, %v2864
    %v2907 = vadd.f32 %v2850, %v2877
    %v2908 = vadd.f32 %v2851, %v2890
    %v2909 = vadd.f32 %v2852, %v2903
    %v2910 = vxor.u32 %v2906, 2147483648
    %v2911 = vxor.u32 %v2907, 2147483648
    %v2912 = vxor.u32 %v2909, 2147483648
    %v2913 = vmul.f32 %v2910, 1.442695
    %v2914 = vpow.pop %v2913
    %v2915 = vmul.f32 %v2911, 1.442695
    %v2916 = vpow.pop %v2915
    %v2917 = vmul.f32 %v2912, 1.442695
    %v2918 = vpow.pop %v2917
    %v2919 = vadd.f32 %v2914, 1.0
    %v2920 = vadd.f32 %v2916, 1.0
    %v2921 = vadd.f32 %v2918, 1.0
    %v2922 = vrcp.pop %v2919
    %v2923 = vmul.f32 %v2919, %v2922
    %v2924 = vsub.f32 1.0, %v2923
    %v2925 = vmul.f32 %v2922, %v2924
    %v2926 = vadd.f32 %v2922, %v2925
    %vm2927 = vweird.f32 %v2919
    %vm2928 = vweird.f32 %v2922
    %vm2929 = vmor %vm2927, %vm2928
    %v2930 = vsel %vm2929, %v2922, %v2926
    %v2931 = vand.u32 2147483647, %v2919
    %vm2932 = vcmp.eq.f32.partialorder %v2931, 8.507059e+37
    %v2933 = vand.u32 %v2919, 2147483648
    %v2934 = vor.u32 1.1754944e-38, %v2933
    %v2935 = vsel %vm2932, %v2934, %v2930
    %v2936 = vmul.f32 1.0, %v2935
    %v2937 = vrcp.pop %v2920
    %v2938 = vmul.f32 %v2920, %v2937
    %v2939 = vsub.f32 1.0, %v2938
    %v2940 = vmul.f32 %v2937, %v2939
    %v2941 = vadd.f32 %v2937, %v2940
    %vm2942 = vweird.f32 %v2920
    %vm2943 = vweird.f32 %v2937
    %vm2944 = vmor %vm2942, %vm2943
    %v2945 = vsel %vm2944, %v2937, %v2941
    %v2946 = vand.u32 2147483647, %v2920
    %vm2947 = vcmp.eq.f32.partialorder %v2946, 8.507059e+37
    %v2948 = vand.u32 %v2920, 2147483648
    %v2949 = vor.u32 1.1754944e-38, %v2948
    %v2950 = vsel %vm2947, %v2949, %v2945
    %v2951 = vmul.f32 1.0, %v2950
    %v2952 = vrcp.pop %v2921
    %v2953 = vmul.f32 %v2921, %v2952
    %v2954 = vsub.f32 1.0, %v2953
    %v2955 = vmul.f32 %v2952, %v2954
    %v2956 = vadd.f32 %v2952, %v2955
    %vm2957 = vweird.f32 %v2921
    %vm2958 = vweird.f32 %v2952
    %vm2959 = vmor %vm2957, %vm2958
    %v2960 = vsel %vm2959, %v2952, %v2956
    %v2961 = vand.u32 2147483647, %v2921
    %vm2962 = vcmp.eq.f32.partialorder %v2961, 8.507059e+37
    %v2963 = vand.u32 %v2921, 2147483648
    %v2964 = vor.u32 1.1754944e-38, %v2963
    %v2965 = vsel %vm2962, %v2964, %v2960
    %v2966 = vmul.f32 1.0, %v2965
    %v2967 = vtanh.pop %v2908
    %v2968 = vmul.f32 %v2951, %v2846
    %v2969 = vmul.f32 %v2936, %v2967
    %v2970 = vadd.f32 %v2968, %v2969
    %v2971 = vtanh.pop %v2970
    %v2972 = vmul.f32 %v2966, %v2971
    %v2973 = vld [vmem:[%s1387] sm:$0xff]
    %v2974 = vld [vmem:[%s1387 + $0x8] sm:$0xff]
    %v2975 = vld [vmem:[%s1387 + $0x10] sm:$0xff]
    %v2976 = vld [vmem:[%s1387 + $0x18] sm:$0xff]
    %v2977 = vpack.c.bf16 %v2972, %v2972
    %2978 = vmatpush.bf16.msra.mxu0 %v2322
    %2979 = vmatpush.bf16.msra.mxu0 %v2318
    %2980 = vmatpush.bf16.msra.mxu0 %v2314
    %2981 = vmatpush.bf16.msra.mxu0 %v2310
    %2982 = vmatpush.bf16.msra.mxu0 %v2306
    %2983 = vmatpush.bf16.msra.mxu0 %v2302
    %2984 = vmatpush.bf16.msra.mxu0 %v2298
    %2985 = vmatpush.bf16.msra.mxu0 %v2294
    %2986 = vmatmul.bf16.gmra.mxu0 %v2977
    %v2987 = vpop.f32.mrf.mxu0
    %v2988 = vadd.f32 0.0, %v2987
    %v2989 = vpop.f32.mrf.mxu0
    %2990 = vdwg.mxu0
    %2991 = vmatpush.bf16.msra.mxu0 %v2323
    %2992 = vmatpush.bf16.msra.mxu0 %v2319
    %2993 = vmatpush.bf16.msra.mxu0 %v2315
    %2994 = vmatpush.bf16.msra.mxu0 %v2311
    %2995 = vmatpush.bf16.msra.mxu0 %v2307
    %2996 = vmatpush.bf16.msra.mxu0 %v2303
    %2997 = vmatpush.bf16.msra.mxu0 %v2299
    %2998 = vmatpush.bf16.msra.mxu0 %v2295
    %2999 = vmatmul.bf16.gmra.mxu0 %v2977
    %v3000 = vpop.f32.mrf.mxu0
    %v3001 = vadd.f32 0.0, %v3000
    %v3002 = vpop.f32.mrf.mxu0
    %3003 = vdwg.mxu0
    %3004 = vmatpush.bf16.msra.mxu0 %v2324
    %3005 = vmatpush.bf16.msra.mxu0 %v2320
    %3006 = vmatpush.bf16.msra.mxu0 %v2316
    %3007 = vmatpush.bf16.msra.mxu0 %v2312
    %3008 = vmatpush.bf16.msra.mxu0 %v2308
    %3009 = vmatpush.bf16.msra.mxu0 %v2304
    %3010 = vmatpush.bf16.msra.mxu0 %v2300
    %3011 = vmatpush.bf16.msra.mxu0 %v2296
    %3012 = vmatmul.bf16.gmra.mxu0 %v2977
    %v3013 = vpop.f32.mrf.mxu0
    %v3014 = vadd.f32 0.0, %v3013
    %v3015 = vpop.f32.mrf.mxu0
    %3016 = vdwg.mxu0
    %3017 = vmatpush.bf16.msra.mxu0 %v2325
    %3018 = vmatpush.bf16.msra.mxu0 %v2321
    %3019 = vmatpush.bf16.msra.mxu0 %v2317
    %3020 = vmatpush.bf16.msra.mxu0 %v2313
    %3021 = vmatpush.bf16.msra.mxu0 %v2309
    %3022 = vmatpush.bf16.msra.mxu0 %v2305
    %3023 = vmatpush.bf16.msra.mxu0 %v2301
    %3024 = vmatpush.bf16.msra.mxu0 %v2297
    %3025 = vmatmul.bf16.gmra.mxu0 %v2977
    %v3026 = vpop.f32.mrf.mxu0
    %v3027 = vadd.f32 0.0, %v3026
    %v3028 = vpop.f32.mrf.mxu0
    %3029 = vdwg.mxu0
    %v3030 = vadd.f32 %v2973, %v2988
    %v3031 = vadd.f32 %v2974, %v3001
    %v3032 = vadd.f32 %v2975, %v3014
    %v3033 = vadd.f32 %v2976, %v3027
    %v3034 = vxor.u32 %v3030, 2147483648
    %v3035 = vxor.u32 %v3031, 2147483648
    %v3036 = vxor.u32 %v3033, 2147483648
    %v3037 = vmul.f32 %v3034, 1.442695
    %v3038 = vpow.pop %v3037
    %v3039 = vmul.f32 %v3035, 1.442695
    %v3040 = vpow.pop %v3039
    %v3041 = vmul.f32 %v3036, 1.442695
    %v3042 = vpow.pop %v3041
    %v3043 = vadd.f32 %v3038, 1.0
    %v3044 = vadd.f32 %v3040, 1.0
    %v3045 = vadd.f32 %v3042, 1.0
    %v3046 = vrcp.pop %v3043
    %v3047 = vmul.f32 %v3043, %v3046
    %v3048 = vsub.f32 1.0, %v3047
    %v3049 = vmul.f32 %v3046, %v3048
    %v3050 = vadd.f32 %v3046, %v3049
    %vm3051 = vweird.f32 %v3043
    %vm3052 = vweird.f32 %v3046
    %vm3053 = vmor %vm3051, %vm3052
    %v3054 = vsel %vm3053, %v3046, %v3050
    %v3055 = vand.u32 2147483647, %v3043
    %vm3056 = vcmp.eq.f32.partialorder %v3055, 8.507059e+37
    %v3057 = vand.u32 %v3043, 2147483648
    %v3058 = vor.u32 1.1754944e-38, %v3057
    %v3059 = vsel %vm3056, %v3058, %v3054
    %v3060 = vmul.f32 1.0, %v3059
    %v3061 = vrcp.pop %v3044
    %v3062 = vmul.f32 %v3044, %v3061
    %v3063 = vsub.f32 1.0, %v3062
    %v3064 = vmul.f32 %v3061, %v3063
    %v3065 = vadd.f32 %v3061, %v3064
    %vm3066 = vweird.f32 %v3044
    %vm3067 = vweird.f32 %v3061
    %vm3068 = vmor %vm3066, %vm3067
    %v3069 = vsel %vm3068, %v3061, %v3065
    %v3070 = vand.u32 2147483647, %v3044
    %vm3071 = vcmp.eq.f32.partialorder %v3070, 8.507059e+37
    %v3072 = vand.u32 %v3044, 2147483648
    %v3073 = vor.u32 1.1754944e-38, %v3072
    %v3074 = vsel %vm3071, %v3073, %v3069
    %v3075 = vmul.f32 1.0, %v3074
    %v3076 = vrcp.pop %v3045
    %v3077 = vmul.f32 %v3045, %v3076
    %v3078 = vsub.f32 1.0, %v3077
    %v3079 = vmul.f32 %v3076, %v3078
    %v3080 = vadd.f32 %v3076, %v3079
    %vm3081 = vweird.f32 %v3045
    %vm3082 = vweird.f32 %v3076
    %vm3083 = vmor %vm3081, %vm3082
    %v3084 = vsel %vm3083, %v3076, %v3080
    %v3085 = vand.u32 2147483647, %v3045
    %vm3086 = vcmp.eq.f32.partialorder %v3085, 8.507059e+37
    %v3087 = vand.u32 %v3045, 2147483648
    %v3088 = vor.u32 1.1754944e-38, %v3087
    %v3089 = vsel %vm3086, %v3088, %v3084
    %v3090 = vmul.f32 1.0, %v3089
    %v3091 = vtanh.pop %v3032
    %v3092 = vmul.f32 %v3075, %v2970
    %v3093 = vmul.f32 %v3060, %v3091
    %v3094 = vadd.f32 %v3092, %v3093
    %v3095 = vtanh.pop %v3094
    %v3096 = vmul.f32 %v3090, %v3095
    %v3097 = vld [vmem:[%s1514] sm:$0xff]
    %v3098 = vld [vmem:[%s1514 + $0x8] sm:$0xff]
    %v3099 = vld [vmem:[%s1514 + $0x10] sm:$0xff]
    %v3100 = vld [vmem:[%s1514 + $0x18] sm:$0xff]
    %v3101 = vpack.c.bf16 %v3096, %v3096
    %3102 = vmatpush.bf16.msra.mxu0 %v2322
    %3103 = vmatpush.bf16.msra.mxu0 %v2318
    %3104 = vmatpush.bf16.msra.mxu0 %v2314
    %3105 = vmatpush.bf16.msra.mxu0 %v2310
    %3106 = vmatpush.bf16.msra.mxu0 %v2306
    %3107 = vmatpush.bf16.msra.mxu0 %v2302
    %3108 = vmatpush.bf16.msra.mxu0 %v2298
    %3109 = vmatpush.bf16.msra.mxu0 %v2294
    %3110 = vmatmul.bf16.gmra.mxu0 %v3101
    %v3111 = vpop.f32.mrf.mxu0
    %v3112 = vadd.f32 0.0, %v3111
    %v3113 = vpop.f32.mrf.mxu0
    %3114 = vdwg.mxu0
    %3115 = vmatpush.bf16.msra.mxu0 %v2323
    %3116 = vmatpush.bf16.msra.mxu0 %v2319
    %3117 = vmatpush.bf16.msra.mxu0 %v2315
    %3118 = vmatpush.bf16.msra.mxu0 %v2311
    %3119 = vmatpush.bf16.msra.mxu0 %v2307
    %3120 = vmatpush.bf16.msra.mxu0 %v2303
    %3121 = vmatpush.bf16.msra.mxu0 %v2299
    %3122 = vmatpush.bf16.msra.mxu0 %v2295
    %3123 = vmatmul.bf16.gmra.mxu0 %v3101
    %v3124 = vpop.f32.mrf.mxu0
    %v3125 = vadd.f32 0.0, %v3124
    %v3126 = vpop.f32.mrf.mxu0
    %3127 = vdwg.mxu0
    %3128 = vmatpush.bf16.msra.mxu0 %v2324
    %3129 = vmatpush.bf16.msra.mxu0 %v2320
    %3130 = vmatpush.bf16.msra.mxu0 %v2316
    %3131 = vmatpush.bf16.msra.mxu0 %v2312
    %3132 = vmatpush.bf16.msra.mxu0 %v2308
    %3133 = vmatpush.bf16.msra.mxu0 %v2304
    %3134 = vmatpush.bf16.msra.mxu0 %v2300
    %3135 = vmatpush.bf16.msra.mxu0 %v2296
    %3136 = vmatmul.bf16.gmra.mxu0 %v3101
    %v3137 = vpop.f32.mrf.mxu0
    %v3138 = vadd.f32 0.0, %v3137
    %v3139 = vpop.f32.mrf.mxu0
    %3140 = vdwg.mxu0
    %3141 = vmatpush.bf16.msra.mxu0 %v2325
    %3142 = vmatpush.bf16.msra.mxu0 %v2321
    %3143 = vmatpush.bf16.msra.mxu0 %v2317
    %3144 = vmatpush.bf16.msra.mxu0 %v2313
    %3145 = vmatpush.bf16.msra.mxu0 %v2309
    %3146 = vmatpush.bf16.msra.mxu0 %v2305
    %3147 = vmatpush.bf16.msra.mxu0 %v2301
    %3148 = vmatpush.bf16.msra.mxu0 %v2297
    %3149 = vmatmul.bf16.gmra.mxu0 %v3101
    %v3150 = vpop.f32.mrf.mxu0
    %v3151 = vadd.f32 0.0, %v3150
    %v3152 = vpop.f32.mrf.mxu0
    %3153 = vdwg.mxu0
    %v3154 = vadd.f32 %v3097, %v3112
    %v3155 = vadd.f32 %v3098, %v3125
    %v3156 = vadd.f32 %v3099, %v3138
    %v3157 = vadd.f32 %v3100, %v3151
    %v3158 = vxor.u32 %v3154, 2147483648
    %v3159 = vxor.u32 %v3155, 2147483648
    %v3160 = vxor.u32 %v3157, 2147483648
    %v3161 = vmul.f32 %v3158, 1.442695
    %v3162 = vpow.pop %v3161
    %v3163 = vmul.f32 %v3159, 1.442695
    %v3164 = vpow.pop %v3163
    %v3165 = vmul.f32 %v3160, 1.442695
    %v3166 = vpow.pop %v3165
    %v3167 = vadd.f32 %v3162, 1.0
    %v3168 = vadd.f32 %v3164, 1.0
    %v3169 = vadd.f32 %v3166, 1.0
    %v3170 = vrcp.pop %v3167
    %v3171 = vmul.f32 %v3167, %v3170
    %v3172 = vsub.f32 1.0, %v3171
    %v3173 = vmul.f32 %v3170, %v3172
    %v3174 = vadd.f32 %v3170, %v3173
    %vm3175 = vweird.f32 %v3167
    %vm3176 = vweird.f32 %v3170
    %vm3177 = vmor %vm3175, %vm3176
    %v3178 = vsel %vm3177, %v3170, %v3174
    %v3179 = vand.u32 2147483647, %v3167
    %vm3180 = vcmp.eq.f32.partialorder %v3179, 8.507059e+37
    %v3181 = vand.u32 %v3167, 2147483648
    %v3182 = vor.u32 1.1754944e-38, %v3181
    %v3183 = vsel %vm3180, %v3182, %v3178
    %v3184 = vmul.f32 1.0, %v3183
    %v3185 = vrcp.pop %v3168
    %v3186 = vmul.f32 %v3168, %v3185
    %v3187 = vsub.f32 1.0, %v3186
    %v3188 = vmul.f32 %v3185, %v3187
    %v3189 = vadd.f32 %v3185, %v3188
    %vm3190 = vweird.f32 %v3168
    %vm3191 = vweird.f32 %v3185
    %vm3192 = vmor %vm3190, %vm3191
    %v3193 = vsel %vm3192, %v3185, %v3189
    %v3194 = vand.u32 2147483647, %v3168
    %vm3195 = vcmp.eq.f32.partialorder %v3194, 8.507059e+37
    %v3196 = vand.u32 %v3168, 2147483648
    %v3197 = vor.u32 1.1754944e-38, %v3196
    %v3198 = vsel %vm3195, %v3197, %v3193
    %v3199 = vmul.f32 1.0, %v3198
    %v3200 = vrcp.pop %v3169
    %v3201 = vmul.f32 %v3169, %v3200
    %v3202 = vsub.f32 1.0, %v3201
    %v3203 = vmul.f32 %v3200, %v3202
    %v3204 = vadd.f32 %v3200, %v3203
    %vm3205 = vweird.f32 %v3169
    %vm3206 = vweird.f32 %v3200
    %vm3207 = vmor %vm3205, %vm3206
    %v3208 = vsel %vm3207, %v3200, %v3204
    %v3209 = vand.u32 2147483647, %v3169
    %vm3210 = vcmp.eq.f32.partialorder %v3209, 8.507059e+37
    %v3211 = vand.u32 %v3169, 2147483648
    %v3212 = vor.u32 1.1754944e-38, %v3211
    %v3213 = vsel %vm3210, %v3212, %v3208
    %v3214 = vmul.f32 1.0, %v3213
    %v3215 = vtanh.pop %v3156
    %v3216 = vmul.f32 %v3199, %v3094
    %v3217 = vmul.f32 %v3184, %v3215
    %v3218 = vadd.f32 %v3216, %v3217
    %v3219 = vtanh.pop %v3218
    %v3220 = vmul.f32 %v3214, %v3219
    %v3221 = vld [vmem:[%s1641] sm:$0xff]
    %v3222 = vld [vmem:[%s1641 + $0x8] sm:$0xff]
    %v3223 = vld [vmem:[%s1641 + $0x10] sm:$0xff]
    %v3224 = vld [vmem:[%s1641 + $0x18] sm:$0xff]
    %v3225 = vpack.c.bf16 %v3220, %v3220
    %3226 = vmatpush.bf16.msra.mxu0 %v2322
    %3227 = vmatpush.bf16.msra.mxu0 %v2318
    %3228 = vmatpush.bf16.msra.mxu0 %v2314
    %3229 = vmatpush.bf16.msra.mxu0 %v2310
    %3230 = vmatpush.bf16.msra.mxu0 %v2306
    %3231 = vmatpush.bf16.msra.mxu0 %v2302
    %3232 = vmatpush.bf16.msra.mxu0 %v2298
    %3233 = vmatpush.bf16.msra.mxu0 %v2294
    %3234 = vmatmul.bf16.gmra.mxu0 %v3225
    %v3235 = vpop.f32.mrf.mxu0
    %v3236 = vadd.f32 0.0, %v3235
    %v3237 = vpop.f32.mrf.mxu0
    %3238 = vdwg.mxu0
    %3239 = vmatpush.bf16.msra.mxu0 %v2323
    %3240 = vmatpush.bf16.msra.mxu0 %v2319
    %3241 = vmatpush.bf16.msra.mxu0 %v2315
    %3242 = vmatpush.bf16.msra.mxu0 %v2311
    %3243 = vmatpush.bf16.msra.mxu0 %v2307
    %3244 = vmatpush.bf16.msra.mxu0 %v2303
    %3245 = vmatpush.bf16.msra.mxu0 %v2299
    %3246 = vmatpush.bf16.msra.mxu0 %v2295
    %3247 = vmatmul.bf16.gmra.mxu0 %v3225
    %v3248 = vpop.f32.mrf.mxu0
    %v3249 = vadd.f32 0.0, %v3248
    %v3250 = vpop.f32.mrf.mxu0
    %3251 = vdwg.mxu0
    %3252 = vmatpush.bf16.msra.mxu0 %v2324
    %3253 = vmatpush.bf16.msra.mxu0 %v2320
    %3254 = vmatpush.bf16.msra.mxu0 %v2316
    %3255 = vmatpush.bf16.msra.mxu0 %v2312
    %3256 = vmatpush.bf16.msra.mxu0 %v2308
    %3257 = vmatpush.bf16.msra.mxu0 %v2304
    %3258 = vmatpush.bf16.msra.mxu0 %v2300
    %3259 = vmatpush.bf16.msra.mxu0 %v2296
    %3260 = vmatmul.bf16.gmra.mxu0 %v3225
    %v3261 = vpop.f32.mrf.mxu0
    %v3262 = vadd.f32 0.0, %v3261
    %v3263 = vpop.f32.mrf.mxu0
    %3264 = vdwg.mxu0
    %3265 = vmatpush.bf16.msra.mxu0 %v2325
    %3266 = vmatpush.bf16.msra.mxu0 %v2321
    %3267 = vmatpush.bf16.msra.mxu0 %v2317
    %3268 = vmatpush.bf16.msra.mxu0 %v2313
    %3269 = vmatpush.bf16.msra.mxu0 %v2309
    %3270 = vmatpush.bf16.msra.mxu0 %v2305
    %3271 = vmatpush.bf16.msra.mxu0 %v2301
    %3272 = vmatpush.bf16.msra.mxu0 %v2297
    %3273 = vmatmul.bf16.gmra.mxu0 %v3225
    %v3274 = vpop.f32.mrf.mxu0
    %v3275 = vadd.f32 0.0, %v3274
    %v3276 = vpop.f32.mrf.mxu0
    %3277 = vdwg.mxu0
    %v3278 = vadd.f32 %v3221, %v3236
    %v3279 = vadd.f32 %v3222, %v3249
    %v3280 = vadd.f32 %v3223, %v3262
    %v3281 = vadd.f32 %v3224, %v3275
    %v3282 = vxor.u32 %v3278, 2147483648
    %v3283 = vxor.u32 %v3279, 2147483648
    %v3284 = vxor.u32 %v3281, 2147483648
    %v3285 = vmul.f32 %v3282, 1.442695
    %v3286 = vpow.pop %v3285
    %v3287 = vmul.f32 %v3283, 1.442695
    %v3288 = vpow.pop %v3287
    %v3289 = vmul.f32 %v3284, 1.442695
    %v3290 = vpow.pop %v3289
    %v3291 = vadd.f32 %v3286, 1.0
    %v3292 = vadd.f32 %v3288, 1.0
    %v3293 = vadd.f32 %v3290, 1.0
    %v3294 = vrcp.pop %v3291
    %v3295 = vmul.f32 %v3291, %v3294
    %v3296 = vsub.f32 1.0, %v3295
    %v3297 = vmul.f32 %v3294, %v3296
    %v3298 = vadd.f32 %v3294, %v3297
    %vm3299 = vweird.f32 %v3291
    %vm3300 = vweird.f32 %v3294
    %vm3301 = vmor %vm3299, %vm3300
    %v3302 = vsel %vm3301, %v3294, %v3298
    %v3303 = vand.u32 2147483647, %v3291
    %vm3304 = vcmp.eq.f32.partialorder %v3303, 8.507059e+37
    %v3305 = vand.u32 %v3291, 2147483648
    %v3306 = vor.u32 1.1754944e-38, %v3305
    %v3307 = vsel %vm3304, %v3306, %v3302
    %v3308 = vmul.f32 1.0, %v3307
    %v3309 = vrcp.pop %v3292
    %v3310 = vmul.f32 %v3292, %v3309
    %v3311 = vsub.f32 1.0, %v3310
    %v3312 = vmul.f32 %v3309, %v3311
    %v3313 = vadd.f32 %v3309, %v3312
    %vm3314 = vweird.f32 %v3292
    %vm3315 = vweird.f32 %v3309
    %vm3316 = vmor %vm3314, %vm3315
    %v3317 = vsel %vm3316, %v3309, %v3313
    %v3318 = vand.u32 2147483647, %v3292
    %vm3319 = vcmp.eq.f32.partialorder %v3318, 8.507059e+37
    %v3320 = vand.u32 %v3292, 2147483648
    %v3321 = vor.u32 1.1754944e-38, %v3320
    %v3322 = vsel %vm3319, %v3321, %v3317
    %v3323 = vmul.f32 1.0, %v3322
    %v3324 = vrcp.pop %v3293
    %v3325 = vmul.f32 %v3293, %v3324
    %v3326 = vsub.f32 1.0, %v3325
    %v3327 = vmul.f32 %v3324, %v3326
    %v3328 = vadd.f32 %v3324, %v3327
    %vm3329 = vweird.f32 %v3293
    %vm3330 = vweird.f32 %v3324
    %vm3331 = vmor %vm3329, %vm3330
    %v3332 = vsel %vm3331, %v3324, %v3328
    %v3333 = vand.u32 2147483647, %v3293
    %vm3334 = vcmp.eq.f32.partialorder %v3333, 8.507059e+37
    %v3335 = vand.u32 %v3293, 2147483648
    %v3336 = vor.u32 1.1754944e-38, %v3335
    %v3337 = vsel %vm3334, %v3336, %v3332
    %v3338 = vmul.f32 1.0, %v3337
    %v3339 = vtanh.pop %v3280
    %v3340 = vmul.f32 %v3323, %v3218
    %v3341 = vmul.f32 %v3308, %v3339
    %v3342 = vadd.f32 %v3340, %v3341
    %v3343 = vtanh.pop %v3342
    %v3344 = vmul.f32 %v3338, %v3343
    %v3345 = vpack.c.bf16 %v3344, %v3344
    %v3346 = vld [vmem:[#allocation15] sm:$0xf]
    %v3347 = vld [vmem:[#allocation15 + $0x4] sm:$0xf]
    %v3348 = vld [vmem:[#allocation15 + $0x8] sm:$0xf]
    %v3349 = vld [vmem:[#allocation15 + $0xc] sm:$0xf]
    %v3350 = vld [vmem:[#allocation15 + $0x10] sm:$0xf]
    %v3351 = vld [vmem:[#allocation15 + $0x14] sm:$0xf]
    %v3352 = vld [vmem:[#allocation15 + $0x18] sm:$0xf]
    %v3353 = vld [vmem:[#allocation15 + $0x1c] sm:$0xf]
    %v3354 = vld [vmem:[#allocation15 + $0x20] sm:$0xf]
    %v3355 = vld [vmem:[#allocation15 + $0x24] sm:$0xf]
    %v3356 = vld [vmem:[#allocation15 + $0x28] sm:$0xf]
    %v3357 = vld [vmem:[#allocation15 + $0x2c] sm:$0xf]
    %v3358 = vld [vmem:[#allocation15 + $0x30] sm:$0xf]
    %v3359 = vld [vmem:[#allocation15 + $0x34] sm:$0xf]
    %v3360 = vld [vmem:[#allocation15 + $0x38] sm:$0xf]
    %v3361 = vld [vmem:[#allocation15 + $0x3c] sm:$0xf]
    %v3362 = vld [vmem:[%s8] sm:$0x1]
    %v3364 = vperm.slane %v3362, 0
    %v3382 = vunpack.c.l.b16 %v3346
    %v3383 = vunpack.c.l.b16 %v3347
    %v3384 = vunpack.c.l.b16 %v3348
    %v3385 = vunpack.c.l.b16 %v3349
    %v3386 = vunpack.c.l.b16 %v3350
    %v3387 = vunpack.c.l.b16 %v3351
    %v3388 = vunpack.c.l.b16 %v3352
    %v3389 = vunpack.c.l.b16 %v3353
    %v3390 = vunpack.c.l.b16 %v3354
    %v3391 = vunpack.c.l.b16 %v3355
    %v3392 = vunpack.c.l.b16 %v3356
    %v3393 = vunpack.c.l.b16 %v3357
    %v3394 = vunpack.c.l.b16 %v3358
    %v3395 = vunpack.c.l.b16 %v3359
    %v3396 = vunpack.c.l.b16 %v3360
    %v3397 = vunpack.c.l.b16 %v3361
    %v3398 = vpack.c.b16 %v3383, %v3382
    %v3399 = vpack.c.b16 %v3385, %v3384
    %v3400 = vpack.c.b16 %v3387, %v3386
    %v3401 = vpack.c.b16 %v3389, %v3388
    %v3402 = vpack.c.b16 %v3391, %v3390
    %v3403 = vpack.c.b16 %v3393, %v3392
    %v3404 = vpack.c.b16 %v3395, %v3394
    %v3405 = vpack.c.b16 %v3397, %v3396
    %3414 = vmatpush.bf16.msra.mxu0 %v3405
    %3415 = vmatpush.bf16.msra.mxu0 %v3404
    %3416 = vmatpush.bf16.msra.mxu0 %v3403
    %3417 = vmatpush.bf16.msra.mxu0 %v3402
    %3418 = vmatpush.bf16.msra.mxu0 %v3401
    %3419 = vmatpush.bf16.msra.mxu0 %v3400
    %3420 = vmatpush.bf16.msra.mxu0 %v3399
    %3421 = vmatpush.bf16.msra.mxu0 %v3398
    %3422 = vmatmul.bf16.gmra.mxu0 %v3345
    %v3423 = vpop.f32.mrf.mxu0
    %v3424 = vadd.f32 %v3364, %v3423
    %v3425 = vpop.f32.mrf.mxu0
    %3426 = vdwg.mxu0
    %v3427 = vmul.f32 %v3424, %v3424
    %3428 = vadd.xlane.f32.xlu0 %v3427
    %v3429 = vpop.xlane.xlu0 %3428
    %v3430 = vrsqrt.pop %v3429
    %v3431 = vmul.f32 %v3430, %v3429
    %v3432 = vmul.f32 %v3431, %v3430
    %v3433 = vmul.f32 0.5, %v3432
    %v3434 = vsub.f32 1.5, %v3433
    %v3435 = vmul.f32 %v3430, %v3434
    %vm3436 = vweird.f32 %v3429
    %vm3437 = vweird.f32 %v3430
    %vm3438 = vmor %vm3436, %vm3437
    %v3439 = vsel %vm3438, %v3430, %v3435
    %v3440 = vmul.f32 %v3424, %v3439
    %3441 = vst [vmem:[#allocation16] sm:$0xff] %v3440
    // Predicated region
    $region66: #{tpu_custom_call.1} parent=1 // pred_check
      _
    $region67: #{tpu_custom_call.1} parent=1 // pred_check_branch
      %3443 = sbr.rel (0) target = $region69
    $region68: #{tpu_custom_call.1} parent=1 // pred_region
      %3445 = vsyncadd [#allocation6], 0
      %s3447 = sshll.u32 [#allocation16], 4
      %s3448 = int_to_ptr.vmem [resolvable:$true] %s3447
      %s3449 = sshll.u32 %s9, 4
      %s3450 = int_to_ptr.hbm [resolvable:$true] %s3449
      %3452 = dma.vmem_to_hbm [thread:$0]  %s3448, 128, %s3450, [#allocation6]
    $region69: #{tpu_custom_call.1} parent=1 // pred_fallthru
      _
    // Predicated region
    $region70: #{tpu_custom_call.1} parent=1 // pred_check
      _
    $region71: #{tpu_custom_call.1} parent=1 // pred_check_branch
      %3454 = sbr.rel (0) target = $region73
    $region72: #{tpu_custom_call.1} parent=1 // pred_region
      %3456 = dma.done [#allocation6], 128
    $region73: #{tpu_custom_call.1} parent=1 // pred_fallthru
      _
    %3457 = vsyncpa [#allocation5], 1
    %3458 = vsyncpa [#allocation8], 1
    %3459 = vsyncpa [#allocation11], 1
    %3460 = vsyncpa [#allocation14], 1
    %3461 = vsyncpa [#allocation6], 1

</llo_original>
